<compile_context>
chip_gen: v6e
topology: v6e:2x2x1
jax: 0.10.0
libtpu: 0.0.40
codegen_flags: <defaults>
</compile_context>

<pallas_src>
import jax
import jax.numpy as jnp
from jax.experimental import pallas as pl
from jax.experimental.pallas import tpu as pltpu


# -----------------------------------------------------------------------------
# Pallas kernel: [AdaIN + residual] + reflect-pad + 3x3 conv + bias + ReLU
#                [+ 2x nearest upsample], for one image.
# -----------------------------------------------------------------------------

def _build_conv_kernel(has_style: bool, upsample: bool):
    """Returns a kernel taking refs:
         [ec_ref, es_ref,] x_ref, w_ref, b_ref, o_ref
       x_ref : (H, W, Cin)            activation (unpadded, NHWC slice)
       w_ref : (3, 3*Cin, Cout)       bf16, dx taps pre-packed along K
       b_ref : (1, 1, Cout)           fp32
       o_ref : (H, W, Cout)                        if not upsample
               (2H, W, 2*Cout) lane-packed         if upsample
    """

    def kernel(*refs):
        if has_style:
            ec_ref, es_ref, x_ref, w_ref, b_ref, o_ref = refs
        else:
            x_ref, w_ref, b_ref, o_ref = refs

        H, W, Cin = x_ref.shape
        Cout = b_ref.shape[-1]

        x = x_ref[...].astype(jnp.float32)

        if has_style:
            # TODO(synk): `net.get_style_trans` is not defined in the prompt; it
            #             is approximated here as AdaIN(ec, es) + x (fp32 stats).
            eps = 1e-5
            inv_hw = 1.0 / float(H * W)
            ec = ec_ref[...].astype(jnp.float32)
            es = es_ref[...].astype(jnp.float32)
            # Single pass over ec / es: var = E[x^2] - mu^2.
            mu_c = jnp.sum(ec, axis=(0, 1), keepdims=True) * inv_hw
            var_c = jnp.maximum(
                jnp.sum(ec * ec, axis=(0, 1), keepdims=True) * inv_hw - mu_c * mu_c, 0.0)
            mu_s = jnp.sum(es, axis=(0, 1), keepdims=True) * inv_hw
            var_s = jnp.maximum(
                jnp.sum(es * es, axis=(0, 1), keepdims=True) * inv_hw - mu_s * mu_s, 0.0)
            # Fold both normalizations into one per-channel scale (EUP sqrt/rsqrt).
            scale = jnp.sqrt(var_s + eps) * jax.lax.rsqrt(var_c + eps)
            x = (ec - mu_c) * scale + mu_s + x

        # bf16 MXU inputs; accumulation stays fp32.
        xm = x.astype(jnp.bfloat16)

        # Reflection pad rows in VMEM (no padded HBM copy): (H+2, W, Cin).
        xh = jnp.concatenate([xm[1:2], xm, xm[H - 2:H - 1]], axis=0)
        # dx = -1 / 0 / +1 taps with W reflection, concatenated along channels
        # (the matmul K axis): (H+2, W, 3*Cin).
        left = jnp.concatenate([xh[:, 1:2, :], xh[:, 0:W - 1, :]], axis=1)
        right = jnp.concatenate([xh[:, 1:W, :], xh[:, W - 2:W - 1, :]], axis=1)
        taps = jnp.concatenate([left, xh, right], axis=-1)

        if W % 8 == 0:
            # Sublane-aligned collapse -> 3 clean 2-D MXU matmuls, K = 3*Cin.
            taps2 = taps.reshape((H + 2) * W, 3 * Cin)
            acc = jnp.zeros((H * W, Cout), jnp.float32)
            for dy in range(3):
                acc = acc + jnp.dot(taps2[dy * W:(dy + H) * W], w_ref[dy],
                                    preferred_element_type=jnp.float32)
            y = acc.reshape(H, W, Cout)
        else:
            acc = jnp.zeros((H, W, Cout), jnp.float32)
            for dy in range(3):
                acc = acc + jax.lax.dot_general(
                    taps[dy:dy + H], w_ref[dy],
                    dimension_numbers=(((2,), (0,)), ((), ())),
                    preferred_element_type=jnp.float32)
            y = acc

        y = jnp.maximum(y + b_ref[...], 0.0)          # bias + ReLU (fp32)

        if upsample:
            # 2x nearest upsample fused into the store:
            #   W direction -> lane-axis duplication: (H, W, 2*Cout)
            #   H direction -> outer-dim duplication: (2H, W, 2*Cout)
            # The wrapper reshapes (N, 2H, W, 2*Cout) -> (N, 2H, 2W, Cout),
            # a free contiguous (row-major) reshape.
            y = jnp.concatenate([y, y], axis=-1)
            y = jnp.broadcast_to(y[:, None], (H, 2, W, 2 * Cout))
            y = y.reshape(2 * H, W, 2 * Cout)

        o_ref[...] = y.astype(o_ref.dtype)

    return kernel


# -----------------------------------------------------------------------------
# pallas_call wrapper (grid over batch; full spatial/channel blocks)
# -----------------------------------------------------------------------------

def conv3x3_reflect_relu(x, w, b, *, ec=None, es=None, upsample=False):
    """Fused [AdaIN(ec,es)+x] + ReflectionPad2d(1) + Conv2d(3x3) + ReLU
       [+ Upsample(scale_factor=2, mode='nearest')].

       x      : (N, H, W, Cin)   NHWC fp32
       w      : (3, 3*Cin, Cout) bf16 (dx-major packed taps)
       b      : (1, 1, Cout)     fp32
       ec, es : optional (N, H, W, Cin) content / style encodings
    """
    has_style = ec is not None
    N, H, W, Cin = x.shape
    Cout = b.shape[-1]

    act_spec = pl.BlockSpec((None, H, W, Cin), lambda n: (n, 0, 0, 0))
    in_specs = ([act_spec, act_spec] if has_style else []) + [
        act_spec,
        pl.BlockSpec((3, 3 * Cin, Cout), lambda n: (0, 0, 0)),
        pl.BlockSpec((1, 1, Cout), lambda n: (0, 0, 0)),
    ]
    inputs = ([ec, es] if has_style else []) + [x, w, b]

    if upsample:
        out_shape = (N, 2 * H, W, 2 * Cout)   # lane-packed 2x upsample
    else:
        out_shape = (N, H, W, Cout)
    out_spec = pl.BlockSpec((None,) + out_shape[1:], lambda n: (n, 0, 0, 0))

    # NOTE: grid=(N,) with full-image blocks is appropriate at these demo sizes
    # (per-image AdaIN stats need the whole image); real VGG19-sized activations
    # would need H-tiling with a 1-row halo to stay inside the v7x VMEM budget.
    out = pl.pallas_call(
        _build_conv_kernel(has_style, upsample),
        out_shape=jax.ShapeDtypeStruct(out_shape, x.dtype),
        grid=(N,),
        in_specs=in_specs,
        out_specs=out_spec,
        compiler_params=pltpu.CompilerParams(
            dimension_semantics=("parallel",),   # batch shards across TCs (v7x)
            vmem_limit_bytes=32 * 1024 * 1024,
        ),
    )(*inputs)

    if upsample:
        out = out.reshape(N, 2 * H, 2 * W, Cout)   # undo lane packing (bitcast)
    return out


# -----------------------------------------------------------------------------
# Parameters (get_decode_block / get_vgg19_decoder equivalents)
# -----------------------------------------------------------------------------

def init_decoder_params(key, decoder_cfgs, dtype=jnp.float32):
    """Deterministic synthetic weights (stand-in for th.load(decoder_path)).

    Weights are pre-packed for the kernel: (3, 3*Cin, Cout) in bf16 (dx-major
    along K); biases kept fp32 as (1, 1, Cout)."""
    params = []
    for (cin, cout, nlayer, _scaled) in decoder_cfgs:
        block_params = []
        chans = [(cin, cout)] + [(cout, cout)] * nlayer
        for (ci, co) in chans:
            key, kw, kb = jax.random.split(key, 3)
            w = jax.random.normal(kw, (3, 3, ci, co), dtype) * 0.1
            b = jax.random.normal(kb, (co,), dtype) * 0.01
            w_packed = w.reshape(3, 3 * ci, co).astype(jnp.bfloat16)
            b_packed = b.reshape(1, 1, co).astype(jnp.float32)
            block_params.append((w_packed, b_packed))
        params.append(block_params)
    return params


# -----------------------------------------------------------------------------
# Style_Decoder.forward
# -----------------------------------------------------------------------------

def style_decoder_forward(x_nchw, eclist_nchw, eslist_nchw, decoder_params,
                          decoder_cfgs):
    assert len(eclist_nchw) == len(decoder_params) == len(decoder_cfgs)
    x = jnp.transpose(x_nchw, (0, 2, 3, 1))          # NCHW -> NHWC once
    dlist = []
    for i, (params, (_cin, _cout, nlayer, scaled)) in enumerate(
            zip(decoder_params, decoder_cfgs)):
        ec = jnp.transpose(eclist_nchw[i], (0, 2, 3, 1))
        es = jnp.transpose(eslist_nchw[i], (0, 2, 3, 1))
        # styleList[i](ec, es, x) + decoder[i] first conv (+ optional 2x
        # upsample), fused into one pallas_call.
        w0, b0 = params[0]
        x = conv3x3_reflect_relu(x, w0, b0, ec=ec, es=es, upsample=scaled)
        for li in range(nlayer):
            w, b = params[1 + li]
            x = conv3x3_reflect_relu(x, w, b)
        dlist.append(jnp.transpose(x, (0, 3, 1, 2)))  # NCHW only at the boundary
    return dlist[-1], dlist


# -----------------------------------------------------------------------------
# Demo
# -----------------------------------------------------------------------------

if __name__ == "__main__":
    # Small synthetic config: last two VGG19-decoder blocks
    #   (in_channels, out_channels, num_of_layer, if_scaled)
    decoder_cfgs = [
        (8, 8, 1, True),    # block 4 analogue: 8x8 -> 16x16, 8 -> 8 channels
        (8, 3, 0, False),   # block 5 analogue: 16x16, 8 -> 3 channels (to RGB)
    ]

    key = jax.random.PRNGKey(0)
    key, kp, kx, kc0, ks0, kc1, ks1 = jax.random.split(key, 7)

    decoder_params = init_decoder_params(kp, decoder_cfgs)

    N = 2
    x = jax.random.normal(kx, (N, 8, 8, 8), jnp.float32)          # NCHW
    eclist = [
        jax.random.normal(kc0, (N, 8, 8, 8), jnp.float32),
        jax.random.normal(kc1, (N, 8, 16, 16), jnp.float32),
    ]
    eslist = [
        jax.random.normal(ks0, (N, 8, 8, 8), jnp.float32),
        jax.random.normal(ks1, (N, 8, 16, 16), jnp.float32),
    ]

    fwd = jax.jit(lambda xx, ecl, esl, params: style_decoder_forward(
        xx, ecl, esl, params, decoder_cfgs))

    out, dlist = fwd(x, eclist, eslist, decoder_params)
    out = jax.block_until_ready(out)
    dlist = [jax.block_until_ready(d) for d in dlist]

    assert out.shape == (N, 3, 16, 16), out.shape
    assert dlist[0].shape == (N, 8, 16, 16), dlist[0].shape
    assert dlist[1].shape == (N, 3, 16, 16), dlist[1].shape
    assert bool(jnp.all(jnp.isfinite(out)))
    print("KERNEL_OK")
</pallas_src>

<mosaic_0001>
module attributes {stable_mosaic.version = 11 : i64} {
  func.func @kernel(%arg0: i32, %arg1: memref<1x8x8x8xf32, #tpu.memory_space<vmem>>, %arg2: memref<1x8x8x8xf32, #tpu.memory_space<vmem>>, %arg3: memref<1x8x8x8xf32, #tpu.memory_space<vmem>>, %arg4: memref<3x24x8xbf16, #tpu.memory_space<vmem>>, %arg5: memref<1x1x8xf32, #tpu.memory_space<vmem>>, %arg6: memref<1x16x8x16xf32, #tpu.memory_space<vmem>>) attributes {dimension_semantics = [#tpu.dimension_semantics<parallel>], iteration_bounds = array<i64: 2>, scalar_prefetch = 0 : i64, scratch_operands = 0 : i64, tpu.core_type = #tpu.core_type<tc>, window_params = [{transform_indices = @transform_0, window_bounds = array<i64: 1, 8, 8, 8>}, {transform_indices = @transform_1, window_bounds = array<i64: 1, 8, 8, 8>}, {transform_indices = @transform_2, window_bounds = array<i64: 1, 8, 8, 8>}, {pipeline_mode = #tpu.pipeline_mode<synchronous>, transform_indices = @transform_3, window_bounds = array<i64: 3, 24, 8>}, {pipeline_mode = #tpu.pipeline_mode<synchronous>, transform_indices = @transform_4, window_bounds = array<i64: 1, 1, 8>}, {transform_indices = @transform_5, window_bounds = array<i64: 1, 16, 8, 16>}]} {
    %c0 = arith.constant 0 : index
    %c0_0 = arith.constant 0 : index
    %c0_1 = arith.constant 0 : index
    %c0_2 = arith.constant 0 : index
    %0 = vector.load %arg3[%c0, %c0_0, %c0_1, %c0_2] : memref<1x8x8x8xf32, #tpu.memory_space<vmem>>, vector<1x8x8x8xf32>
    %1 = vector.shape_cast %0 : vector<1x8x8x8xf32> to vector<8x8x8xf32>
    %c0_3 = arith.constant 0 : index
    %c0_4 = arith.constant 0 : index
    %c0_5 = arith.constant 0 : index
    %c0_6 = arith.constant 0 : index
    %2 = vector.load %arg1[%c0_3, %c0_4, %c0_5, %c0_6] : memref<1x8x8x8xf32, #tpu.memory_space<vmem>>, vector<1x8x8x8xf32>
    %3 = vector.shape_cast %2 : vector<1x8x8x8xf32> to vector<8x8x8xf32>
    %c0_7 = arith.constant 0 : index
    %c0_8 = arith.constant 0 : index
    %c0_9 = arith.constant 0 : index
    %c0_10 = arith.constant 0 : index
    %4 = vector.load %arg2[%c0_7, %c0_8, %c0_9, %c0_10] : memref<1x8x8x8xf32, #tpu.memory_space<vmem>>, vector<1x8x8x8xf32>
    %5 = vector.shape_cast %4 : vector<1x8x8x8xf32> to vector<8x8x8xf32>
    %cst = arith.constant dense<0.000000e+00> : vector<8xf32>
    %6 = vector.multi_reduction <add>, %3, %cst [0, 1] : vector<8x8x8xf32> to vector<8xf32>
    %7 = vector.shape_cast %6 : vector<8xf32> to vector<1x1x8xf32>
    %cst_11 = arith.constant 1.562500e-02 : f32
    %8 = vector.broadcast %cst_11 : f32 to vector<1x1x8xf32>
    %9 = arith.mulf %7, %8 : vector<1x1x8xf32>
    %10 = arith.mulf %3, %3 : vector<8x8x8xf32>
    %cst_12 = arith.constant dense<0.000000e+00> : vector<8xf32>
    %11 = vector.multi_reduction <add>, %10, %cst_12 [0, 1] : vector<8x8x8xf32> to vector<8xf32>
    %12 = vector.shape_cast %11 : vector<8xf32> to vector<1x1x8xf32>
    %cst_13 = arith.constant 1.562500e-02 : f32
    %13 = vector.broadcast %cst_13 : f32 to vector<1x1x8xf32>
    %14 = arith.mulf %12, %13 : vector<1x1x8xf32>
    %15 = arith.mulf %9, %9 : vector<1x1x8xf32>
    %16 = arith.subf %14, %15 : vector<1x1x8xf32>
    %cst_14 = arith.constant 0.000000e+00 : f32
    %17 = vector.broadcast %cst_14 : f32 to vector<1x1x8xf32>
    %18 = arith.maximumf %16, %17 : vector<1x1x8xf32>
    %cst_15 = arith.constant dense<0.000000e+00> : vector<8xf32>
    %19 = vector.multi_reduction <add>, %5, %cst_15 [0, 1] : vector<8x8x8xf32> to vector<8xf32>
    %20 = vector.shape_cast %19 : vector<8xf32> to vector<1x1x8xf32>
    %cst_16 = arith.constant 1.562500e-02 : f32
    %21 = vector.broadcast %cst_16 : f32 to vector<1x1x8xf32>
    %22 = arith.mulf %20, %21 : vector<1x1x8xf32>
    %23 = arith.mulf %5, %5 : vector<8x8x8xf32>
    %cst_17 = arith.constant dense<0.000000e+00> : vector<8xf32>
    %24 = vector.multi_reduction <add>, %23, %cst_17 [0, 1] : vector<8x8x8xf32> to vector<8xf32>
    %25 = vector.shape_cast %24 : vector<8xf32> to vector<1x1x8xf32>
    %cst_18 = arith.constant 1.562500e-02 : f32
    %26 = vector.broadcast %cst_18 : f32 to vector<1x1x8xf32>
    %27 = arith.mulf %25, %26 : vector<1x1x8xf32>
    %28 = arith.mulf %22, %22 : vector<1x1x8xf32>
    %29 = arith.subf %27, %28 : vector<1x1x8xf32>
    %cst_19 = arith.constant 0.000000e+00 : f32
    %30 = vector.broadcast %cst_19 : f32 to vector<1x1x8xf32>
    %31 = arith.maximumf %29, %30 : vector<1x1x8xf32>
    %cst_20 = arith.constant 9.99999974E-6 : f32
    %32 = vector.broadcast %cst_20 : f32 to vector<1x1x8xf32>
    %33 = arith.addf %31, %32 : vector<1x1x8xf32>
    %34 = math.sqrt %33 : vector<1x1x8xf32>
    %cst_21 = arith.constant 9.99999974E-6 : f32
    %35 = vector.broadcast %cst_21 : f32 to vector<1x1x8xf32>
    %36 = arith.addf %18, %35 : vector<1x1x8xf32>
    %37 = math.rsqrt %36 : vector<1x1x8xf32>
    %38 = arith.mulf %34, %37 : vector<1x1x8xf32>
    %39 = vector.broadcast %9 : vector<1x1x8xf32> to vector<8x8x8xf32>
    %40 = arith.subf %3, %39 : vector<8x8x8xf32>
    %41 = vector.broadcast %38 : vector<1x1x8xf32> to vector<8x8x8xf32>
    %42 = arith.mulf %40, %41 : vector<8x8x8xf32>
    %43 = vector.broadcast %22 : vector<1x1x8xf32> to vector<8x8x8xf32>
    %44 = arith.addf %42, %43 : vector<8x8x8xf32>
    %45 = arith.addf %44, %1 : vector<8x8x8xf32>
    %46 = arith.truncf %45 : vector<8x8x8xf32> to vector<8x8x8xbf16>
    %47 = vector.extract_strided_slice %46 {offsets = [1, 0, 0], sizes = [1, 8, 8], strides = [1, 1, 1]} : vector<8x8x8xbf16> to vector<1x8x8xbf16>
    %48 = vector.extract_strided_slice %46 {offsets = [6, 0, 0], sizes = [1, 8, 8], strides = [1, 1, 1]} : vector<8x8x8xbf16> to vector<1x8x8xbf16>
    %49 = tpu.concatenate %47, %46, %48 in 0 : vector<1x8x8xbf16>, vector<8x8x8xbf16>, vector<1x8x8xbf16> -> vector<10x8x8xbf16>
    %50 = vector.extract_strided_slice %49 {offsets = [0, 1, 0], sizes = [10, 1, 8], strides = [1, 1, 1]} : vector<10x8x8xbf16> to vector<10x1x8xbf16>
    %51 = vector.extract_strided_slice %49 {offsets = [0, 0, 0], sizes = [10, 7, 8], strides = [1, 1, 1]} : vector<10x8x8xbf16> to vector<10x7x8xbf16>
    %52 = tpu.concatenate %50, %51 in 1 : vector<10x1x8xbf16>, vector<10x7x8xbf16> -> vector<10x8x8xbf16>
    %53 = vector.extract_strided_slice %49 {offsets = [0, 1, 0], sizes = [10, 7, 8], strides = [1, 1, 1]} : vector<10x8x8xbf16> to vector<10x7x8xbf16>
    %54 = vector.extract_strided_slice %49 {offsets = [0, 6, 0], sizes = [10, 1, 8], strides = [1, 1, 1]} : vector<10x8x8xbf16> to vector<10x1x8xbf16>
    %55 = tpu.concatenate %53, %54 in 1 : vector<10x7x8xbf16>, vector<10x1x8xbf16> -> vector<10x8x8xbf16>
    %56 = tpu.concatenate %52, %49, %55 in 2 : vector<10x8x8xbf16>, vector<10x8x8xbf16>, vector<10x8x8xbf16> -> vector<10x8x24xbf16>
    %57 = vector.shape_cast %56 : vector<10x8x24xbf16> to vector<80x24xbf16>
    %cst_22 = arith.constant 0.000000e+00 : f32
    %58 = vector.broadcast %cst_22 : f32 to vector<64x8xf32>
    %59 = vector.extract_strided_slice %57 {offsets = [0, 0], sizes = [64, 24], strides = [1, 1]} : vector<80x24xbf16> to vector<64x24xbf16>
    %c0_23 = arith.constant 0 : index
    %c0_24 = arith.constant 0 : index
    %c0_25 = arith.constant 0 : index
    %60 = vector.load %arg4[%c0_23, %c0_24, %c0_25] : memref<3x24x8xbf16, #tpu.memory_space<vmem>>, vector<1x24x8xbf16>
    %61 = vector.shape_cast %60 : vector<1x24x8xbf16> to vector<24x8xbf16>
    %cst_26 = arith.constant dense<0.000000e+00> : vector<64x8xf32>
    %62 = tpu.matmul %59, %61, %cst_26 {dimension_numbers = #tpu.dot_dimension_numbers<[1], [0], [0], [1], [0, 0, 1, 1], [], []>} : vector<64x24xbf16>, vector<24x8xbf16>, vector<64x8xf32> -> vector<64x8xf32>
    %63 = arith.addf %58, %62 : vector<64x8xf32>
    %64 = vector.extract_strided_slice %57 {offsets = [8, 0], sizes = [64, 24], strides = [1, 1]} : vector<80x24xbf16> to vector<64x24xbf16>
    %c1 = arith.constant 1 : index
    %c0_27 = arith.constant 0 : index
    %c0_28 = arith.constant 0 : index
    %65 = vector.load %arg4[%c1, %c0_27, %c0_28] : memref<3x24x8xbf16, #tpu.memory_space<vmem>>, vector<1x24x8xbf16>
    %66 = vector.shape_cast %65 : vector<1x24x8xbf16> to vector<24x8xbf16>
    %cst_29 = arith.constant dense<0.000000e+00> : vector<64x8xf32>
    %67 = tpu.matmul %64, %66, %cst_29 {dimension_numbers = #tpu.dot_dimension_numbers<[1], [0], [0], [1], [0, 0, 1, 1], [], []>} : vector<64x24xbf16>, vector<24x8xbf16>, vector<64x8xf32> -> vector<64x8xf32>
    %68 = arith.addf %63, %67 : vector<64x8xf32>
    %69 = vector.extract_strided_slice %57 {offsets = [16, 0], sizes = [64, 24], strides = [1, 1]} : vector<80x24xbf16> to vector<64x24xbf16>
    %c2 = arith.constant 2 : index
    %c0_30 = arith.constant 0 : index
    %c0_31 = arith.constant 0 : index
    %70 = vector.load %arg4[%c2, %c0_30, %c0_31] : memref<3x24x8xbf16, #tpu.memory_space<vmem>>, vector<1x24x8xbf16>
    %71 = vector.shape_cast %70 : vector<1x24x8xbf16> to vector<24x8xbf16>
    %cst_32 = arith.constant dense<0.000000e+00> : vector<64x8xf32>
    %72 = tpu.matmul %69, %71, %cst_32 {dimension_numbers = #tpu.dot_dimension_numbers<[1], [0], [0], [1], [0, 0, 1, 1], [], []>} : vector<64x24xbf16>, vector<24x8xbf16>, vector<64x8xf32> -> vector<64x8xf32>
    %73 = arith.addf %68, %72 : vector<64x8xf32>
    %74 = vector.shape_cast %73 : vector<64x8xf32> to vector<8x8x8xf32>
    %c0_33 = arith.constant 0 : index
    %c0_34 = arith.constant 0 : index
    %c0_35 = arith.constant 0 : index
    %75 = vector.load %arg5[%c0_33, %c0_34, %c0_35] : memref<1x1x8xf32, #tpu.memory_space<vmem>>, vector<1x1x8xf32>
    %76 = vector.broadcast %75 : vector<1x1x8xf32> to vector<8x8x8xf32>
    %77 = arith.addf %74, %76 : vector<8x8x8xf32>
    %cst_36 = arith.constant 0.000000e+00 : f32
    %78 = vector.broadcast %cst_36 : f32 to vector<8x8x8xf32>
    %79 = arith.maximumf %77, %78 : vector<8x8x8xf32>
    %80 = tpu.concatenate %79, %79 in 2 : vector<8x8x8xf32>, vector<8x8x8xf32> -> vector<8x8x16xf32>
    %81 = vector.shape_cast %80 : vector<8x8x16xf32> to vector<8x1x8x16xf32>
    %82 = vector.shape_cast %81 : vector<8x1x8x16xf32> to vector<8x1x8x16xf32>
    %83 = vector.broadcast %82 : vector<8x1x8x16xf32> to vector<8x2x8x16xf32>
    %84 = vector.shape_cast %83 : vector<8x2x8x16xf32> to vector<16x8x16xf32>
    %c0_37 = arith.constant 0 : index
    %c0_38 = arith.constant 0 : index
    %c0_39 = arith.constant 0 : index
    %c0_40 = arith.constant 0 : index
    %85 = vector.load %arg6[%c0_37, %c0_38, %c0_39, %c0_40] : memref<1x16x8x16xf32, #tpu.memory_space<vmem>>, vector<1x16x8x16xf32>
    %86 = vector.shape_cast %85 : vector<1x16x8x16xf32> to vector<16x8x16xf32>
    %87 = vector.shape_cast %84 : vector<16x8x16xf32> to vector<1x16x8x16xf32>
    tpu.vector_store %arg6[%c0_37, %c0_38, %c0_39, %c0_40], %87 {strides = array<i32>} : memref<1x16x8x16xf32, #tpu.memory_space<vmem>>, vector<1x16x8x16xf32>,
    return
  }
  func.func @transform_0(%arg0: i32) -> (i32, i32, i32, i32) {
    %c0_i32 = arith.constant 0 : i32
    %c0_i32_0 = arith.constant 0 : i32
    %c0_i32_1 = arith.constant 0 : i32
    %c0_i32_2 = arith.constant 0 : i32
    return %arg0, %c0_i32, %c0_i32_0, %c0_i32_1 : i32, i32, i32, i32
  }
  func.func @transform_1(%arg0: i32) -> (i32, i32, i32, i32) {
    %c0_i32 = arith.constant 0 : i32
    %c0_i32_0 = arith.constant 0 : i32
    %c0_i32_1 = arith.constant 0 : i32
    %c0_i32_2 = arith.constant 0 : i32
    return %arg0, %c0_i32, %c0_i32_0, %c0_i32_1 : i32, i32, i32, i32
  }
  func.func @transform_2(%arg0: i32) -> (i32, i32, i32, i32) {
    %c0_i32 = arith.constant 0 : i32
    %c0_i32_0 = arith.constant 0 : i32
    %c0_i32_1 = arith.constant 0 : i32
    %c0_i32_2 = arith.constant 0 : i32
    return %arg0, %c0_i32, %c0_i32_0, %c0_i32_1 : i32, i32, i32, i32
  }
  func.func @transform_3(%arg0: i32) -> (i32, i32, i32) {
    %c0_i32 = arith.constant 0 : i32
    %c0_i32_0 = arith.constant 0 : i32
    %c0_i32_1 = arith.constant 0 : i32
    %c0_i32_2 = arith.constant 0 : i32
    return %c0_i32, %c0_i32_0, %c0_i32_1 : i32, i32, i32
  }
  func.func @transform_4(%arg0: i32) -> (i32, i32, i32) {
    %c0_i32 = arith.constant 0 : i32
    %c0_i32_0 = arith.constant 0 : i32
    %c0_i32_1 = arith.constant 0 : i32
    %c0_i32_2 = arith.constant 0 : i32
    return %c0_i32, %c0_i32_0, %c0_i32_1 : i32, i32, i32
  }
  func.func @transform_5(%arg0: i32) -> (i32, i32, i32, i32) {
    %c0_i32 = arith.constant 0 : i32
    %c0_i32_0 = arith.constant 0 : i32
    %c0_i32_1 = arith.constant 0 : i32
    %c0_i32_2 = arith.constant 0 : i32
    return %arg0, %c0_i32, %c0_i32_0, %c0_i32_1 : i32, i32, i32, i32
  }
}

module attributes {stable_mosaic.version = 11 : i64} {
  func.func @kernel(%arg0: i32, %arg1: memref<1x16x16x8xf32, #tpu.memory_space<vmem>>, %arg2: memref<3x24x8xbf16, #tpu.memory_space<vmem>>, %arg3: memref<1x1x8xf32, #tpu.memory_space<vmem>>, %arg4: memref<1x16x16x8xf32, #tpu.memory_space<vmem>>) attributes {dimension_semantics = [#tpu.dimension_semantics<parallel>], iteration_bounds = array<i64: 2>, scalar_prefetch = 0 : i64, scratch_operands = 0 : i64, tpu.core_type = #tpu.core_type<tc>, window_params = [{transform_indices = @transform_0, window_bounds = array<i64: 1, 16, 16, 8>}, {pipeline_mode = #tpu.pipeline_mode<synchronous>, transform_indices = @transform_1, window_bounds = array<i64: 3, 24, 8>}, {pipeline_mode = #tpu.pipeline_mode<synchronous>, transform_indices = @transform_2, window_bounds = array<i64: 1, 1, 8>}, {transform_indices = @transform_3, window_bounds = array<i64: 1, 16, 16, 8>}]} {
    %c0 = arith.constant 0 : index
    %c0_0 = arith.constant 0 : index
    %c0_1 = arith.constant 0 : index
    %c0_2 = arith.constant 0 : index
    %0 = vector.load %arg1[%c0, %c0_0, %c0_1, %c0_2] : memref<1x16x16x8xf32, #tpu.memory_space<vmem>>, vector<1x16x16x8xf32>
    %1 = vector.shape_cast %0 : vector<1x16x16x8xf32> to vector<16x16x8xf32>
    %2 = arith.truncf %1 : vector<16x16x8xf32> to vector<16x16x8xbf16>
    %3 = vector.extract_strided_slice %2 {offsets = [1, 0, 0], sizes = [1, 16, 8], strides = [1, 1, 1]} : vector<16x16x8xbf16> to vector<1x16x8xbf16>
    %4 = vector.extract_strided_slice %2 {offsets = [14, 0, 0], sizes = [1, 16, 8], strides = [1, 1, 1]} : vector<16x16x8xbf16> to vector<1x16x8xbf16>
    %5 = tpu.concatenate %3, %2, %4 in 0 : vector<1x16x8xbf16>, vector<16x16x8xbf16>, vector<1x16x8xbf16> -> vector<18x16x8xbf16>
    %6 = vector.extract_strided_slice %5 {offsets = [0, 1, 0], sizes = [18, 1, 8], strides = [1, 1, 1]} : vector<18x16x8xbf16> to vector<18x1x8xbf16>
    %7 = vector.extract_strided_slice %5 {offsets = [0, 0, 0], sizes = [18, 15, 8], strides = [1, 1, 1]} : vector<18x16x8xbf16> to vector<18x15x8xbf16>
    %8 = tpu.concatenate %6, %7 in 1 : vector<18x1x8xbf16>, vector<18x15x8xbf16> -> vector<18x16x8xbf16>
    %9 = vector.extract_strided_slice %5 {offsets = [0, 1, 0], sizes = [18, 15, 8], strides = [1, 1, 1]} : vector<18x16x8xbf16> to vector<18x15x8xbf16>
    %10 = vector.extract_strided_slice %5 {offsets = [0, 14, 0], sizes = [18, 1, 8], strides = [1, 1, 1]} : vector<18x16x8xbf16> to vector<18x1x8xbf16>
    %11 = tpu.concatenate %9, %10 in 1 : vector<18x15x8xbf16>, vector<18x1x8xbf16> -> vector<18x16x8xbf16>
    %12 = tpu.concatenate %8, %5, %11 in 2 : vector<18x16x8xbf16>, vector<18x16x8xbf16>, vector<18x16x8xbf16> -> vector<18x16x24xbf16>
    %13 = vector.shape_cast %12 : vector<18x16x24xbf16> to vector<288x24xbf16>
    %cst = arith.constant 0.000000e+00 : f32
    %14 = vector.broadcast %cst : f32 to vector<256x8xf32>
    %15 = vector.extract_strided_slice %13 {offsets = [0, 0], sizes = [256, 24], strides = [1, 1]} : vector<288x24xbf16> to vector<256x24xbf16>
    %c0_3 = arith.constant 0 : index
    %c0_4 = arith.constant 0 : index
    %c0_5 = arith.constant 0 : index
    %16 = vector.load %arg2[%c0_3, %c0_4, %c0_5] : memref<3x24x8xbf16, #tpu.memory_space<vmem>>, vector<1x24x8xbf16>
    %17 = vector.shape_cast %16 : vector<1x24x8xbf16> to vector<24x8xbf16>
    %cst_6 = arith.constant dense<0.000000e+00> : vector<256x8xf32>
    %18 = tpu.matmul %15, %17, %cst_6 {dimension_numbers = #tpu.dot_dimension_numbers<[1], [0], [0], [1], [0, 0, 1, 1], [], []>} : vector<256x24xbf16>, vector<24x8xbf16>, vector<256x8xf32> -> vector<256x8xf32>
    %19 = arith.addf %14, %18 : vector<256x8xf32>
    %20 = vector.extract_strided_slice %13 {offsets = [16, 0], sizes = [256, 24], strides = [1, 1]} : vector<288x24xbf16> to vector<256x24xbf16>
    %c1 = arith.constant 1 : index
    %c0_7 = arith.constant 0 : index
    %c0_8 = arith.constant 0 : index
    %21 = vector.load %arg2[%c1, %c0_7, %c0_8] : memref<3x24x8xbf16, #tpu.memory_space<vmem>>, vector<1x24x8xbf16>
    %22 = vector.shape_cast %21 : vector<1x24x8xbf16> to vector<24x8xbf16>
    %cst_9 = arith.constant dense<0.000000e+00> : vector<256x8xf32>
    %23 = tpu.matmul %20, %22, %cst_9 {dimension_numbers = #tpu.dot_dimension_numbers<[1], [0], [0], [1], [0, 0, 1, 1], [], []>} : vector<256x24xbf16>, vector<24x8xbf16>, vector<256x8xf32> -> vector<256x8xf32>
    %24 = arith.addf %19, %23 : vector<256x8xf32>
    %25 = vector.extract_strided_slice %13 {offsets = [32, 0], sizes = [256, 24], strides = [1, 1]} : vector<288x24xbf16> to vector<256x24xbf16>
    %c2 = arith.constant 2 : index
    %c0_10 = arith.constant 0 : index
    %c0_11 = arith.constant 0 : index
    %26 = vector.load %arg2[%c2, %c0_10, %c0_11] : memref<3x24x8xbf16, #tpu.memory_space<vmem>>, vector<1x24x8xbf16>
    %27 = vector.shape_cast %26 : vector<1x24x8xbf16> to vector<24x8xbf16>
    %cst_12 = arith.constant dense<0.000000e+00> : vector<256x8xf32>
    %28 = tpu.matmul %25, %27, %cst_12 {dimension_numbers = #tpu.dot_dimension_numbers<[1], [0], [0], [1], [0, 0, 1, 1], [], []>} : vector<256x24xbf16>, vector<24x8xbf16>, vector<256x8xf32> -> vector<256x8xf32>
    %29 = arith.addf %24, %28 : vector<256x8xf32>
    %30 = vector.shape_cast %29 : vector<256x8xf32> to vector<16x16x8xf32>
    %c0_13 = arith.constant 0 : index
    %c0_14 = arith.constant 0 : index
    %c0_15 = arith.constant 0 : index
    %31 = vector.load %arg3[%c0_13, %c0_14, %c0_15] : memref<1x1x8xf32, #tpu.memory_space<vmem>>, vector<1x1x8xf32>
    %32 = vector.broadcast %31 : vector<1x1x8xf32> to vector<16x16x8xf32>
    %33 = arith.addf %30, %32 : vector<16x16x8xf32>
    %cst_16 = arith.constant 0.000000e+00 : f32
    %34 = vector.broadcast %cst_16 : f32 to vector<16x16x8xf32>
    %35 = arith.maximumf %33, %34 : vector<16x16x8xf32>
    %c0_17 = arith.constant 0 : index
    %c0_18 = arith.constant 0 : index
    %c0_19 = arith.constant 0 : index
    %c0_20 = arith.constant 0 : index
    %36 = vector.load %arg4[%c0_17, %c0_18, %c0_19, %c0_20] : memref<1x16x16x8xf32, #tpu.memory_space<vmem>>, vector<1x16x16x8xf32>
    %37 = vector.shape_cast %36 : vector<1x16x16x8xf32> to vector<16x16x8xf32>
    %38 = vector.shape_cast %35 : vector<16x16x8xf32> to vector<1x16x16x8xf32>
    tpu.vector_store %arg4[%c0_17, %c0_18, %c0_19, %c0_20], %38 {strides = array<i32>} : memref<1x16x16x8xf32, #tpu.memory_space<vmem>>, vector<1x16x16x8xf32>,
    return
  }
  func.func @transform_0(%arg0: i32) -> (i32, i32, i32, i32) {
    %c0_i32 = arith.constant 0 : i32
    %c0_i32_0 = arith.constant 0 : i32
    %c0_i32_1 = arith.constant 0 : i32
    %c0_i32_2 = arith.constant 0 : i32
    return %arg0, %c0_i32, %c0_i32_0, %c0_i32_1 : i32, i32, i32, i32
  }
  func.func @transform_1(%arg0: i32) -> (i32, i32, i32) {
    %c0_i32 = arith.constant 0 : i32
    %c0_i32_0 = arith.constant 0 : i32
    %c0_i32_1 = arith.constant 0 : i32
    %c0_i32_2 = arith.constant 0 : i32
    return %c0_i32, %c0_i32_0, %c0_i32_1 : i32, i32, i32
  }
  func.func @transform_2(%arg0: i32) -> (i32, i32, i32) {
    %c0_i32 = arith.constant 0 : i32
    %c0_i32_0 = arith.constant 0 : i32
    %c0_i32_1 = arith.constant 0 : i32
    %c0_i32_2 = arith.constant 0 : i32
    return %c0_i32, %c0_i32_0, %c0_i32_1 : i32, i32, i32
  }
  func.func @transform_3(%arg0: i32) -> (i32, i32, i32, i32) {
    %c0_i32 = arith.constant 0 : i32
    %c0_i32_0 = arith.constant 0 : i32
    %c0_i32_1 = arith.constant 0 : i32
    %c0_i32_2 = arith.constant 0 : i32
    return %arg0, %c0_i32, %c0_i32_0, %c0_i32_1 : i32, i32, i32, i32
  }
}

module attributes {stable_mosaic.version = 11 : i64} {
  func.func @kernel(%arg0: i32, %arg1: memref<1x16x16x8xf32, #tpu.memory_space<vmem>>, %arg2: memref<1x16x16x8xf32, #tpu.memory_space<vmem>>, %arg3: memref<1x16x16x8xf32, #tpu.memory_space<vmem>>, %arg4: memref<3x24x3xbf16, #tpu.memory_space<vmem>>, %arg5: memref<1x1x3xf32, #tpu.memory_space<vmem>>, %arg6: memref<1x16x16x3xf32, #tpu.memory_space<vmem>>) attributes {dimension_semantics = [#tpu.dimension_semantics<parallel>], iteration_bounds = array<i64: 2>, scalar_prefetch = 0 : i64, scratch_operands = 0 : i64, tpu.core_type = #tpu.core_type<tc>, window_params = [{transform_indices = @transform_0, window_bounds = array<i64: 1, 16, 16, 8>}, {transform_indices = @transform_1, window_bounds = array<i64: 1, 16, 16, 8>}, {transform_indices = @transform_2, window_bounds = array<i64: 1, 16, 16, 8>}, {pipeline_mode = #tpu.pipeline_mode<synchronous>, transform_indices = @transform_3, window_bounds = array<i64: 3, 24, 3>}, {pipeline_mode = #tpu.pipeline_mode<synchronous>, transform_indices = @transform_4, window_bounds = array<i64: 1, 1, 3>}, {transform_indices = @transform_5, window_bounds = array<i64: 1, 16, 16, 3>}]} {
    %c0 = arith.constant 0 : index
    %c0_0 = arith.constant 0 : index
    %c0_1 = arith.constant 0 : index
    %c0_2 = arith.constant 0 : index
    %0 = vector.load %arg3[%c0, %c0_0, %c0_1, %c0_2] : memref<1x16x16x8xf32, #tpu.memory_space<vmem>>, vector<1x16x16x8xf32>
    %1 = vector.shape_cast %0 : vector<1x16x16x8xf32> to vector<16x16x8xf32>
    %c0_3 = arith.constant 0 : index
    %c0_4 = arith.constant 0 : index
    %c0_5 = arith.constant 0 : index
    %c0_6 = arith.constant 0 : index
    %2 = vector.load %arg1[%c0_3, %c0_4, %c0_5, %c0_6] : memref<1x16x16x8xf32, #tpu.memory_space<vmem>>, vector<1x16x16x8xf32>
    %3 = vector.shape_cast %2 : vector<1x16x16x8xf32> to vector<16x16x8xf32>
    %c0_7 = arith.constant 0 : index
    %c0_8 = arith.constant 0 : index
    %c0_9 = arith.constant 0 : index
    %c0_10 = arith.constant 0 : index
    %4 = vector.load %arg2[%c0_7, %c0_8, %c0_9, %c0_10] : memref<1x16x16x8xf32, #tpu.memory_space<vmem>>, vector<1x16x16x8xf32>
    %5 = vector.shape_cast %4 : vector<1x16x16x8xf32> to vector<16x16x8xf32>
    %cst = arith.constant dense<0.000000e+00> : vector<8xf32>
    %6 = vector.multi_reduction <add>, %3, %cst [0, 1] : vector<16x16x8xf32> to vector<8xf32>
    %7 = vector.shape_cast %6 : vector<8xf32> to vector<1x1x8xf32>
    %cst_11 = arith.constant 3.906250e-03 : f32
    %8 = vector.broadcast %cst_11 : f32 to vector<1x1x8xf32>
    %9 = arith.mulf %7, %8 : vector<1x1x8xf32>
    %10 = arith.mulf %3, %3 : vector<16x16x8xf32>
    %cst_12 = arith.constant dense<0.000000e+00> : vector<8xf32>
    %11 = vector.multi_reduction <add>, %10, %cst_12 [0, 1] : vector<16x16x8xf32> to vector<8xf32>
    %12 = vector.shape_cast %11 : vector<8xf32> to vector<1x1x8xf32>
    %cst_13 = arith.constant 3.906250e-03 : f32
    %13 = vector.broadcast %cst_13 : f32 to vector<1x1x8xf32>
    %14 = arith.mulf %12, %13 : vector<1x1x8xf32>
    %15 = arith.mulf %9, %9 : vector<1x1x8xf32>
    %16 = arith.subf %14, %15 : vector<1x1x8xf32>
    %cst_14 = arith.constant 0.000000e+00 : f32
    %17 = vector.broadcast %cst_14 : f32 to vector<1x1x8xf32>
    %18 = arith.maximumf %16, %17 : vector<1x1x8xf32>
    %cst_15 = arith.constant dense<0.000000e+00> : vector<8xf32>
    %19 = vector.multi_reduction <add>, %5, %cst_15 [0, 1] : vector<16x16x8xf32> to vector<8xf32>
    %20 = vector.shape_cast %19 : vector<8xf32> to vector<1x1x8xf32>
    %cst_16 = arith.constant 3.906250e-03 : f32
    %21 = vector.broadcast %cst_16 : f32 to vector<1x1x8xf32>
    %22 = arith.mulf %20, %21 : vector<1x1x8xf32>
    %23 = arith.mulf %5, %5 : vector<16x16x8xf32>
    %cst_17 = arith.constant dense<0.000000e+00> : vector<8xf32>
    %24 = vector.multi_reduction <add>, %23, %cst_17 [0, 1] : vector<16x16x8xf32> to vector<8xf32>
    %25 = vector.shape_cast %24 : vector<8xf32> to vector<1x1x8xf32>
    %cst_18 = arith.constant 3.906250e-03 : f32
    %26 = vector.broadcast %cst_18 : f32 to vector<1x1x8xf32>
    %27 = arith.mulf %25, %26 : vector<1x1x8xf32>
    %28 = arith.mulf %22, %22 : vector<1x1x8xf32>
    %29 = arith.subf %27, %28 : vector<1x1x8xf32>
    %cst_19 = arith.constant 0.000000e+00 : f32
    %30 = vector.broadcast %cst_19 : f32 to vector<1x1x8xf32>
    %31 = arith.maximumf %29, %30 : vector<1x1x8xf32>
    %cst_20 = arith.constant 9.99999974E-6 : f32
    %32 = vector.broadcast %cst_20 : f32 to vector<1x1x8xf32>
    %33 = arith.addf %31, %32 : vector<1x1x8xf32>
    %34 = math.sqrt %33 : vector<1x1x8xf32>
    %cst_21 = arith.constant 9.99999974E-6 : f32
    %35 = vector.broadcast %cst_21 : f32 to vector<1x1x8xf32>
    %36 = arith.addf %18, %35 : vector<1x1x8xf32>
    %37 = math.rsqrt %36 : vector<1x1x8xf32>
    %38 = arith.mulf %34, %37 : vector<1x1x8xf32>
    %39 = vector.broadcast %9 : vector<1x1x8xf32> to vector<16x16x8xf32>
    %40 = arith.subf %3, %39 : vector<16x16x8xf32>
    %41 = vector.broadcast %38 : vector<1x1x8xf32> to vector<16x16x8xf32>
    %42 = arith.mulf %40, %41 : vector<16x16x8xf32>
    %43 = vector.broadcast %22 : vector<1x1x8xf32> to vector<16x16x8xf32>
    %44 = arith.addf %42, %43 : vector<16x16x8xf32>
    %45 = arith.addf %44, %1 : vector<16x16x8xf32>
    %46 = arith.truncf %45 : vector<16x16x8xf32> to vector<16x16x8xbf16>
    %47 = vector.extract_strided_slice %46 {offsets = [1, 0, 0], sizes = [1, 16, 8], strides = [1, 1, 1]} : vector<16x16x8xbf16> to vector<1x16x8xbf16>
    %48 = vector.extract_strided_slice %46 {offsets = [14, 0, 0], sizes = [1, 16, 8], strides = [1, 1, 1]} : vector<16x16x8xbf16> to vector<1x16x8xbf16>
    %49 = tpu.concatenate %47, %46, %48 in 0 : vector<1x16x8xbf16>, vector<16x16x8xbf16>, vector<1x16x8xbf16> -> vector<18x16x8xbf16>
    %50 = vector.extract_strided_slice %49 {offsets = [0, 1, 0], sizes = [18, 1, 8], strides = [1, 1, 1]} : vector<18x16x8xbf16> to vector<18x1x8xbf16>
    %51 = vector.extract_strided_slice %49 {offsets = [0, 0, 0], sizes = [18, 15, 8], strides = [1, 1, 1]} : vector<18x16x8xbf16> to vector<18x15x8xbf16>
    %52 = tpu.concatenate %50, %51 in 1 : vector<18x1x8xbf16>, vector<18x15x8xbf16> -> vector<18x16x8xbf16>
    %53 = vector.extract_strided_slice %49 {offsets = [0, 1, 0], sizes = [18, 15, 8], strides = [1, 1, 1]} : vector<18x16x8xbf16> to vector<18x15x8xbf16>
    %54 = vector.extract_strided_slice %49 {offsets = [0, 14, 0], sizes = [18, 1, 8], strides = [1, 1, 1]} : vector<18x16x8xbf16> to vector<18x1x8xbf16>
    %55 = tpu.concatenate %53, %54 in 1 : vector<18x15x8xbf16>, vector<18x1x8xbf16> -> vector<18x16x8xbf16>
    %56 = tpu.concatenate %52, %49, %55 in 2 : vector<18x16x8xbf16>, vector<18x16x8xbf16>, vector<18x16x8xbf16> -> vector<18x16x24xbf16>
    %57 = vector.shape_cast %56 : vector<18x16x24xbf16> to vector<288x24xbf16>
    %cst_22 = arith.constant 0.000000e+00 : f32
    %58 = vector.broadcast %cst_22 : f32 to vector<256x3xf32>
    %59 = vector.extract_strided_slice %57 {offsets = [0, 0], sizes = [256, 24], strides = [1, 1]} : vector<288x24xbf16> to vector<256x24xbf16>
    %c0_23 = arith.constant 0 : index
    %c0_24 = arith.constant 0 : index
    %c0_25 = arith.constant 0 : index
    %60 = vector.load %arg4[%c0_23, %c0_24, %c0_25] : memref<3x24x3xbf16, #tpu.memory_space<vmem>>, vector<1x24x3xbf16>
    %61 = vector.shape_cast %60 : vector<1x24x3xbf16> to vector<24x3xbf16>
    %cst_26 = arith.constant dense<0.000000e+00> : vector<256x3xf32>
    %62 = tpu.matmul %59, %61, %cst_26 {dimension_numbers = #tpu.dot_dimension_numbers<[1], [0], [0], [1], [0, 0, 1, 1], [], []>} : vector<256x24xbf16>, vector<24x3xbf16>, vector<256x3xf32> -> vector<256x3xf32>
    %63 = arith.addf %58, %62 : vector<256x3xf32>
    %64 = vector.extract_strided_slice %57 {offsets = [16, 0], sizes = [256, 24], strides = [1, 1]} : vector<288x24xbf16> to vector<256x24xbf16>
    %c1 = arith.constant 1 : index
    %c0_27 = arith.constant 0 : index
    %c0_28 = arith.constant 0 : index
    %65 = vector.load %arg4[%c1, %c0_27, %c0_28] : memref<3x24x3xbf16, #tpu.memory_space<vmem>>, vector<1x24x3xbf16>
    %66 = vector.shape_cast %65 : vector<1x24x3xbf16> to vector<24x3xbf16>
    %cst_29 = arith.constant dense<0.000000e+00> : vector<256x3xf32>
    %67 = tpu.matmul %64, %66, %cst_29 {dimension_numbers = #tpu.dot_dimension_numbers<[1], [0], [0], [1], [0, 0, 1, 1], [], []>} : vector<256x24xbf16>, vector<24x3xbf16>, vector<256x3xf32> -> vector<256x3xf32>
    %68 = arith.addf %63, %67 : vector<256x3xf32>
    %69 = vector.extract_strided_slice %57 {offsets = [32, 0], sizes = [256, 24], strides = [1, 1]} : vector<288x24xbf16> to vector<256x24xbf16>
    %c2 = arith.constant 2 : index
    %c0_30 = arith.constant 0 : index
    %c0_31 = arith.constant 0 : index
    %70 = vector.load %arg4[%c2, %c0_30, %c0_31] : memref<3x24x3xbf16, #tpu.memory_space<vmem>>, vector<1x24x3xbf16>
    %71 = vector.shape_cast %70 : vector<1x24x3xbf16> to vector<24x3xbf16>
    %cst_32 = arith.constant dense<0.000000e+00> : vector<256x3xf32>
    %72 = tpu.matmul %69, %71, %cst_32 {dimension_numbers = #tpu.dot_dimension_numbers<[1], [0], [0], [1], [0, 0, 1, 1], [], []>} : vector<256x24xbf16>, vector<24x3xbf16>, vector<256x3xf32> -> vector<256x3xf32>
    %73 = arith.addf %68, %72 : vector<256x3xf32>
    %74 = vector.shape_cast %73 : vector<256x3xf32> to vector<16x16x3xf32>
    %c0_33 = arith.constant 0 : index
    %c0_34 = arith.constant 0 : index
    %c0_35 = arith.constant 0 : index
    %75 = vector.load %arg5[%c0_33, %c0_34, %c0_35] : memref<1x1x3xf32, #tpu.memory_space<vmem>>, vector<1x1x3xf32>
    %76 = vector.broadcast %75 : vector<1x1x3xf32> to vector<16x16x3xf32>
    %77 = arith.addf %74, %76 : vector<16x16x3xf32>
    %cst_36 = arith.constant 0.000000e+00 : f32
    %78 = vector.broadcast %cst_36 : f32 to vector<16x16x3xf32>
    %79 = arith.maximumf %77, %78 : vector<16x16x3xf32>
    %c0_37 = arith.constant 0 : index
    %c0_38 = arith.constant 0 : index
    %c0_39 = arith.constant 0 : index
    %c0_40 = arith.constant 0 : index
    %80 = vector.load %arg6[%c0_37, %c0_38, %c0_39, %c0_40] : memref<1x16x16x3xf32, #tpu.memory_space<vmem>>, vector<1x16x16x3xf32>
    %81 = vector.shape_cast %80 : vector<1x16x16x3xf32> to vector<16x16x3xf32>
    %82 = vector.shape_cast %79 : vector<16x16x3xf32> to vector<1x16x16x3xf32>
    tpu.vector_store %arg6[%c0_37, %c0_38, %c0_39, %c0_40], %82 {strides = array<i32>} : memref<1x16x16x3xf32, #tpu.memory_space<vmem>>, vector<1x16x16x3xf32>,
    return
  }
  func.func @transform_0(%arg0: i32) -> (i32, i32, i32, i32) {
    %c0_i32 = arith.constant 0 : i32
    %c0_i32_0 = arith.constant 0 : i32
    %c0_i32_1 = arith.constant 0 : i32
    %c0_i32_2 = arith.constant 0 : i32
    return %arg0, %c0_i32, %c0_i32_0, %c0_i32_1 : i32, i32, i32, i32
  }
  func.func @transform_1(%arg0: i32) -> (i32, i32, i32, i32) {
    %c0_i32 = arith.constant 0 : i32
    %c0_i32_0 = arith.constant 0 : i32
    %c0_i32_1 = arith.constant 0 : i32
    %c0_i32_2 = arith.constant 0 : i32
    return %arg0, %c0_i32, %c0_i32_0, %c0_i32_1 : i32, i32, i32, i32
  }
  func.func @transform_2(%arg0: i32) -> (i32, i32, i32, i32) {
    %c0_i32 = arith.constant 0 : i32
    %c0_i32_0 = arith.constant 0 : i32
    %c0_i32_1 = arith.constant 0 : i32
    %c0_i32_2 = arith.constant 0 : i32
    return %arg0, %c0_i32, %c0_i32_0, %c0_i32_1 : i32, i32, i32, i32
  }
  func.func @transform_3(%arg0: i32) -> (i32, i32, i32) {
    %c0_i32 = arith.constant 0 : i32
    %c0_i32_0 = arith.constant 0 : i32
    %c0_i32_1 = arith.constant 0 : i32
    %c0_i32_2 = arith.constant 0 : i32
    return %c0_i32, %c0_i32_0, %c0_i32_1 : i32, i32, i32
  }
  func.func @transform_4(%arg0: i32) -> (i32, i32, i32) {
    %c0_i32 = arith.constant 0 : i32
    %c0_i32_0 = arith.constant 0 : i32
    %c0_i32_1 = arith.constant 0 : i32
    %c0_i32_2 = arith.constant 0 : i32
    return %c0_i32, %c0_i32_0, %c0_i32_1 : i32, i32, i32
  }
  func.func @transform_5(%arg0: i32) -> (i32, i32, i32, i32) {
    %c0_i32 = arith.constant 0 : i32
    %c0_i32_0 = arith.constant 0 : i32
    %c0_i32_1 = arith.constant 0 : i32
    %c0_i32_2 = arith.constant 0 : i32
    return %arg0, %c0_i32, %c0_i32_0, %c0_i32_1 : i32, i32, i32, i32
  }
}

</mosaic_0001>

<llo_original>
// kernel: _lambda_.3
$region0: #{_lambda_.3}
  #allocation0 [shape = 'u32[]', space=smem, size = 0x4, offset = 0x4, fixed_abs, tag = 'smem constant byte address 0x4 - core index']
  #allocation1 [shape = 'u32[144,128]{1,0:T(1,128)}', space=vmem, size = 0x12000, scoped, tag = 'internal scratch']
  %s0 = inlined_call_operand.vmem [shape: f32[2,8,8,8], index: 0, kind: input, shape index: {}]
  %s1 = inlined_call_operand.vmem [shape: f32[2,8,8,8], index: 1, kind: input, shape index: {}]
  %s2 = inlined_call_operand.vmem [shape: f32[2,8,8,8], index: 2, kind: input, shape index: {}]
  %s3 = inlined_call_operand.vmem [shape: bf16[3,24,8], index: 3, kind: input, shape index: {}]
  %s4 = inlined_call_operand.vmem [shape: f32[1,1,8], index: 4, kind: input, shape index: {}]
  %s5 = inlined_call_operand.vmem [shape: f32[2,16,8,16], index: 5, kind: output, shape index: {}]
  %s6 = sld [smem:[#allocation0]]
  $region53: #{_lambda_.3} parent=0
    _
  %s8 = ssub.s32 1, %s6
  %s9 = scalar_select 0, %s8, %s6
  loop: start=0, step=1, limit=4
  $region2: #{_lambda_.3} parent=0 // loop_pre_header
    _
  $region3: #{_lambda_.3} parent=0 // loop_header
    %s11 = sphi 0, %s15
    %p12 = scmp.ge.s32.totalorder %s11, 4
    %s21 = sphi 0, %s23
    %s24 = sphi 0, %s21
    %s25 = sphi 0, %s24
    %s41 = sphi 0, %s25
    %s47 = sphi 0, %s49
    %s50 = sphi 0, %s47
    %s51 = sphi 0, %s50
    %s67 = sphi 0, %s51
    %s73 = sphi 0, %s75
    %s76 = sphi 0, %s73
    %s77 = sphi 0, %s76
    %s93 = sphi 0, %s77
    %s97 = sphi 0, %s97
    %s99 = sphi 0, %s97
    %s100 = sphi 0, %s99
    %s114 = sphi 0, %s100
    %s118 = sphi 0, %s118
    %s120 = sphi 0, %s118
    %s121 = sphi 0, %s120
    %s135 = sphi 0, %s121
    %s141 = sphi 0, %s143
    %s144 = sphi 0, %s141
    %s145 = sphi 0, %s144
    %s161 = sphi 0, %s145
  $region4: #{_lambda_.3} parent=0 // loop_header_branch
    %14 = sbr.rel (%p12) target = $region8
  $region5: #{_lambda_.3} parent=0 // loop_body
    %s16 = ssub.s32 %s11, 1
    %s17 = ssub.s32 %s11, 2
    %s18 = sadd.s32 %s11, 1
    %s19 = ssub.s32 %s11, %s18
    %p20 = scmp.eq.s32.totalorder %s19, 0
    %s22 = sadd.s32 %s21, 1
    %s23 = scalar_select %p20, %s21, %s22
    %p26 = pneg %p20
    %p27 = scmp.eq.s32.totalorder %s11, 1
    %p28 = por %p26, %p27
    %p29 = scmp.ne.s32.totalorder %s21, %s24
    %p30 = scmp.eq.s32.totalorder %s11, 0
    %p31 = por %p29, %p30
    %p32 = scmp.ne.s32.totalorder %s21, %s24
    %p33 = scmp.eq.s32.totalorder %s16, 1
    %p34 = por %p32, %p33
    %p35 = scmp.ne.s32.totalorder %s24, %s25
    %p36 = scmp.eq.s32.totalorder %s16, 0
    %p37 = por %p35, %p36
    %p38 = scmp.ne.s32.totalorder %s24, %s25
    %p39 = scmp.eq.s32.totalorder %s17, 1
    %p40 = por %p38, %p39
    %p42 = scmp.ne.s32.totalorder %s25, %s41
    %p43 = scmp.eq.s32.totalorder %s17, 0
    %p44 = por %p42, %p43
    %s45 = ssub.s32 %s11, %s18
    %p46 = scmp.eq.s32.totalorder %s45, 0
    %s48 = sadd.s32 %s47, 1
    %s49 = scalar_select %p46, %s47, %s48
    %p52 = pneg %p46
    %p53 = scmp.eq.s32.totalorder %s11, 1
    %p54 = por %p52, %p53
    %p55 = scmp.ne.s32.totalorder %s47, %s50
    %p56 = scmp.eq.s32.totalorder %s11, 0
    %p57 = por %p55, %p56
    %p58 = scmp.ne.s32.totalorder %s47, %s50
    %p59 = scmp.eq.s32.totalorder %s16, 1
    %p60 = por %p58, %p59
    %p61 = scmp.ne.s32.totalorder %s50, %s51
    %p62 = scmp.eq.s32.totalorder %s16, 0
    %p63 = por %p61, %p62
    %p64 = scmp.ne.s32.totalorder %s50, %s51
    %p65 = scmp.eq.s32.totalorder %s17, 1
    %p66 = por %p64, %p65
    %p68 = scmp.ne.s32.totalorder %s51, %s67
    %p69 = scmp.eq.s32.totalorder %s17, 0
    %p70 = por %p68, %p69
    %s71 = ssub.s32 %s11, %s18
    %p72 = scmp.eq.s32.totalorder %s71, 0
    %s74 = sadd.s32 %s73, 1
    %s75 = scalar_select %p72, %s73, %s74
    %p78 = pneg %p72
    %p79 = scmp.eq.s32.totalorder %s11, 1
    %p80 = por %p78, %p79
    %p81 = scmp.ne.s32.totalorder %s73, %s76
    %p82 = scmp.eq.s32.totalorder %s11, 0
    %p83 = por %p81, %p82
    %p84 = scmp.ne.s32.totalorder %s73, %s76
    %p85 = scmp.eq.s32.totalorder %s16, 1
    %p86 = por %p84, %p85
    %p87 = scmp.ne.s32.totalorder %s76, %s77
    %p88 = scmp.eq.s32.totalorder %s16, 0
    %p89 = por %p87, %p88
    %p90 = scmp.ne.s32.totalorder %s76, %s77
    %p91 = scmp.eq.s32.totalorder %s17, 1
    %p92 = por %p90, %p91
    %p94 = scmp.ne.s32.totalorder %s77, %s93
    %p95 = scmp.eq.s32.totalorder %s17, 0
    %p96 = por %p94, %p95
    %s98 = sadd.s32 %s97, 1
    %p101 = scmp.eq.s32.totalorder %s11, 1
    %p102 = scmp.ne.s32.totalorder %s97, %s99
    %p103 = scmp.eq.s32.totalorder %s11, 0
    %p104 = por %p102, %p103
    %p105 = scmp.ne.s32.totalorder %s97, %s99
    %p106 = scmp.eq.s32.totalorder %s16, 1
    %p107 = por %p105, %p106
    %p108 = scmp.ne.s32.totalorder %s99, %s100
    %p109 = scmp.eq.s32.totalorder %s16, 0
    %p110 = por %p108, %p109
    %p111 = scmp.ne.s32.totalorder %s99, %s100
    %p112 = scmp.eq.s32.totalorder %s17, 1
    %p113 = por %p111, %p112
    %p115 = scmp.ne.s32.totalorder %s100, %s114
    %p116 = scmp.eq.s32.totalorder %s17, 0
    %p117 = por %p115, %p116
    %s119 = sadd.s32 %s118, 1
    %p122 = scmp.eq.s32.totalorder %s11, 1
    %p123 = scmp.ne.s32.totalorder %s118, %s120
    %p124 = scmp.eq.s32.totalorder %s11, 0
    %p125 = por %p123, %p124
    %p126 = scmp.ne.s32.totalorder %s118, %s120
    %p127 = scmp.eq.s32.totalorder %s16, 1
    %p128 = por %p126, %p127
    %p129 = scmp.ne.s32.totalorder %s120, %s121
    %p130 = scmp.eq.s32.totalorder %s16, 0
    %p131 = por %p129, %p130
    %p132 = scmp.ne.s32.totalorder %s120, %s121
    %p133 = scmp.eq.s32.totalorder %s17, 1
    %p134 = por %p132, %p133
    %p136 = scmp.ne.s32.totalorder %s121, %s135
    %p137 = scmp.eq.s32.totalorder %s17, 0
    %p138 = por %p136, %p137
    %s139 = ssub.s32 %s11, %s18
    %p140 = scmp.eq.s32.totalorder %s139, 0
    %s142 = sadd.s32 %s141, 1
    %s143 = scalar_select %p140, %s141, %s142
    %p146 = pneg %p140
    %p147 = scmp.eq.s32.totalorder %s11, 1
    %p148 = por %p146, %p147
    %p149 = scmp.ne.s32.totalorder %s141, %s144
    %p150 = scmp.eq.s32.totalorder %s11, 0
    %p151 = por %p149, %p150
    %p152 = scmp.ne.s32.totalorder %s141, %s144
    %p153 = scmp.eq.s32.totalorder %s16, 1
    %p154 = por %p152, %p153
    %p155 = scmp.ne.s32.totalorder %s144, %s145
    %p156 = scmp.eq.s32.totalorder %s16, 0
    %p157 = por %p155, %p156
    %p158 = scmp.ne.s32.totalorder %s144, %s145
    %p159 = scmp.eq.s32.totalorder %s17, 1
    %p160 = por %p158, %p159
    %p162 = scmp.ne.s32.totalorder %s145, %s161
    %p163 = scmp.eq.s32.totalorder %s17, 0
    %p164 = por %p162, %p163
    %p165 = scmp.le.s32.totalorder 1, %s11
    %p166 = scmp.lt.s32.totalorder %s11, 3
    %p167 = pnand %p165, %p166
    %p168 = pneg %p167
    // Predicated region
    $region9: #{_lambda_.3} parent=5 // pred_check
      _
    $region10: #{_lambda_.3} parent=5 // pred_check_branch
      %170 = sbr.rel (%p167) target = $region12
    $region11: #{_lambda_.3} parent=5 // pred_region
      %s171 = ssub.s32 %s11, 1
      // Predicated region
      $region13: #{_lambda_.3} parent=11 // pred_check
        %p172 = pneg %p110
      $region14: #{_lambda_.3} parent=11 // pred_check_branch
        %174 = sbr.rel (%p172) target = $region16
      $region15: #{_lambda_.3} parent=11 // pred_region
        _
      $region16: #{_lambda_.3} parent=11 // pred_fallthru
        _
      // Predicated region
      $region17: #{_lambda_.3} parent=11 // pred_check
        %p175 = pneg %p131
      $region18: #{_lambda_.3} parent=11 // pred_check_branch
        %177 = sbr.rel (%p175) target = $region20
      $region19: #{_lambda_.3} parent=11 // pred_region
        _
      $region20: #{_lambda_.3} parent=11 // pred_fallthru
        _
    $region12: #{_lambda_.3} parent=5 // pred_fallthru
      _
    %p178 = scmp.lt.s32.totalorder %s11, 2
    // Predicated region
    $region21: #{_lambda_.3} parent=5 // pred_check
      %p179 = pneg %p178
    $region22: #{_lambda_.3} parent=5 // pred_check_branch
      %181 = sbr.rel (%p179) target = $region24
    $region23: #{_lambda_.3} parent=5 // pred_region
      // Predicated region
      $region25: #{_lambda_.3} parent=23 // pred_check
        %p182 = pneg %p31
      $region26: #{_lambda_.3} parent=23 // pred_check_branch
        %184 = sbr.rel (%p182) target = $region28
      $region27: #{_lambda_.3} parent=23 // pred_region
        %p185 = scmp.lt.s32.totalorder %s11, 1
        %s186 = scalar_select %p185, %s11, 1
        %s187 = smul.addr %s186, 8
        %s188 = smul.addr %s187, 8
        %s189 = scalar_lea.vmem %s0, %s188
      $region28: #{_lambda_.3} parent=23 // pred_fallthru
        _
      // Predicated region
      $region29: #{_lambda_.3} parent=23 // pred_check
        %p190 = pneg %p57
      $region30: #{_lambda_.3} parent=23 // pred_check_branch
        %192 = sbr.rel (%p190) target = $region32
      $region31: #{_lambda_.3} parent=23 // pred_region
        %p193 = scmp.lt.s32.totalorder %s11, 1
        %s194 = scalar_select %p193, %s11, 1
        %s195 = smul.addr %s194, 8
        %s196 = smul.addr %s195, 8
        %s197 = scalar_lea.vmem %s1, %s196
      $region32: #{_lambda_.3} parent=23 // pred_fallthru
        _
      // Predicated region
      $region33: #{_lambda_.3} parent=23 // pred_check
        %p198 = pneg %p83
      $region34: #{_lambda_.3} parent=23 // pred_check_branch
        %200 = sbr.rel (%p198) target = $region36
      $region35: #{_lambda_.3} parent=23 // pred_region
        %p201 = scmp.lt.s32.totalorder %s11, 1
        %s202 = scalar_select %p201, %s11, 1
        %s203 = smul.addr %s202, 8
        %s204 = smul.addr %s203, 8
        %s205 = scalar_lea.vmem %s2, %s204
      $region36: #{_lambda_.3} parent=23 // pred_fallthru
        _
    $region24: #{_lambda_.3} parent=5 // pred_fallthru
      _
    %p206 = scmp.le.s32.totalorder 1, %s11
    %p207 = scmp.lt.s32.totalorder %s11, 3
    %p208 = pnand %p206, %p207
    %p209 = pneg %p208
    // Predicated region
    $region37: #{_lambda_.3} parent=5 // pred_check
      _
    $region38: #{_lambda_.3} parent=5 // pred_check_branch
      %211 = sbr.rel (%p208) target = $region40
    $region39: #{_lambda_.3} parent=5 // pred_region
      %s212 = ssub.s32 %s11, 1
      %p213 = scmp.lt.s32.totalorder %s16, 1
      %s214 = scalar_select %p213, %s16, 1
      %s215 = smul.addr %s214, 8
      %s216 = smul.addr %s215, 8
      %s217 = scalar_lea.vmem %s0, %s216
      %p218 = pneg %p37
      %p219 = pneg %p34
      %p220 = scmp.lt.s32.totalorder %s16, 1
      %s221 = scalar_select %p220, %s16, 1
      %s222 = smul.addr %s221, 8
      %s223 = smul.addr %s222, 8
      %s224 = scalar_lea.vmem %s1, %s223
      %p225 = pneg %p63
      %p226 = pneg %p60
      %p227 = scmp.lt.s32.totalorder %s16, 1
      %s228 = scalar_select %p227, %s16, 1
      %s229 = smul.addr %s228, 8
      %s230 = smul.addr %s229, 8
      %s231 = scalar_lea.vmem %s2, %s230
      %p232 = pneg %p89
      %p233 = pneg %p86
      %p234 = pneg %p110
      %p235 = pneg %p107
      %p236 = pneg %p131
      %p237 = pneg %p128
      %p238 = pneg %p157
      %p239 = pneg %p154
      %p240 = scmp.lt.s32.totalorder %s16, 1
      %s241 = scalar_select %p240, %s16, 1
      %s242 = smul.addr %s241, 16
      %s243 = smul.addr %s242, 8
      %s244 = scalar_lea.vmem %s5, %s243
      %p245 = scmp.lt.s32.totalorder %s16, 1
      %s246 = scalar_select %p245, %s16, 1
      %s247 = smul.addr %s246, 8
      %s248 = smul.addr %s247, 8
      %s249 = scalar_lea.vmem %s0, %s248
      %p250 = scmp.lt.s32.totalorder %s16, 1
      %s251 = scalar_select %p250, %s16, 1
      %s252 = smul.addr %s251, 8
      %s253 = smul.addr %s252, 8
      %s254 = scalar_lea.vmem %s1, %s253
      %p255 = scmp.lt.s32.totalorder %s16, 1
      %s256 = scalar_select %p255, %s16, 1
      %s257 = smul.addr %s256, 8
      %s258 = smul.addr %s257, 8
      %s259 = scalar_lea.vmem %s2, %s258
      %p260 = scmp.lt.s32.totalorder %s16, 1
      %s261 = scalar_select %p260, %s16, 1
      %s262 = smul.addr %s261, 16
      %s263 = smul.addr %s262, 8
      %s264 = scalar_lea.vmem %s5, %s263
      %v266 = vld [vmem:[%s259] sm:$0xff]
      %v267 = vld [vmem:[%s259 + $0x8] sm:$0xff]
      %v268 = vld [vmem:[%s259 + $0x10] sm:$0xff]
      %v269 = vld [vmem:[%s259 + $0x18] sm:$0xff]
      %v270 = vld [vmem:[%s259 + $0x20] sm:$0xff]
      %v271 = vld [vmem:[%s259 + $0x28] sm:$0xff]
      %v272 = vld [vmem:[%s259 + $0x30] sm:$0xff]
      %v273 = vld [vmem:[%s259 + $0x38] sm:$0xff]
      %v274 = vld [vmem:[%s249] sm:$0xff]
      %v275 = vld [vmem:[%s249 + $0x8] sm:$0xff]
      %v276 = vld [vmem:[%s249 + $0x10] sm:$0xff]
      %v277 = vld [vmem:[%s249 + $0x18] sm:$0xff]
      %v278 = vld [vmem:[%s249 + $0x20] sm:$0xff]
      %v279 = vld [vmem:[%s249 + $0x28] sm:$0xff]
      %v280 = vld [vmem:[%s249 + $0x30] sm:$0xff]
      %v281 = vld [vmem:[%s249 + $0x38] sm:$0xff]
      %v282 = vld [vmem:[%s254] sm:$0xff]
      %v283 = vld [vmem:[%s254 + $0x8] sm:$0xff]
      %v284 = vld [vmem:[%s254 + $0x10] sm:$0xff]
      %v285 = vld [vmem:[%s254 + $0x18] sm:$0xff]
      %v286 = vld [vmem:[%s254 + $0x20] sm:$0xff]
      %v287 = vld [vmem:[%s254 + $0x28] sm:$0xff]
      %v288 = vld [vmem:[%s254 + $0x30] sm:$0xff]
      %v289 = vld [vmem:[%s254 + $0x38] sm:$0xff]
      %vm290 = vcmask 64512
      %v291 = vsel %vm290, %v274, 0.0
      %v292 = vsel %vm290, %v275, 0.0
      %v293 = vadd.f32 %v291, %v292
      %v294 = vsel %vm290, %v276, 0.0
      %v295 = vadd.f32 %v293, %v294
      %v296 = vsel %vm290, %v277, 0.0
      %v297 = vadd.f32 %v295, %v296
      %v298 = vsel %vm290, %v278, 0.0
      %v299 = vadd.f32 %v297, %v298
      %v300 = vsel %vm290, %v279, 0.0
      %v301 = vadd.f32 %v299, %v300
      %v302 = vsel %vm290, %v280, 0.0
      %v303 = vadd.f32 %v301, %v302
      %v304 = vsel %vm290, %v281, 0.0
      %v305 = vadd.f32 %v303, %v304
      %v306 = vrot.slane %v305, 4
      %v307 = vadd.f32 %v305, %v306
      %v308 = vrot.slane %v307, 2
      %v309 = vadd.f32 %v307, %v308
      %v310 = vrot.slane %v309, 1
      %v311 = vadd.f32 %v309, %v310
      %v312 = vmul.f32 %v311, 0.015625
      %v313 = vmul.f32 %v274, %v274
      %v314 = vmul.f32 %v275, %v275
      %v315 = vmul.f32 %v276, %v276
      %v316 = vmul.f32 %v277, %v277
      %v317 = vmul.f32 %v278, %v278
      %v318 = vmul.f32 %v279, %v279
      %v319 = vmul.f32 %v280, %v280
      %v320 = vmul.f32 %v281, %v281
      %v321 = vsel %vm290, %v313, 0.0
      %v322 = vsel %vm290, %v314, 0.0
      %v323 = vadd.f32 %v321, %v322
      %v324 = vsel %vm290, %v315, 0.0
      %v325 = vadd.f32 %v323, %v324
      %v326 = vsel %vm290, %v316, 0.0
      %v327 = vadd.f32 %v325, %v326
      %v328 = vsel %vm290, %v317, 0.0
      %v329 = vadd.f32 %v327, %v328
      %v330 = vsel %vm290, %v318, 0.0
      %v331 = vadd.f32 %v329, %v330
      %v332 = vsel %vm290, %v319, 0.0
      %v333 = vadd.f32 %v331, %v332
      %v334 = vsel %vm290, %v320, 0.0
      %v335 = vadd.f32 %v333, %v334
      %v336 = vrot.slane %v335, 4
      %v337 = vadd.f32 %v335, %v336
      %v338 = vrot.slane %v337, 2
      %v339 = vadd.f32 %v337, %v338
      %v340 = vrot.slane %v339, 1
      %v341 = vadd.f32 %v339, %v340
      %v342 = vmul.f32 %v341, 0.015625
      %v343 = vmul.f32 %v312, %v312
      %v344 = vsub.f32 %v342, %v343
      %v345 = vmax.f32 %v344, 0.0
      %v346 = vsel %vm290, %v282, 0.0
      %v347 = vsel %vm290, %v283, 0.0
      %v348 = vadd.f32 %v346, %v347
      %v349 = vsel %vm290, %v284, 0.0
      %v350 = vadd.f32 %v348, %v349
      %v351 = vsel %vm290, %v285, 0.0
      %v352 = vadd.f32 %v350, %v351
      %v353 = vsel %vm290, %v286, 0.0
      %v354 = vadd.f32 %v352, %v353
      %v355 = vsel %vm290, %v287, 0.0
      %v356 = vadd.f32 %v354, %v355
      %v357 = vsel %vm290, %v288, 0.0
      %v358 = vadd.f32 %v356, %v357
      %v359 = vsel %vm290, %v289, 0.0
      %v360 = vadd.f32 %v358, %v359
      %v361 = vrot.slane %v360, 4
      %v362 = vadd.f32 %v360, %v361
      %v363 = vrot.slane %v362, 2
      %v364 = vadd.f32 %v362, %v363
      %v365 = vrot.slane %v364, 1
      %v366 = vadd.f32 %v364, %v365
      %v367 = vmul.f32 %v366, 0.015625
      %v368 = vmul.f32 %v282, %v282
      %v369 = vmul.f32 %v283, %v283
      %v370 = vmul.f32 %v284, %v284
      %v371 = vmul.f32 %v285, %v285
      %v372 = vmul.f32 %v286, %v286
      %v373 = vmul.f32 %v287, %v287
      %v374 = vmul.f32 %v288, %v288
      %v375 = vmul.f32 %v289, %v289
      %v376 = vsel %vm290, %v368, 0.0
      %v377 = vsel %vm290, %v369, 0.0
      %v378 = vadd.f32 %v376, %v377
      %v379 = vsel %vm290, %v370, 0.0
      %v380 = vadd.f32 %v378, %v379
      %v381 = vsel %vm290, %v371, 0.0
      %v382 = vadd.f32 %v380, %v381
      %v383 = vsel %vm290, %v372, 0.0
      %v384 = vadd.f32 %v382, %v383
      %v385 = vsel %vm290, %v373, 0.0
      %v386 = vadd.f32 %v384, %v385
      %v387 = vsel %vm290, %v374, 0.0
      %v388 = vadd.f32 %v386, %v387
      %v389 = vsel %vm290, %v375, 0.0
      %v390 = vadd.f32 %v388, %v389
      %v391 = vrot.slane %v390, 4
      %v392 = vadd.f32 %v390, %v391
      %v393 = vrot.slane %v392, 2
      %v394 = vadd.f32 %v392, %v393
      %v395 = vrot.slane %v394, 1
      %v396 = vadd.f32 %v394, %v395
      %v397 = vmul.f32 %v396, 0.015625
      %v398 = vmul.f32 %v367, %v367
      %v399 = vsub.f32 %v397, %v398
      %v400 = vmax.f32 %v399, 0.0
      %v401 = vadd.f32 %v400, 1e-05
      %v402 = vrsqrt.pop %v401
      %v403 = vmul.f32 %v401, %v402
      %vm404 = vcmp.eq.f32.partialorder %v401, inf
      %v405 = vsel %vm404, %v401, %v403
      %vm406 = vcmp.eq.f32.partialorder %v401, 0.0
      %v407 = vand.u32 %v401, 2147483648
      %v408 = vsel %vm406, %v407, %v405
      %v409 = vadd.f32 %v345, 1e-05
      %v410 = vrsqrt.pop %v409
      %v411 = vmul.f32 %v408, %v410
      %v412 = vsub.f32 %v274, %v312
      %v413 = vsub.f32 %v275, %v312
      %v414 = vsub.f32 %v276, %v312
      %v415 = vsub.f32 %v277, %v312
      %v416 = vsub.f32 %v278, %v312
      %v417 = vsub.f32 %v279, %v312
      %v418 = vsub.f32 %v280, %v312
      %v419 = vsub.f32 %v281, %v312
      %v420 = vmul.f32 %v412, %v411
      %v421 = vmul.f32 %v413, %v411
      %v422 = vmul.f32 %v414, %v411
      %v423 = vmul.f32 %v415, %v411
      %v424 = vmul.f32 %v416, %v411
      %v425 = vmul.f32 %v417, %v411
      %v426 = vmul.f32 %v418, %v411
      %v427 = vmul.f32 %v419, %v411
      %v428 = vadd.f32 %v420, %v367
      %v429 = vadd.f32 %v421, %v367
      %v430 = vadd.f32 %v422, %v367
      %v431 = vadd.f32 %v423, %v367
      %v432 = vadd.f32 %v424, %v367
      %v433 = vadd.f32 %v425, %v367
      %v434 = vadd.f32 %v426, %v367
      %v435 = vadd.f32 %v427, %v367
      %v436 = vadd.f32 %v428, %v266
      %v437 = vadd.f32 %v429, %v267
      %v438 = vadd.f32 %v430, %v268
      %v439 = vadd.f32 %v431, %v269
      %v440 = vadd.f32 %v432, %v270
      %v441 = vadd.f32 %v433, %v271
      %v442 = vadd.f32 %v434, %v272
      %v443 = vadd.f32 %v435, %v273
      %v444 = vpack.c.bf16 %v436, %v436
      %v445 = vpack.c.bf16 %v437, %v437
      %v446 = vpack.c.bf16 %v438, %v438
      %v447 = vpack.c.bf16 %v439, %v439
      %v448 = vpack.c.bf16 %v440, %v440
      %v449 = vpack.c.bf16 %v441, %v441
      %v450 = vpack.c.bf16 %v442, %v442
      %v451 = vpack.c.bf16 %v443, %v443
      %v453 = vshrl.u32 %v445, 16
      %v456 = vshrl.u32 %v444, 16
      %v459 = vshrl.u32 %v446, 16
      %v462 = vshrl.u32 %v447, 16
      %v465 = vshrl.u32 %v448, 16
      %v468 = vshrl.u32 %v449, 16
      %v471 = vshrl.u32 %v450, 16
      %v474 = vshrl.u32 %v451, 16
      %v484 = vrot.slane %v453, 7
      %v485 = vshll.u32 %v445, 16
      %v487 = vor.u32 %v484, %v485
      %v488 = vrot.slane %v456, 7
      %v489 = vshll.u32 %v444, 16
      %v491 = vor.u32 %v488, %v489
      %v492 = vrot.slane %v459, 7
      %v493 = vshll.u32 %v446, 16
      %v495 = vor.u32 %v492, %v493
      %v496 = vrot.slane %v462, 7
      %v497 = vshll.u32 %v447, 16
      %v499 = vor.u32 %v496, %v497
      %v500 = vrot.slane %v465, 7
      %v501 = vshll.u32 %v448, 16
      %v503 = vor.u32 %v500, %v501
      %v504 = vrot.slane %v468, 7
      %v505 = vshll.u32 %v449, 16
      %v507 = vor.u32 %v504, %v505
      %v508 = vrot.slane %v471, 7
      %v509 = vshll.u32 %v450, 16
      %v511 = vor.u32 %v508, %v509
      %v512 = vrot.slane %v474, 7
      %v513 = vshll.u32 %v451, 16
      %v515 = vor.u32 %v512, %v513
      %vm524 = vcmask 1040384
      %vm525 = vsmask.f32 256
      %vm526 = vmand %vm524, %vm525
      %v527 = vsel %vm526, %v453, %v487
      %v528 = vsel %vm526, %v456, %v491
      %v529 = vsel %vm526, %v459, %v495
      %v530 = vsel %vm526, %v462, %v499
      %v531 = vsel %vm526, %v465, %v503
      %v532 = vsel %vm526, %v468, %v507
      %v533 = vsel %vm526, %v471, %v511
      %v534 = vsel %vm526, %v474, %v515
      %v535 = vrot.slane %v485, 1
      %v536 = vor.u32 %v453, %v535
      %v537 = vrot.slane %v489, 1
      %v538 = vor.u32 %v456, %v537
      %v539 = vrot.slane %v493, 1
      %v540 = vor.u32 %v459, %v539
      %v541 = vrot.slane %v497, 1
      %v542 = vor.u32 %v462, %v541
      %v543 = vrot.slane %v501, 1
      %v544 = vor.u32 %v465, %v543
      %v545 = vrot.slane %v505, 1
      %v546 = vor.u32 %v468, %v545
      %v547 = vrot.slane %v509, 1
      %v548 = vor.u32 %v471, %v547
      %v549 = vrot.slane %v513, 1
      %v550 = vor.u32 %v474, %v549
      %vm567 = vcmask 1043456
      %vm568 = vsmask.f32 3328
      %vm569 = vmand %vm567, %vm568
      %v570 = vsel %vm569, %v536, %v485
      %v571 = vsel %vm569, %v538, %v489
      %v572 = vsel %vm569, %v540, %v493
      %v573 = vsel %vm569, %v542, %v497
      %v574 = vsel %vm569, %v544, %v501
      %v575 = vsel %vm569, %v546, %v505
      %v576 = vsel %vm569, %v548, %v509
      %v577 = vsel %vm569, %v550, %v513
      %586 = vrot.lane.b32.xlu0 %v445, 8
      %v587 = vpop.permute.xlu0 %586
      %588 = vrot.lane.b32.xlu0 %v444, 8
      %v589 = vpop.permute.xlu0 %588
      %590 = vrot.lane.b32.xlu0 %v446, 8
      %v591 = vpop.permute.xlu0 %590
      %592 = vrot.lane.b32.xlu0 %v447, 8
      %v593 = vpop.permute.xlu0 %592
      %594 = vrot.lane.b32.xlu0 %v448, 8
      %v595 = vpop.permute.xlu0 %594
      %596 = vrot.lane.b32.xlu0 %v449, 8
      %v597 = vpop.permute.xlu0 %596
      %598 = vrot.lane.b32.xlu0 %v450, 8
      %v599 = vpop.permute.xlu0 %598
      %600 = vrot.lane.b32.xlu0 %v451, 8
      %v601 = vpop.permute.xlu0 %600
      %610 = vrot.lane.b32.xlu0 %v570, 16
      %v611 = vpop.permute.xlu0 %610
      %612 = vrot.lane.b32.xlu0 %v571, 16
      %v613 = vpop.permute.xlu0 %612
      %614 = vrot.lane.b32.xlu0 %v572, 16
      %v615 = vpop.permute.xlu0 %614
      %616 = vrot.lane.b32.xlu0 %v573, 16
      %v617 = vpop.permute.xlu0 %616
      %618 = vrot.lane.b32.xlu0 %v574, 16
      %v619 = vpop.permute.xlu0 %618
      %620 = vrot.lane.b32.xlu0 %v575, 16
      %v621 = vpop.permute.xlu0 %620
      %622 = vrot.lane.b32.xlu0 %v576, 16
      %v623 = vpop.permute.xlu0 %622
      %624 = vrot.lane.b32.xlu0 %v577, 16
      %v625 = vpop.permute.xlu0 %624
      %v628 = vsel %vm290, %v527, %v587
      %v631 = vsel %vm290, %v528, %v589
      %v634 = vsel %vm290, %v529, %v591
      %v637 = vsel %vm290, %v530, %v593
      %v640 = vsel %vm290, %v531, %v595
      %v643 = vsel %vm290, %v532, %v597
      %v646 = vsel %vm290, %v533, %v599
      %v649 = vsel %vm290, %v534, %v601
      %vm650 = vcmask 130048
      %v652 = vsel %vm650, %v628, %v611
      %v654 = vsel %vm650, %v631, %v613
      %v656 = vsel %vm650, %v634, %v615
      %v658 = vsel %vm650, %v637, %v617
      %v660 = vsel %vm650, %v640, %v619
      %v662 = vsel %vm650, %v643, %v621
      %v664 = vsel %vm650, %v646, %v623
      %v666 = vsel %vm650, %v649, %v625
      %v667 = vld [vmem:[%s3] sm:$0xf]
      %v668 = vld [vmem:[%s3 + $0x4] sm:$0xf]
      %v669 = vld [vmem:[%s3 + $0x8] sm:$0xf]
      %s670 = scalar_lea.vmem %s3, 12
      %v671 = vld [vmem:[%s670] sm:$0xf]
      %v672 = vld [vmem:[%s670 + $0x4] sm:$0xf]
      %v673 = vld [vmem:[%s670 + $0x8] sm:$0xf]
      %v682 = vunpack.c.l.b16 %v654
      %v683 = vunpack.c.l.b16 %v652
      %v684 = vunpack.c.l.b16 %v656
      %v685 = vunpack.c.l.b16 %v658
      %v686 = vunpack.c.l.b16 %v660
      %v687 = vunpack.c.l.b16 %v662
      %v688 = vunpack.c.l.b16 %v664
      %v689 = vunpack.c.l.b16 %v666
      %v690 = vpack.c.b16 %v683, %v682
      %v691 = vpack.c.b16 %v685, %v684
      %v692 = vpack.c.b16 %v687, %v686
      %v693 = vpack.c.b16 %v689, %v688
      %v697 = vunpack.c.l.b16 %v671
      %v698 = vunpack.c.l.b16 %v672
      %v699 = vunpack.c.l.b16 %v673
      %v700 = vpack.c.b16 %v698, %v697
      %v701 = vpack.c.b16 %v699, %v699
      %vm703 = vcmask 195584
      %v705 = vsel %vm703, %v690, 0
      %v708 = vsel %vm703, %v691, 0
      %v711 = vsel %vm703, %v692, 0
      %v714 = vsel %vm703, %v693, 0
      %vm716 = vcmask 1043456
      %v718 = vsel %vm716, %v701, 0
      %720 = vmatprep.subr.bf16.mxu0 0
      %721 = vmatpush1.bf16.msra.mxu0 0
      %722 = vmatprep.subr.bf16.mxu0 0
      %723 = vmatpush1.bf16.msra.mxu0 0
      %724 = vmatprep.subr.bf16.mxu0 0
      %725 = vmatpush1.bf16.msra.mxu0 0
      %726 = vmatprep.subr.bf16.mxu0 0
      %727 = vmatpush1.bf16.msra.mxu0 0
      %728 = vmatprep.subr.bf16.mxu0 0
      %729 = vmatpush1.bf16.msra.mxu0 0
      %730 = vmatprep.subr.bf16.mxu0 0
      %731 = vmatpush1.bf16.msra.mxu0 0
      %732 = vmatprep.subr.bf16.mxu0 0
      %733 = vmatpush1.bf16.msra.mxu0 %v718
      %734 = vmatprep.subr.bf16.mxu0 0
      %735 = vmatpush1.bf16.msra.mxu0 %v700
      %736 = vmatprep.subr.bf16.mxu0 0
      %737 = vmatpush2.bf16.msra.mxu0 0
      %738 = vmatprep.subr.bf16.mxu0 0
      %739 = vmatpush2.bf16.msra.mxu0 0
      %740 = vmatprep.subr.bf16.mxu0 0
      %741 = vmatpush2.bf16.msra.mxu0 0
      %742 = vmatprep.subr.bf16.mxu0 0
      %743 = vmatpush2.bf16.msra.mxu0 0
      %744 = vmatprep.subr.bf16.mxu0 0
      %745 = vmatpush2.bf16.msra.mxu0 0
      %746 = vmatprep.subr.bf16.mxu0 0
      %747 = vmatpush2.bf16.msra.mxu0 0
      %748 = vmatprep.subr.bf16.mxu0 0
      %749 = vmatpush2.bf16.msra.mxu0 0
      %750 = vmatprep.subr.bf16.mxu0 0
      %751 = vmatpush2.bf16.msra.mxu0 0
      %752 = vmatprep.mubr.bf16.mxu0 0
      %753 = vmatmul.mubr.bf16.gmra.mxu0 %v705
      %v754 = vpop.f32.mrf.mxu0
      %v755 = vadd.f32 0.0, %v754
      %v756 = vpop.f32.mrf.mxu0
      %v757 = vpop.f32.mrf.mxu0
      %v758 = vadd.f32 0.0, %v757
      %v759 = vpop.f32.mrf.mxu0
      %760 = vmatprep.mubr.bf16.mxu0 0
      %761 = vmatmul.mubr.bf16.gmra.mxu0 %v708
      %v762 = vpop.f32.mrf.mxu0
      %v763 = vadd.f32 0.0, %v762
      %v764 = vpop.f32.mrf.mxu0
      %v765 = vpop.f32.mrf.mxu0
      %v766 = vadd.f32 0.0, %v765
      %v767 = vpop.f32.mrf.mxu0
      %768 = vmatprep.mubr.bf16.mxu0 0
      %769 = vmatmul.mubr.bf16.gmra.mxu0 %v711
      %v770 = vpop.f32.mrf.mxu0
      %v771 = vadd.f32 0.0, %v770
      %v772 = vpop.f32.mrf.mxu0
      %v773 = vpop.f32.mrf.mxu0
      %v774 = vadd.f32 0.0, %v773
      %v775 = vpop.f32.mrf.mxu0
      %776 = vmatprep.mubr.bf16.mxu0 0
      %777 = vmatmul.mubr.bf16.gmra.mxu0 %v714
      %v778 = vpop.f32.mrf.mxu0
      %v779 = vadd.f32 0.0, %v778
      %v780 = vpop.f32.mrf.mxu0
      %v781 = vpop.f32.mrf.mxu0
      %v782 = vadd.f32 0.0, %v781
      %v783 = vpop.f32.mrf.mxu0
      %784 = vdwg.mxu0
      %v785 = vpack.c.b16 %v682, %v683
      %v786 = vpack.c.b16 %v684, %v683
      %v787 = vpack.c.b16 %v686, %v685
      %v788 = vpack.c.b16 %v688, %v687
      %v792 = vunpack.c.l.b16 %v667
      %v793 = vunpack.c.l.b16 %v668
      %v794 = vunpack.c.l.b16 %v669
      %v795 = vpack.c.b16 %v793, %v792
      %v796 = vpack.c.b16 %v794, %v794
      %v799 = vsel %vm703, %v785, 0
      %v802 = vsel %vm703, %v786, 0
      %v805 = vsel %vm703, %v787, 0
      %v808 = vsel %vm703, %v788, 0
      %v811 = vsel %vm716, %v796, 0
      %813 = vmatprep.subr.bf16.mxu0 0
      %814 = vmatpush1.bf16.msra.mxu0 0
      %815 = vmatprep.subr.bf16.mxu0 0
      %816 = vmatpush1.bf16.msra.mxu0 0
      %817 = vmatprep.subr.bf16.mxu0 0
      %818 = vmatpush1.bf16.msra.mxu0 0
      %819 = vmatprep.subr.bf16.mxu0 0
      %820 = vmatpush1.bf16.msra.mxu0 0
      %821 = vmatprep.subr.bf16.mxu0 0
      %822 = vmatpush1.bf16.msra.mxu0 0
      %823 = vmatprep.subr.bf16.mxu0 0
      %824 = vmatpush1.bf16.msra.mxu0 0
      %825 = vmatprep.subr.bf16.mxu0 0
      %826 = vmatpush1.bf16.msra.mxu0 %v811
      %827 = vmatprep.subr.bf16.mxu0 0
      %828 = vmatpush1.bf16.msra.mxu0 %v795
      %829 = vmatprep.subr.bf16.mxu0 0
      %830 = vmatpush2.bf16.msra.mxu0 0
      %831 = vmatprep.subr.bf16.mxu0 0
      %832 = vmatpush2.bf16.msra.mxu0 0
      %833 = vmatprep.subr.bf16.mxu0 0
      %834 = vmatpush2.bf16.msra.mxu0 0
      %835 = vmatprep.subr.bf16.mxu0 0
      %836 = vmatpush2.bf16.msra.mxu0 0
      %837 = vmatprep.subr.bf16.mxu0 0
      %838 = vmatpush2.bf16.msra.mxu0 0
      %839 = vmatprep.subr.bf16.mxu0 0
      %840 = vmatpush2.bf16.msra.mxu0 0
      %841 = vmatprep.subr.bf16.mxu0 0
      %842 = vmatpush2.bf16.msra.mxu0 0
      %843 = vmatprep.subr.bf16.mxu0 0
      %844 = vmatpush2.bf16.msra.mxu0 0
      %845 = vmatprep.mubr.bf16.mxu0 0
      %846 = vmatmul.mubr.bf16.gmra.mxu0 %v799
      %v847 = vpop.f32.mrf.mxu0
      %v848 = vadd.f32 %v755, %v847
      %v849 = vpop.f32.mrf.mxu0
      %v850 = vpop.f32.mrf.mxu0
      %v851 = vadd.f32 %v758, %v850
      %v852 = vpop.f32.mrf.mxu0
      %853 = vmatprep.mubr.bf16.mxu0 0
      %854 = vmatmul.mubr.bf16.gmra.mxu0 %v802
      %v855 = vpop.f32.mrf.mxu0
      %v856 = vadd.f32 %v763, %v855
      %v857 = vpop.f32.mrf.mxu0
      %v858 = vpop.f32.mrf.mxu0
      %v859 = vadd.f32 %v766, %v858
      %v860 = vpop.f32.mrf.mxu0
      %861 = vmatprep.mubr.bf16.mxu0 0
      %862 = vmatmul.mubr.bf16.gmra.mxu0 %v805
      %v863 = vpop.f32.mrf.mxu0
      %v864 = vadd.f32 %v771, %v863
      %v865 = vpop.f32.mrf.mxu0
      %v866 = vpop.f32.mrf.mxu0
      %v867 = vadd.f32 %v774, %v866
      %v868 = vpop.f32.mrf.mxu0
      %869 = vmatprep.mubr.bf16.mxu0 0
      %870 = vmatmul.mubr.bf16.gmra.mxu0 %v808
      %v871 = vpop.f32.mrf.mxu0
      %v872 = vadd.f32 %v779, %v871
      %v873 = vpop.f32.mrf.mxu0
      %v874 = vpop.f32.mrf.mxu0
      %v875 = vadd.f32 %v782, %v874
      %v876 = vpop.f32.mrf.mxu0
      %877 = vdwg.mxu0
      %s878 = scalar_lea.vmem %s3, 24
      %v879 = vld [vmem:[%s878] sm:$0xf]
      %v880 = vld [vmem:[%s878 + $0x4] sm:$0xf]
      %v881 = vld [vmem:[%s878 + $0x8] sm:$0xf]
      %v882 = vpack.c.b16 %v688, %v689
      %v886 = vunpack.c.l.b16 %v879
      %v887 = vunpack.c.l.b16 %v880
      %v888 = vunpack.c.l.b16 %v881
      %v889 = vpack.c.b16 %v887, %v886
      %v890 = vpack.c.b16 %v888, %v888
      %v893 = vsel %vm703, %v882, 0
      %v896 = vsel %vm716, %v890, 0
      %898 = vmatprep.subr.bf16.mxu0 0
      %899 = vmatpush1.bf16.msra.mxu0 0
      %900 = vmatprep.subr.bf16.mxu0 0
      %901 = vmatpush1.bf16.msra.mxu0 0
      %902 = vmatprep.subr.bf16.mxu0 0
      %903 = vmatpush1.bf16.msra.mxu0 0
      %904 = vmatprep.subr.bf16.mxu0 0
      %905 = vmatpush1.bf16.msra.mxu0 0
      %906 = vmatprep.subr.bf16.mxu0 0
      %907 = vmatpush1.bf16.msra.mxu0 0
      %908 = vmatprep.subr.bf16.mxu0 0
      %909 = vmatpush1.bf16.msra.mxu0 0
      %910 = vmatprep.subr.bf16.mxu0 0
      %911 = vmatpush1.bf16.msra.mxu0 %v896
      %912 = vmatprep.subr.bf16.mxu0 0
      %913 = vmatpush1.bf16.msra.mxu0 %v889
      %914 = vmatprep.subr.bf16.mxu0 0
      %915 = vmatpush2.bf16.msra.mxu0 0
      %916 = vmatprep.subr.bf16.mxu0 0
      %917 = vmatpush2.bf16.msra.mxu0 0
      %918 = vmatprep.subr.bf16.mxu0 0
      %919 = vmatpush2.bf16.msra.mxu0 0
      %920 = vmatprep.subr.bf16.mxu0 0
      %921 = vmatpush2.bf16.msra.mxu0 0
      %922 = vmatprep.subr.bf16.mxu0 0
      %923 = vmatpush2.bf16.msra.mxu0 0
      %924 = vmatprep.subr.bf16.mxu0 0
      %925 = vmatpush2.bf16.msra.mxu0 0
      %926 = vmatprep.subr.bf16.mxu0 0
      %927 = vmatpush2.bf16.msra.mxu0 0
      %928 = vmatprep.subr.bf16.mxu0 0
      %929 = vmatpush2.bf16.msra.mxu0 0
      %930 = vmatprep.mubr.bf16.mxu0 0
      %931 = vmatmul.mubr.bf16.gmra.mxu0 %v802
      %v932 = vpop.f32.mrf.mxu0
      %v933 = vadd.f32 0.0, %v932
      %v934 = vpop.f32.mrf.mxu0
      %v935 = vpop.f32.mrf.mxu0
      %v936 = vadd.f32 0.0, %v935
      %v937 = vpop.f32.mrf.mxu0
      %938 = vmatprep.mubr.bf16.mxu0 0
      %939 = vmatmul.mubr.bf16.gmra.mxu0 %v805
      %v940 = vpop.f32.mrf.mxu0
      %v941 = vadd.f32 0.0, %v940
      %v942 = vpop.f32.mrf.mxu0
      %v943 = vpop.f32.mrf.mxu0
      %v944 = vadd.f32 0.0, %v943
      %v945 = vpop.f32.mrf.mxu0
      %946 = vmatprep.mubr.bf16.mxu0 0
      %947 = vmatmul.mubr.bf16.gmra.mxu0 %v808
      %v948 = vpop.f32.mrf.mxu0
      %v949 = vadd.f32 0.0, %v948
      %v950 = vpop.f32.mrf.mxu0
      %v951 = vpop.f32.mrf.mxu0
      %v952 = vadd.f32 0.0, %v951
      %v953 = vpop.f32.mrf.mxu0
      %954 = vmatprep.mubr.bf16.mxu0 0
      %955 = vmatmul.mubr.bf16.gmra.mxu0 %v893
      %v956 = vpop.f32.mrf.mxu0
      %v957 = vadd.f32 0.0, %v956
      %v958 = vpop.f32.mrf.mxu0
      %v959 = vpop.f32.mrf.mxu0
      %v960 = vadd.f32 0.0, %v959
      %v961 = vpop.f32.mrf.mxu0
      %962 = vdwg.mxu0
      %v963 = vadd.f32 %v848, %v933
      %v964 = vadd.f32 %v851, %v936
      %v965 = vadd.f32 %v856, %v941
      %v966 = vadd.f32 %v859, %v944
      %v967 = vadd.f32 %v864, %v949
      %v968 = vadd.f32 %v867, %v952
      %v969 = vadd.f32 %v872, %v957
      %v970 = vadd.f32 %v875, %v960
      %v971 = vld [vmem:[%s4] sm:$0x1]
      %v973 = vlaneseq
      %v974 = vshrl.u32 %v973, 7
      %v975 = vsub.s32 0, %v974
      %v976 = vrot.slane %v971, %v975
      %v978 = vadd.f32 %v963, %v976
      %v979 = vadd.f32 %v964, %v976
      %v980 = vadd.f32 %v965, %v976
      %v981 = vadd.f32 %v966, %v976
      %v982 = vadd.f32 %v967, %v976
      %v983 = vadd.f32 %v968, %v976
      %v984 = vadd.f32 %v969, %v976
      %v985 = vadd.f32 %v970, %v976
      %v986 = vmax.f32 %v978, 0.0
      %v987 = vmax.f32 %v979, 0.0
      %v988 = vmax.f32 %v980, 0.0
      %v989 = vmax.f32 %v981, 0.0
      %v990 = vmax.f32 %v982, 0.0
      %v991 = vmax.f32 %v983, 0.0
      %v992 = vmax.f32 %v984, 0.0
      %v993 = vmax.f32 %v985, 0.0
      %1002 = vrot.lane.b32.xlu0 %v986, 8
      %v1003 = vpop.permute.xlu0 %1002
      %1004 = vrot.lane.b32.xlu0 %v987, 8
      %v1005 = vpop.permute.xlu0 %1004
      %1006 = vrot.lane.b32.xlu0 %v988, 8
      %v1007 = vpop.permute.xlu0 %1006
      %1008 = vrot.lane.b32.xlu0 %v989, 8
      %v1009 = vpop.permute.xlu0 %1008
      %1010 = vrot.lane.b32.xlu0 %v990, 8
      %v1011 = vpop.permute.xlu0 %1010
      %1012 = vrot.lane.b32.xlu0 %v991, 8
      %v1013 = vpop.permute.xlu0 %1012
      %1014 = vrot.lane.b32.xlu0 %v992, 8
      %v1015 = vpop.permute.xlu0 %1014
      %1016 = vrot.lane.b32.xlu0 %v993, 8
      %v1017 = vpop.permute.xlu0 %1016
      %v1026 = vsel %vm290, %v986, %v1003
      %v1027 = vsel %vm290, %v987, %v1005
      %v1028 = vsel %vm290, %v988, %v1007
      %v1029 = vsel %vm290, %v989, %v1009
      %v1030 = vsel %vm290, %v990, %v1011
      %v1031 = vsel %vm290, %v991, %v1013
      %v1032 = vsel %vm290, %v992, %v1015
      %v1033 = vsel %vm290, %v993, %v1017
      %1034 = vst.msk [vmem:[%s264] sm:$0xff] %vm650, %v1026
      %1035 = vst.msk [vmem:[%s264 + $0x8] sm:$0xff] %vm650, %v1026
      %1036 = vst.msk [vmem:[%s264 + $0x10] sm:$0xff] %vm650, %v1027
      %1037 = vst.msk [vmem:[%s264 + $0x18] sm:$0xff] %vm650, %v1027
      %1038 = vst.msk [vmem:[%s264 + $0x20] sm:$0xff] %vm650, %v1028
      %1039 = vst.msk [vmem:[%s264 + $0x28] sm:$0xff] %vm650, %v1028
      %1040 = vst.msk [vmem:[%s264 + $0x30] sm:$0xff] %vm650, %v1029
      %1041 = vst.msk [vmem:[%s264 + $0x38] sm:$0xff] %vm650, %v1029
      %1042 = vst.msk [vmem:[%s264 + $0x40] sm:$0xff] %vm650, %v1030
      %1043 = vst.msk [vmem:[%s264 + $0x48] sm:$0xff] %vm650, %v1030
      %1044 = vst.msk [vmem:[%s264 + $0x50] sm:$0xff] %vm650, %v1031
      %1045 = vst.msk [vmem:[%s264 + $0x58] sm:$0xff] %vm650, %v1031
      %1046 = vst.msk [vmem:[%s264 + $0x60] sm:$0xff] %vm650, %v1032
      %1047 = vst.msk [vmem:[%s264 + $0x68] sm:$0xff] %vm650, %v1032
      %1048 = vst.msk [vmem:[%s264 + $0x70] sm:$0xff] %vm650, %v1033
      %1049 = vst.msk [vmem:[%s264 + $0x78] sm:$0xff] %vm650, %v1033
      %p1050 = scmp.lt.s32.totalorder %s16, 1
      %s1051 = scalar_select %p1050, %s16, 1
      %s1052 = smul.addr %s1051, 16
      %s1053 = smul.addr %s1052, 8
      %s1054 = scalar_lea.vmem %s5, %s1053
      // Predicated region
      $region41: #{_lambda_.3} parent=39 // pred_check
        %p1055 = pneg %p154
      $region42: #{_lambda_.3} parent=39 // pred_check_branch
        %1057 = sbr.rel (%p1055) target = $region44
      $region43: #{_lambda_.3} parent=39 // pred_region
        _
      $region44: #{_lambda_.3} parent=39 // pred_fallthru
        _
    $region40: #{_lambda_.3} parent=5 // pred_fallthru
      _
    %p1058 = scmp.le.s32.totalorder 2, %s11
    // Predicated region
    $region45: #{_lambda_.3} parent=5 // pred_check
      %p1059 = pneg %p1058
    $region46: #{_lambda_.3} parent=5 // pred_check_branch
      %1061 = sbr.rel (%p1059) target = $region48
    $region47: #{_lambda_.3} parent=5 // pred_region
      %s1062 = ssub.s32 %s11, 2
      // Predicated region
      $region49: #{_lambda_.3} parent=47 // pred_check
        %p1063 = pneg %p160
      $region50: #{_lambda_.3} parent=47 // pred_check_branch
        %1065 = sbr.rel (%p1063) target = $region52
      $region51: #{_lambda_.3} parent=47 // pred_region
        %p1066 = scmp.lt.s32.totalorder %s17, 1
        %s1067 = scalar_select %p1066, %s17, 1
        %s1068 = smul.addr %s1067, 16
        %s1069 = smul.addr %s1068, 8
        %s1070 = scalar_lea.vmem %s5, %s1069
      $region52: #{_lambda_.3} parent=47 // pred_fallthru
        _
    $region48: #{_lambda_.3} parent=5 // pred_fallthru
      _
  $region6: #{_lambda_.3} parent=0 // loop_footer
    %s15 = sadd.s32 1, %s11
  $region7: #{_lambda_.3} parent=0 // loop_footer_branch
    %10 = sbr.rel target = $region3
  $region8: #{_lambda_.3} parent=0 // loop_exit
    _

// kernel: _lambda_.4
$region0: #{_lambda_.4}
  #allocation0 [shape = 'u32[]', space=smem, size = 0x4, offset = 0x4, fixed_abs, tag = 'smem constant byte address 0x4 - core index']
  #allocation1 [shape = 'u32[144,128]{1,0:T(1,128)}', space=vmem, size = 0x12000, scoped, tag = 'internal scratch']
  %s0 = inlined_call_operand.vmem [shape: f32[2,16,16,8], index: 0, kind: input, shape index: {}]
  %s1 = inlined_call_operand.vmem [shape: bf16[3,24,8], index: 1, kind: input, shape index: {}]
  %s2 = inlined_call_operand.vmem [shape: f32[1,1,8], index: 2, kind: input, shape index: {}]
  %s3 = inlined_call_operand.vmem [shape: f32[2,16,16,8], index: 3, kind: output, shape index: {}]
  %s4 = sld [smem:[#allocation0]]
  $region45: #{_lambda_.4} parent=0
    _
  %s6 = ssub.s32 1, %s4
  %s7 = scalar_select 0, %s6, %s4
  loop: start=0, step=1, limit=4
  $region2: #{_lambda_.4} parent=0 // loop_pre_header
    _
  $region3: #{_lambda_.4} parent=0 // loop_header
    %s9 = sphi 0, %s13
    %p10 = scmp.ge.s32.totalorder %s9, 4
    %s19 = sphi 0, %s21
    %s22 = sphi 0, %s19
    %s23 = sphi 0, %s22
    %s39 = sphi 0, %s23
    %s43 = sphi 0, %s43
    %s45 = sphi 0, %s43
    %s46 = sphi 0, %s45
    %s60 = sphi 0, %s46
    %s64 = sphi 0, %s64
    %s66 = sphi 0, %s64
    %s67 = sphi 0, %s66
    %s81 = sphi 0, %s67
    %s87 = sphi 0, %s89
    %s90 = sphi 0, %s87
    %s91 = sphi 0, %s90
    %s107 = sphi 0, %s91
  $region4: #{_lambda_.4} parent=0 // loop_header_branch
    %12 = sbr.rel (%p10) target = $region8
  $region5: #{_lambda_.4} parent=0 // loop_body
    %s14 = ssub.s32 %s9, 1
    %s15 = ssub.s32 %s9, 2
    %s16 = sadd.s32 %s9, 1
    %s17 = ssub.s32 %s9, %s16
    %p18 = scmp.eq.s32.totalorder %s17, 0
    %s20 = sadd.s32 %s19, 1
    %s21 = scalar_select %p18, %s19, %s20
    %p24 = pneg %p18
    %p25 = scmp.eq.s32.totalorder %s9, 1
    %p26 = por %p24, %p25
    %p27 = scmp.ne.s32.totalorder %s19, %s22
    %p28 = scmp.eq.s32.totalorder %s9, 0
    %p29 = por %p27, %p28
    %p30 = scmp.ne.s32.totalorder %s19, %s22
    %p31 = scmp.eq.s32.totalorder %s14, 1
    %p32 = por %p30, %p31
    %p33 = scmp.ne.s32.totalorder %s22, %s23
    %p34 = scmp.eq.s32.totalorder %s14, 0
    %p35 = por %p33, %p34
    %p36 = scmp.ne.s32.totalorder %s22, %s23
    %p37 = scmp.eq.s32.totalorder %s15, 1
    %p38 = por %p36, %p37
    %p40 = scmp.ne.s32.totalorder %s23, %s39
    %p41 = scmp.eq.s32.totalorder %s15, 0
    %p42 = por %p40, %p41
    %s44 = sadd.s32 %s43, 1
    %p47 = scmp.eq.s32.totalorder %s9, 1
    %p48 = scmp.ne.s32.totalorder %s43, %s45
    %p49 = scmp.eq.s32.totalorder %s9, 0
    %p50 = por %p48, %p49
    %p51 = scmp.ne.s32.totalorder %s43, %s45
    %p52 = scmp.eq.s32.totalorder %s14, 1
    %p53 = por %p51, %p52
    %p54 = scmp.ne.s32.totalorder %s45, %s46
    %p55 = scmp.eq.s32.totalorder %s14, 0
    %p56 = por %p54, %p55
    %p57 = scmp.ne.s32.totalorder %s45, %s46
    %p58 = scmp.eq.s32.totalorder %s15, 1
    %p59 = por %p57, %p58
    %p61 = scmp.ne.s32.totalorder %s46, %s60
    %p62 = scmp.eq.s32.totalorder %s15, 0
    %p63 = por %p61, %p62
    %s65 = sadd.s32 %s64, 1
    %p68 = scmp.eq.s32.totalorder %s9, 1
    %p69 = scmp.ne.s32.totalorder %s64, %s66
    %p70 = scmp.eq.s32.totalorder %s9, 0
    %p71 = por %p69, %p70
    %p72 = scmp.ne.s32.totalorder %s64, %s66
    %p73 = scmp.eq.s32.totalorder %s14, 1
    %p74 = por %p72, %p73
    %p75 = scmp.ne.s32.totalorder %s66, %s67
    %p76 = scmp.eq.s32.totalorder %s14, 0
    %p77 = por %p75, %p76
    %p78 = scmp.ne.s32.totalorder %s66, %s67
    %p79 = scmp.eq.s32.totalorder %s15, 1
    %p80 = por %p78, %p79
    %p82 = scmp.ne.s32.totalorder %s67, %s81
    %p83 = scmp.eq.s32.totalorder %s15, 0
    %p84 = por %p82, %p83
    %s85 = ssub.s32 %s9, %s16
    %p86 = scmp.eq.s32.totalorder %s85, 0
    %s88 = sadd.s32 %s87, 1
    %s89 = scalar_select %p86, %s87, %s88
    %p92 = pneg %p86
    %p93 = scmp.eq.s32.totalorder %s9, 1
    %p94 = por %p92, %p93
    %p95 = scmp.ne.s32.totalorder %s87, %s90
    %p96 = scmp.eq.s32.totalorder %s9, 0
    %p97 = por %p95, %p96
    %p98 = scmp.ne.s32.totalorder %s87, %s90
    %p99 = scmp.eq.s32.totalorder %s14, 1
    %p100 = por %p98, %p99
    %p101 = scmp.ne.s32.totalorder %s90, %s91
    %p102 = scmp.eq.s32.totalorder %s14, 0
    %p103 = por %p101, %p102
    %p104 = scmp.ne.s32.totalorder %s90, %s91
    %p105 = scmp.eq.s32.totalorder %s15, 1
    %p106 = por %p104, %p105
    %p108 = scmp.ne.s32.totalorder %s91, %s107
    %p109 = scmp.eq.s32.totalorder %s15, 0
    %p110 = por %p108, %p109
    %p111 = scmp.le.s32.totalorder 1, %s9
    %p112 = scmp.lt.s32.totalorder %s9, 3
    %p113 = pnand %p111, %p112
    %p114 = pneg %p113
    // Predicated region
    $region9: #{_lambda_.4} parent=5 // pred_check
      _
    $region10: #{_lambda_.4} parent=5 // pred_check_branch
      %116 = sbr.rel (%p113) target = $region12
    $region11: #{_lambda_.4} parent=5 // pred_region
      %s117 = ssub.s32 %s9, 1
      // Predicated region
      $region13: #{_lambda_.4} parent=11 // pred_check
        %p118 = pneg %p56
      $region14: #{_lambda_.4} parent=11 // pred_check_branch
        %120 = sbr.rel (%p118) target = $region16
      $region15: #{_lambda_.4} parent=11 // pred_region
        _
      $region16: #{_lambda_.4} parent=11 // pred_fallthru
        _
      // Predicated region
      $region17: #{_lambda_.4} parent=11 // pred_check
        %p121 = pneg %p77
      $region18: #{_lambda_.4} parent=11 // pred_check_branch
        %123 = sbr.rel (%p121) target = $region20
      $region19: #{_lambda_.4} parent=11 // pred_region
        _
      $region20: #{_lambda_.4} parent=11 // pred_fallthru
        _
    $region12: #{_lambda_.4} parent=5 // pred_fallthru
      _
    %p124 = scmp.lt.s32.totalorder %s9, 2
    // Predicated region
    $region21: #{_lambda_.4} parent=5 // pred_check
      %p125 = pneg %p124
    $region22: #{_lambda_.4} parent=5 // pred_check_branch
      %127 = sbr.rel (%p125) target = $region24
    $region23: #{_lambda_.4} parent=5 // pred_region
      // Predicated region
      $region25: #{_lambda_.4} parent=23 // pred_check
        %p128 = pneg %p29
      $region26: #{_lambda_.4} parent=23 // pred_check_branch
        %130 = sbr.rel (%p128) target = $region28
      $region27: #{_lambda_.4} parent=23 // pred_region
        %p131 = scmp.lt.s32.totalorder %s9, 1
        %s132 = scalar_select %p131, %s9, 1
        %s133 = smul.addr %s132, 32
        %s134 = smul.addr %s133, 8
        %s135 = scalar_lea.vmem %s0, %s134
      $region28: #{_lambda_.4} parent=23 // pred_fallthru
        _
    $region24: #{_lambda_.4} parent=5 // pred_fallthru
      _
    %p136 = scmp.le.s32.totalorder 1, %s9
    %p137 = scmp.lt.s32.totalorder %s9, 3
    %p138 = pnand %p136, %p137
    %p139 = pneg %p138
    // Predicated region
    $region29: #{_lambda_.4} parent=5 // pred_check
      _
    $region30: #{_lambda_.4} parent=5 // pred_check_branch
      %141 = sbr.rel (%p138) target = $region32
    $region31: #{_lambda_.4} parent=5 // pred_region
      %s142 = ssub.s32 %s9, 1
      %p143 = scmp.lt.s32.totalorder %s14, 1
      %s144 = scalar_select %p143, %s14, 1
      %s145 = smul.addr %s144, 32
      %s146 = smul.addr %s145, 8
      %s147 = scalar_lea.vmem %s0, %s146
      %p148 = pneg %p35
      %p149 = pneg %p32
      %p150 = pneg %p56
      %p151 = pneg %p53
      %p152 = pneg %p77
      %p153 = pneg %p74
      %p154 = pneg %p103
      %p155 = pneg %p100
      %p156 = scmp.lt.s32.totalorder %s14, 1
      %s157 = scalar_select %p156, %s14, 1
      %s158 = smul.addr %s157, 32
      %s159 = smul.addr %s158, 8
      %s160 = scalar_lea.vmem %s3, %s159
      %p161 = scmp.lt.s32.totalorder %s14, 1
      %s162 = scalar_select %p161, %s14, 1
      %s163 = smul.addr %s162, 32
      %s164 = smul.addr %s163, 8
      %s165 = scalar_lea.vmem %s0, %s164
      %p166 = scmp.lt.s32.totalorder %s14, 1
      %s167 = scalar_select %p166, %s14, 1
      %s168 = smul.addr %s167, 32
      %s169 = smul.addr %s168, 8
      %s170 = scalar_lea.vmem %s3, %s169
      %v172 = vld [vmem:[%s165] sm:$0xff]
      %v173 = vld [vmem:[%s165 + $0x8] sm:$0xff]
      %v174 = vld [vmem:[%s165 + $0x10] sm:$0xff]
      %v175 = vld [vmem:[%s165 + $0x18] sm:$0xff]
      %v176 = vld [vmem:[%s165 + $0x20] sm:$0xff]
      %v177 = vld [vmem:[%s165 + $0x28] sm:$0xff]
      %v178 = vld [vmem:[%s165 + $0x30] sm:$0xff]
      %v179 = vld [vmem:[%s165 + $0x38] sm:$0xff]
      %v180 = vld [vmem:[%s165 + $0x40] sm:$0xff]
      %v181 = vld [vmem:[%s165 + $0x48] sm:$0xff]
      %v182 = vld [vmem:[%s165 + $0x50] sm:$0xff]
      %v183 = vld [vmem:[%s165 + $0x58] sm:$0xff]
      %v184 = vld [vmem:[%s165 + $0x60] sm:$0xff]
      %v185 = vld [vmem:[%s165 + $0x68] sm:$0xff]
      %v186 = vld [vmem:[%s165 + $0x70] sm:$0xff]
      %v187 = vld [vmem:[%s165 + $0x78] sm:$0xff]
      %v188 = vld [vmem:[%s165 + $0x80] sm:$0xff]
      %v189 = vld [vmem:[%s165 + $0x88] sm:$0xff]
      %v190 = vld [vmem:[%s165 + $0x90] sm:$0xff]
      %v191 = vld [vmem:[%s165 + $0x98] sm:$0xff]
      %v192 = vld [vmem:[%s165 + $0xa0] sm:$0xff]
      %v193 = vld [vmem:[%s165 + $0xa8] sm:$0xff]
      %v194 = vld [vmem:[%s165 + $0xb0] sm:$0xff]
      %v195 = vld [vmem:[%s165 + $0xb8] sm:$0xff]
      %v196 = vld [vmem:[%s165 + $0xc0] sm:$0xff]
      %v197 = vld [vmem:[%s165 + $0xc8] sm:$0xff]
      %v198 = vld [vmem:[%s165 + $0xd0] sm:$0xff]
      %v199 = vld [vmem:[%s165 + $0xd8] sm:$0xff]
      %v200 = vld [vmem:[%s165 + $0xe0] sm:$0xff]
      %v201 = vld [vmem:[%s165 + $0xe8] sm:$0xff]
      %v202 = vld [vmem:[%s165 + $0xf0] sm:$0xff]
      %v203 = vld [vmem:[%s165 + $0xf8] sm:$0xff]
      %v204 = vpack.c.bf16 %v173, %v172
      %v205 = vpack.c.bf16 %v175, %v174
      %v206 = vpack.c.bf16 %v177, %v176
      %v207 = vpack.c.bf16 %v179, %v178
      %v208 = vpack.c.bf16 %v181, %v180
      %v209 = vpack.c.bf16 %v183, %v182
      %v210 = vpack.c.bf16 %v185, %v184
      %v211 = vpack.c.bf16 %v187, %v186
      %v212 = vpack.c.bf16 %v189, %v188
      %v213 = vpack.c.bf16 %v191, %v190
      %v214 = vpack.c.bf16 %v193, %v192
      %v215 = vpack.c.bf16 %v195, %v194
      %v216 = vpack.c.bf16 %v197, %v196
      %v217 = vpack.c.bf16 %v199, %v198
      %v218 = vpack.c.bf16 %v201, %v200
      %v219 = vpack.c.bf16 %v203, %v202
      %v221 = vshrl.u32 %v205, 16
      %v224 = vshrl.u32 %v204, 16
      %v227 = vshrl.u32 %v206, 16
      %v230 = vshrl.u32 %v207, 16
      %v233 = vshrl.u32 %v208, 16
      %v236 = vshrl.u32 %v209, 16
      %v239 = vshrl.u32 %v210, 16
      %v242 = vshrl.u32 %v211, 16
      %v245 = vshrl.u32 %v212, 16
      %v248 = vshrl.u32 %v213, 16
      %v251 = vshrl.u32 %v214, 16
      %v254 = vshrl.u32 %v215, 16
      %v257 = vshrl.u32 %v216, 16
      %v260 = vshrl.u32 %v217, 16
      %v263 = vshrl.u32 %v218, 16
      %v266 = vshrl.u32 %v219, 16
      %v284 = vrot.slane %v221, 7
      %v285 = vshll.u32 %v205, 16
      %v287 = vor.u32 %v284, %v285
      %v288 = vrot.slane %v224, 7
      %v289 = vshll.u32 %v204, 16
      %v291 = vor.u32 %v288, %v289
      %v292 = vrot.slane %v227, 7
      %v293 = vshll.u32 %v206, 16
      %v295 = vor.u32 %v292, %v293
      %v296 = vrot.slane %v230, 7
      %v297 = vshll.u32 %v207, 16
      %v299 = vor.u32 %v296, %v297
      %v300 = vrot.slane %v233, 7
      %v301 = vshll.u32 %v208, 16
      %v303 = vor.u32 %v300, %v301
      %v304 = vrot.slane %v236, 7
      %v305 = vshll.u32 %v209, 16
      %v307 = vor.u32 %v304, %v305
      %v308 = vrot.slane %v239, 7
      %v309 = vshll.u32 %v210, 16
      %v311 = vor.u32 %v308, %v309
      %v312 = vrot.slane %v242, 7
      %v313 = vshll.u32 %v211, 16
      %v315 = vor.u32 %v312, %v313
      %v316 = vrot.slane %v245, 7
      %v317 = vshll.u32 %v212, 16
      %v319 = vor.u32 %v316, %v317
      %v320 = vrot.slane %v248, 7
      %v321 = vshll.u32 %v213, 16
      %v323 = vor.u32 %v320, %v321
      %v324 = vrot.slane %v251, 7
      %v325 = vshll.u32 %v214, 16
      %v327 = vor.u32 %v324, %v325
      %v328 = vrot.slane %v254, 7
      %v329 = vshll.u32 %v215, 16
      %v331 = vor.u32 %v328, %v329
      %v332 = vrot.slane %v257, 7
      %v333 = vshll.u32 %v216, 16
      %v335 = vor.u32 %v332, %v333
      %v336 = vrot.slane %v260, 7
      %v337 = vshll.u32 %v217, 16
      %v339 = vor.u32 %v336, %v337
      %v340 = vrot.slane %v263, 7
      %v341 = vshll.u32 %v218, 16
      %v343 = vor.u32 %v340, %v341
      %v344 = vrot.slane %v266, 7
      %v345 = vshll.u32 %v219, 16
      %v347 = vor.u32 %v344, %v345
      %vm364 = vcmask 1040384
      %vm365 = vsmask.f32 256
      %vm366 = vmand %vm364, %vm365
      %v367 = vsel %vm366, %v221, %v287
      %v368 = vsel %vm366, %v224, %v291
      %v369 = vsel %vm366, %v227, %v295
      %v370 = vsel %vm366, %v230, %v299
      %v371 = vsel %vm366, %v233, %v303
      %v372 = vsel %vm366, %v236, %v307
      %v373 = vsel %vm366, %v239, %v311
      %v374 = vsel %vm366, %v242, %v315
      %v375 = vsel %vm366, %v245, %v319
      %v376 = vsel %vm366, %v248, %v323
      %v377 = vsel %vm366, %v251, %v327
      %v378 = vsel %vm366, %v254, %v331
      %v379 = vsel %vm366, %v257, %v335
      %v380 = vsel %vm366, %v260, %v339
      %v381 = vsel %vm366, %v263, %v343
      %v382 = vsel %vm366, %v266, %v347
      %v383 = vrot.slane %v285, 1
      %v384 = vor.u32 %v221, %v383
      %v385 = vrot.slane %v289, 1
      %v386 = vor.u32 %v224, %v385
      %v387 = vrot.slane %v293, 1
      %v388 = vor.u32 %v227, %v387
      %v389 = vrot.slane %v297, 1
      %v390 = vor.u32 %v230, %v389
      %v391 = vrot.slane %v301, 1
      %v392 = vor.u32 %v233, %v391
      %v393 = vrot.slane %v305, 1
      %v394 = vor.u32 %v236, %v393
      %v395 = vrot.slane %v309, 1
      %v396 = vor.u32 %v239, %v395
      %v397 = vrot.slane %v313, 1
      %v398 = vor.u32 %v242, %v397
      %v399 = vrot.slane %v317, 1
      %v400 = vor.u32 %v245, %v399
      %v401 = vrot.slane %v321, 1
      %v402 = vor.u32 %v248, %v401
      %v403 = vrot.slane %v325, 1
      %v404 = vor.u32 %v251, %v403
      %v405 = vrot.slane %v329, 1
      %v406 = vor.u32 %v254, %v405
      %v407 = vrot.slane %v333, 1
      %v408 = vor.u32 %v257, %v407
      %v409 = vrot.slane %v337, 1
      %v410 = vor.u32 %v260, %v409
      %v411 = vrot.slane %v341, 1
      %v412 = vor.u32 %v263, %v411
      %v413 = vrot.slane %v345, 1
      %v414 = vor.u32 %v266, %v413
      %vm447 = vcmask 1047552
      %vm448 = vsmask.f32 7424
      %vm449 = vmand %vm447, %vm448
      %v450 = vsel %vm449, %v384, %v285
      %v451 = vsel %vm449, %v386, %v289
      %v452 = vsel %vm449, %v388, %v293
      %v453 = vsel %vm449, %v390, %v297
      %v454 = vsel %vm449, %v392, %v301
      %v455 = vsel %vm449, %v394, %v305
      %v456 = vsel %vm449, %v396, %v309
      %v457 = vsel %vm449, %v398, %v313
      %v458 = vsel %vm449, %v400, %v317
      %v459 = vsel %vm449, %v402, %v321
      %v460 = vsel %vm449, %v404, %v325
      %v461 = vsel %vm449, %v406, %v329
      %v462 = vsel %vm449, %v408, %v333
      %v463 = vsel %vm449, %v410, %v337
      %v464 = vsel %vm449, %v412, %v341
      %v465 = vsel %vm449, %v414, %v345
      %482 = vrot.lane.b32.xlu0 %v205, 8
      %v483 = vpop.permute.xlu0 %482
      %484 = vrot.lane.b32.xlu0 %v204, 8
      %v485 = vpop.permute.xlu0 %484
      %486 = vrot.lane.b32.xlu0 %v206, 8
      %v487 = vpop.permute.xlu0 %486
      %488 = vrot.lane.b32.xlu0 %v207, 8
      %v489 = vpop.permute.xlu0 %488
      %490 = vrot.lane.b32.xlu0 %v208, 8
      %v491 = vpop.permute.xlu0 %490
      %492 = vrot.lane.b32.xlu0 %v209, 8
      %v493 = vpop.permute.xlu0 %492
      %494 = vrot.lane.b32.xlu0 %v210, 8
      %v495 = vpop.permute.xlu0 %494
      %496 = vrot.lane.b32.xlu0 %v211, 8
      %v497 = vpop.permute.xlu0 %496
      %498 = vrot.lane.b32.xlu0 %v212, 8
      %v499 = vpop.permute.xlu0 %498
      %500 = vrot.lane.b32.xlu0 %v213, 8
      %v501 = vpop.permute.xlu0 %500
      %502 = vrot.lane.b32.xlu0 %v214, 8
      %v503 = vpop.permute.xlu0 %502
      %504 = vrot.lane.b32.xlu0 %v215, 8
      %v505 = vpop.permute.xlu0 %504
      %506 = vrot.lane.b32.xlu0 %v216, 8
      %v507 = vpop.permute.xlu0 %506
      %508 = vrot.lane.b32.xlu0 %v217, 8
      %v509 = vpop.permute.xlu0 %508
      %510 = vrot.lane.b32.xlu0 %v218, 8
      %v511 = vpop.permute.xlu0 %510
      %512 = vrot.lane.b32.xlu0 %v219, 8
      %v513 = vpop.permute.xlu0 %512
      %530 = vrot.lane.b32.xlu0 %v450, 16
      %v531 = vpop.permute.xlu0 %530
      %532 = vrot.lane.b32.xlu0 %v451, 16
      %v533 = vpop.permute.xlu0 %532
      %534 = vrot.lane.b32.xlu0 %v452, 16
      %v535 = vpop.permute.xlu0 %534
      %536 = vrot.lane.b32.xlu0 %v453, 16
      %v537 = vpop.permute.xlu0 %536
      %538 = vrot.lane.b32.xlu0 %v454, 16
      %v539 = vpop.permute.xlu0 %538
      %540 = vrot.lane.b32.xlu0 %v455, 16
      %v541 = vpop.permute.xlu0 %540
      %542 = vrot.lane.b32.xlu0 %v456, 16
      %v543 = vpop.permute.xlu0 %542
      %544 = vrot.lane.b32.xlu0 %v457, 16
      %v545 = vpop.permute.xlu0 %544
      %546 = vrot.lane.b32.xlu0 %v458, 16
      %v547 = vpop.permute.xlu0 %546
      %548 = vrot.lane.b32.xlu0 %v459, 16
      %v549 = vpop.permute.xlu0 %548
      %550 = vrot.lane.b32.xlu0 %v460, 16
      %v551 = vpop.permute.xlu0 %550
      %552 = vrot.lane.b32.xlu0 %v461, 16
      %v553 = vpop.permute.xlu0 %552
      %554 = vrot.lane.b32.xlu0 %v462, 16
      %v555 = vpop.permute.xlu0 %554
      %556 = vrot.lane.b32.xlu0 %v463, 16
      %v557 = vpop.permute.xlu0 %556
      %558 = vrot.lane.b32.xlu0 %v464, 16
      %v559 = vpop.permute.xlu0 %558
      %560 = vrot.lane.b32.xlu0 %v465, 16
      %v561 = vpop.permute.xlu0 %560
      %vm562 = vcmask 64512
      %v565 = vsel %vm562, %v367, %v483
      %v568 = vsel %vm562, %v368, %v485
      %v571 = vsel %vm562, %v369, %v487
      %v574 = vsel %vm562, %v370, %v489
      %v577 = vsel %vm562, %v371, %v491
      %v580 = vsel %vm562, %v372, %v493
      %v583 = vsel %vm562, %v373, %v495
      %v586 = vsel %vm562, %v374, %v497
      %v589 = vsel %vm562, %v375, %v499
      %v592 = vsel %vm562, %v376, %v501
      %v595 = vsel %vm562, %v377, %v503
      %v598 = vsel %vm562, %v378, %v505
      %v601 = vsel %vm562, %v379, %v507
      %v604 = vsel %vm562, %v380, %v509
      %v607 = vsel %vm562, %v381, %v511
      %v610 = vsel %vm562, %v382, %v513
      %vm611 = vcmask 130048
      %v613 = vsel %vm611, %v565, %v531
      %v615 = vsel %vm611, %v568, %v533
      %v617 = vsel %vm611, %v571, %v535
      %v619 = vsel %vm611, %v574, %v537
      %v621 = vsel %vm611, %v577, %v539
      %v623 = vsel %vm611, %v580, %v541
      %v625 = vsel %vm611, %v583, %v543
      %v627 = vsel %vm611, %v586, %v545
      %v629 = vsel %vm611, %v589, %v547
      %v631 = vsel %vm611, %v592, %v549
      %v633 = vsel %vm611, %v595, %v551
      %v635 = vsel %vm611, %v598, %v553
      %v637 = vsel %vm611, %v601, %v555
      %v639 = vsel %vm611, %v604, %v557
      %v641 = vsel %vm611, %v607, %v559
      %v643 = vsel %vm611, %v610, %v561
      %v644 = vld [vmem:[%s1] sm:$0xf]
      %v645 = vld [vmem:[%s1 + $0x4] sm:$0xf]
      %v646 = vld [vmem:[%s1 + $0x8] sm:$0xf]
      %s647 = scalar_lea.vmem %s1, 12
      %v648 = vld [vmem:[%s647] sm:$0xf]
      %v649 = vld [vmem:[%s647 + $0x4] sm:$0xf]
      %v650 = vld [vmem:[%s647 + $0x8] sm:$0xf]
      %v654 = vunpack.c.l.b16 %v648
      %v655 = vunpack.c.l.b16 %v649
      %v656 = vunpack.c.l.b16 %v650
      %v657 = vpack.c.b16 %v655, %v654
      %v658 = vpack.c.b16 %v656, %v656
      %vm660 = vcmask 195584
      %v661 = vsel %vm660, %v615, 0
      %v663 = vsel %vm660, %v613, 0
      %v665 = vsel %vm660, %v617, 0
      %v667 = vsel %vm660, %v619, 0
      %v669 = vsel %vm660, %v621, 0
      %v671 = vsel %vm660, %v623, 0
      %v673 = vsel %vm660, %v625, 0
      %v675 = vsel %vm660, %v627, 0
      %v677 = vsel %vm660, %v629, 0
      %v679 = vsel %vm660, %v631, 0
      %v681 = vsel %vm660, %v633, 0
      %v683 = vsel %vm660, %v635, 0
      %v685 = vsel %vm660, %v637, 0
      %v687 = vsel %vm660, %v639, 0
      %v689 = vsel %vm660, %v641, 0
      %v691 = vsel %vm660, %v643, 0
      %vm693 = vcmask 1043456
      %v695 = vsel %vm693, %v658, 0
      %697 = vmatprep.subr.bf16.mxu0 0
      %698 = vmatpush1.bf16.msra.mxu0 0
      %699 = vmatprep.subr.bf16.mxu0 0
      %700 = vmatpush1.bf16.msra.mxu0 0
      %701 = vmatprep.subr.bf16.mxu0 0
      %702 = vmatpush1.bf16.msra.mxu0 0
      %703 = vmatprep.subr.bf16.mxu0 0
      %704 = vmatpush1.bf16.msra.mxu0 0
      %705 = vmatprep.subr.bf16.mxu0 0
      %706 = vmatpush1.bf16.msra.mxu0 0
      %707 = vmatprep.subr.bf16.mxu0 0
      %708 = vmatpush1.bf16.msra.mxu0 0
      %709 = vmatprep.subr.bf16.mxu0 0
      %710 = vmatpush1.bf16.msra.mxu0 %v695
      %711 = vmatprep.subr.bf16.mxu0 0
      %712 = vmatpush1.bf16.msra.mxu0 %v657
      %713 = vmatprep.subr.bf16.mxu0 0
      %714 = vmatpush2.bf16.msra.mxu0 0
      %715 = vmatprep.subr.bf16.mxu0 0
      %716 = vmatpush2.bf16.msra.mxu0 0
      %717 = vmatprep.subr.bf16.mxu0 0
      %718 = vmatpush2.bf16.msra.mxu0 0
      %719 = vmatprep.subr.bf16.mxu0 0
      %720 = vmatpush2.bf16.msra.mxu0 0
      %721 = vmatprep.subr.bf16.mxu0 0
      %722 = vmatpush2.bf16.msra.mxu0 0
      %723 = vmatprep.subr.bf16.mxu0 0
      %724 = vmatpush2.bf16.msra.mxu0 0
      %725 = vmatprep.subr.bf16.mxu0 0
      %726 = vmatpush2.bf16.msra.mxu0 0
      %727 = vmatprep.subr.bf16.mxu0 0
      %728 = vmatpush2.bf16.msra.mxu0 0
      %729 = vmatprep.mubr.bf16.mxu0 0
      %730 = vmatmul.mubr.bf16.gmra.mxu0 %v661
      %v731 = vpop.f32.mrf.mxu0
      %v732 = vadd.f32 0.0, %v731
      %v733 = vpop.f32.mrf.mxu0
      %v734 = vpop.f32.mrf.mxu0
      %v735 = vadd.f32 0.0, %v734
      %v736 = vpop.f32.mrf.mxu0
      %737 = vmatprep.mubr.bf16.mxu0 0
      %738 = vmatmul.mubr.bf16.gmra.mxu0 %v663
      %v739 = vpop.f32.mrf.mxu0
      %v740 = vadd.f32 0.0, %v739
      %v741 = vpop.f32.mrf.mxu0
      %v742 = vpop.f32.mrf.mxu0
      %v743 = vadd.f32 0.0, %v742
      %v744 = vpop.f32.mrf.mxu0
      %745 = vmatprep.mubr.bf16.mxu0 0
      %746 = vmatmul.mubr.bf16.gmra.mxu0 %v665
      %v747 = vpop.f32.mrf.mxu0
      %v748 = vadd.f32 0.0, %v747
      %v749 = vpop.f32.mrf.mxu0
      %v750 = vpop.f32.mrf.mxu0
      %v751 = vadd.f32 0.0, %v750
      %v752 = vpop.f32.mrf.mxu0
      %753 = vmatprep.mubr.bf16.mxu0 0
      %754 = vmatmul.mubr.bf16.gmra.mxu0 %v667
      %v755 = vpop.f32.mrf.mxu0
      %v756 = vadd.f32 0.0, %v755
      %v757 = vpop.f32.mrf.mxu0
      %v758 = vpop.f32.mrf.mxu0
      %v759 = vadd.f32 0.0, %v758
      %v760 = vpop.f32.mrf.mxu0
      %761 = vmatprep.mubr.bf16.mxu0 0
      %762 = vmatmul.mubr.bf16.gmra.mxu0 %v669
      %v763 = vpop.f32.mrf.mxu0
      %v764 = vadd.f32 0.0, %v763
      %v765 = vpop.f32.mrf.mxu0
      %v766 = vpop.f32.mrf.mxu0
      %v767 = vadd.f32 0.0, %v766
      %v768 = vpop.f32.mrf.mxu0
      %769 = vmatprep.mubr.bf16.mxu0 0
      %770 = vmatmul.mubr.bf16.gmra.mxu0 %v671
      %v771 = vpop.f32.mrf.mxu0
      %v772 = vadd.f32 0.0, %v771
      %v773 = vpop.f32.mrf.mxu0
      %v774 = vpop.f32.mrf.mxu0
      %v775 = vadd.f32 0.0, %v774
      %v776 = vpop.f32.mrf.mxu0
      %777 = vmatprep.mubr.bf16.mxu0 0
      %778 = vmatmul.mubr.bf16.gmra.mxu0 %v673
      %v779 = vpop.f32.mrf.mxu0
      %v780 = vadd.f32 0.0, %v779
      %v781 = vpop.f32.mrf.mxu0
      %v782 = vpop.f32.mrf.mxu0
      %v783 = vadd.f32 0.0, %v782
      %v784 = vpop.f32.mrf.mxu0
      %785 = vmatprep.mubr.bf16.mxu0 0
      %786 = vmatmul.mubr.bf16.gmra.mxu0 %v675
      %v787 = vpop.f32.mrf.mxu0
      %v788 = vadd.f32 0.0, %v787
      %v789 = vpop.f32.mrf.mxu0
      %v790 = vpop.f32.mrf.mxu0
      %v791 = vadd.f32 0.0, %v790
      %v792 = vpop.f32.mrf.mxu0
      %793 = vmatprep.mubr.bf16.mxu0 0
      %794 = vmatmul.mubr.bf16.gmra.mxu0 %v677
      %v795 = vpop.f32.mrf.mxu0
      %v796 = vadd.f32 0.0, %v795
      %v797 = vpop.f32.mrf.mxu0
      %v798 = vpop.f32.mrf.mxu0
      %v799 = vadd.f32 0.0, %v798
      %v800 = vpop.f32.mrf.mxu0
      %801 = vmatprep.mubr.bf16.mxu0 0
      %802 = vmatmul.mubr.bf16.gmra.mxu0 %v679
      %v803 = vpop.f32.mrf.mxu0
      %v804 = vadd.f32 0.0, %v803
      %v805 = vpop.f32.mrf.mxu0
      %v806 = vpop.f32.mrf.mxu0
      %v807 = vadd.f32 0.0, %v806
      %v808 = vpop.f32.mrf.mxu0
      %809 = vmatprep.mubr.bf16.mxu0 0
      %810 = vmatmul.mubr.bf16.gmra.mxu0 %v681
      %v811 = vpop.f32.mrf.mxu0
      %v812 = vadd.f32 0.0, %v811
      %v813 = vpop.f32.mrf.mxu0
      %v814 = vpop.f32.mrf.mxu0
      %v815 = vadd.f32 0.0, %v814
      %v816 = vpop.f32.mrf.mxu0
      %817 = vmatprep.mubr.bf16.mxu0 0
      %818 = vmatmul.mubr.bf16.gmra.mxu0 %v683
      %v819 = vpop.f32.mrf.mxu0
      %v820 = vadd.f32 0.0, %v819
      %v821 = vpop.f32.mrf.mxu0
      %v822 = vpop.f32.mrf.mxu0
      %v823 = vadd.f32 0.0, %v822
      %v824 = vpop.f32.mrf.mxu0
      %825 = vmatprep.mubr.bf16.mxu0 0
      %826 = vmatmul.mubr.bf16.gmra.mxu0 %v685
      %v827 = vpop.f32.mrf.mxu0
      %v828 = vadd.f32 0.0, %v827
      %v829 = vpop.f32.mrf.mxu0
      %v830 = vpop.f32.mrf.mxu0
      %v831 = vadd.f32 0.0, %v830
      %v832 = vpop.f32.mrf.mxu0
      %833 = vmatprep.mubr.bf16.mxu0 0
      %834 = vmatmul.mubr.bf16.gmra.mxu0 %v687
      %v835 = vpop.f32.mrf.mxu0
      %v836 = vadd.f32 0.0, %v835
      %v837 = vpop.f32.mrf.mxu0
      %v838 = vpop.f32.mrf.mxu0
      %v839 = vadd.f32 0.0, %v838
      %v840 = vpop.f32.mrf.mxu0
      %841 = vmatprep.mubr.bf16.mxu0 0
      %842 = vmatmul.mubr.bf16.gmra.mxu0 %v689
      %v843 = vpop.f32.mrf.mxu0
      %v844 = vadd.f32 0.0, %v843
      %v845 = vpop.f32.mrf.mxu0
      %v846 = vpop.f32.mrf.mxu0
      %v847 = vadd.f32 0.0, %v846
      %v848 = vpop.f32.mrf.mxu0
      %849 = vmatprep.mubr.bf16.mxu0 0
      %850 = vmatmul.mubr.bf16.gmra.mxu0 %v691
      %v851 = vpop.f32.mrf.mxu0
      %v852 = vadd.f32 0.0, %v851
      %v853 = vpop.f32.mrf.mxu0
      %v854 = vpop.f32.mrf.mxu0
      %v855 = vadd.f32 0.0, %v854
      %v856 = vpop.f32.mrf.mxu0
      %857 = vdwg.mxu0
      %v861 = vunpack.c.l.b16 %v644
      %v862 = vunpack.c.l.b16 %v645
      %v863 = vunpack.c.l.b16 %v646
      %v864 = vpack.c.b16 %v862, %v861
      %v865 = vpack.c.b16 %v863, %v863
      %v868 = vsel %vm693, %v865, 0
      %870 = vmatprep.subr.bf16.mxu0 0
      %871 = vmatpush1.bf16.msra.mxu0 0
      %872 = vmatprep.subr.bf16.mxu0 0
      %873 = vmatpush1.bf16.msra.mxu0 0
      %874 = vmatprep.subr.bf16.mxu0 0
      %875 = vmatpush1.bf16.msra.mxu0 0
      %876 = vmatprep.subr.bf16.mxu0 0
      %877 = vmatpush1.bf16.msra.mxu0 0
      %878 = vmatprep.subr.bf16.mxu0 0
      %879 = vmatpush1.bf16.msra.mxu0 0
      %880 = vmatprep.subr.bf16.mxu0 0
      %881 = vmatpush1.bf16.msra.mxu0 0
      %882 = vmatprep.subr.bf16.mxu0 0
      %883 = vmatpush1.bf16.msra.mxu0 %v868
      %884 = vmatprep.subr.bf16.mxu0 0
      %885 = vmatpush1.bf16.msra.mxu0 %v864
      %886 = vmatprep.subr.bf16.mxu0 0
      %887 = vmatpush2.bf16.msra.mxu0 0
      %888 = vmatprep.subr.bf16.mxu0 0
      %889 = vmatpush2.bf16.msra.mxu0 0
      %890 = vmatprep.subr.bf16.mxu0 0
      %891 = vmatpush2.bf16.msra.mxu0 0
      %892 = vmatprep.subr.bf16.mxu0 0
      %893 = vmatpush2.bf16.msra.mxu0 0
      %894 = vmatprep.subr.bf16.mxu0 0
      %895 = vmatpush2.bf16.msra.mxu0 0
      %896 = vmatprep.subr.bf16.mxu0 0
      %897 = vmatpush2.bf16.msra.mxu0 0
      %898 = vmatprep.subr.bf16.mxu0 0
      %899 = vmatpush2.bf16.msra.mxu0 0
      %900 = vmatprep.subr.bf16.mxu0 0
      %901 = vmatpush2.bf16.msra.mxu0 0
      %902 = vmatprep.mubr.bf16.mxu0 0
      %903 = vmatmul.mubr.bf16.gmra.mxu0 %v663
      %v904 = vpop.f32.mrf.mxu0
      %v905 = vadd.f32 %v732, %v904
      %v906 = vpop.f32.mrf.mxu0
      %v907 = vpop.f32.mrf.mxu0
      %v908 = vadd.f32 %v735, %v907
      %v909 = vpop.f32.mrf.mxu0
      %910 = vmatprep.mubr.bf16.mxu0 0
      %911 = vmatmul.mubr.bf16.gmra.mxu0 %v661
      %v912 = vpop.f32.mrf.mxu0
      %v913 = vadd.f32 %v740, %v912
      %v914 = vpop.f32.mrf.mxu0
      %v915 = vpop.f32.mrf.mxu0
      %v916 = vadd.f32 %v743, %v915
      %v917 = vpop.f32.mrf.mxu0
      %918 = vmatprep.mubr.bf16.mxu0 0
      %919 = vmatmul.mubr.bf16.gmra.mxu0 %v663
      %v920 = vpop.f32.mrf.mxu0
      %v921 = vadd.f32 %v748, %v920
      %v922 = vpop.f32.mrf.mxu0
      %v923 = vpop.f32.mrf.mxu0
      %v924 = vadd.f32 %v751, %v923
      %v925 = vpop.f32.mrf.mxu0
      %926 = vmatprep.mubr.bf16.mxu0 0
      %927 = vmatmul.mubr.bf16.gmra.mxu0 %v665
      %v928 = vpop.f32.mrf.mxu0
      %v929 = vadd.f32 %v756, %v928
      %v930 = vpop.f32.mrf.mxu0
      %v931 = vpop.f32.mrf.mxu0
      %v932 = vadd.f32 %v759, %v931
      %v933 = vpop.f32.mrf.mxu0
      %934 = vmatprep.mubr.bf16.mxu0 0
      %935 = vmatmul.mubr.bf16.gmra.mxu0 %v667
      %v936 = vpop.f32.mrf.mxu0
      %v937 = vadd.f32 %v764, %v936
      %v938 = vpop.f32.mrf.mxu0
      %v939 = vpop.f32.mrf.mxu0
      %v940 = vadd.f32 %v767, %v939
      %v941 = vpop.f32.mrf.mxu0
      %942 = vmatprep.mubr.bf16.mxu0 0
      %943 = vmatmul.mubr.bf16.gmra.mxu0 %v669
      %v944 = vpop.f32.mrf.mxu0
      %v945 = vadd.f32 %v772, %v944
      %v946 = vpop.f32.mrf.mxu0
      %v947 = vpop.f32.mrf.mxu0
      %v948 = vadd.f32 %v775, %v947
      %v949 = vpop.f32.mrf.mxu0
      %950 = vmatprep.mubr.bf16.mxu0 0
      %951 = vmatmul.mubr.bf16.gmra.mxu0 %v671
      %v952 = vpop.f32.mrf.mxu0
      %v953 = vadd.f32 %v780, %v952
      %v954 = vpop.f32.mrf.mxu0
      %v955 = vpop.f32.mrf.mxu0
      %v956 = vadd.f32 %v783, %v955
      %v957 = vpop.f32.mrf.mxu0
      %958 = vmatprep.mubr.bf16.mxu0 0
      %959 = vmatmul.mubr.bf16.gmra.mxu0 %v673
      %v960 = vpop.f32.mrf.mxu0
      %v961 = vadd.f32 %v788, %v960
      %v962 = vpop.f32.mrf.mxu0
      %v963 = vpop.f32.mrf.mxu0
      %v964 = vadd.f32 %v791, %v963
      %v965 = vpop.f32.mrf.mxu0
      %966 = vmatprep.mubr.bf16.mxu0 0
      %967 = vmatmul.mubr.bf16.gmra.mxu0 %v675
      %v968 = vpop.f32.mrf.mxu0
      %v969 = vadd.f32 %v796, %v968
      %v970 = vpop.f32.mrf.mxu0
      %v971 = vpop.f32.mrf.mxu0
      %v972 = vadd.f32 %v799, %v971
      %v973 = vpop.f32.mrf.mxu0
      %974 = vmatprep.mubr.bf16.mxu0 0
      %975 = vmatmul.mubr.bf16.gmra.mxu0 %v677
      %v976 = vpop.f32.mrf.mxu0
      %v977 = vadd.f32 %v804, %v976
      %v978 = vpop.f32.mrf.mxu0
      %v979 = vpop.f32.mrf.mxu0
      %v980 = vadd.f32 %v807, %v979
      %v981 = vpop.f32.mrf.mxu0
      %982 = vmatprep.mubr.bf16.mxu0 0
      %983 = vmatmul.mubr.bf16.gmra.mxu0 %v679
      %v984 = vpop.f32.mrf.mxu0
      %v985 = vadd.f32 %v812, %v984
      %v986 = vpop.f32.mrf.mxu0
      %v987 = vpop.f32.mrf.mxu0
      %v988 = vadd.f32 %v815, %v987
      %v989 = vpop.f32.mrf.mxu0
      %990 = vmatprep.mubr.bf16.mxu0 0
      %991 = vmatmul.mubr.bf16.gmra.mxu0 %v681
      %v992 = vpop.f32.mrf.mxu0
      %v993 = vadd.f32 %v820, %v992
      %v994 = vpop.f32.mrf.mxu0
      %v995 = vpop.f32.mrf.mxu0
      %v996 = vadd.f32 %v823, %v995
      %v997 = vpop.f32.mrf.mxu0
      %998 = vmatprep.mubr.bf16.mxu0 0
      %999 = vmatmul.mubr.bf16.gmra.mxu0 %v683
      %v1000 = vpop.f32.mrf.mxu0
      %v1001 = vadd.f32 %v828, %v1000
      %v1002 = vpop.f32.mrf.mxu0
      %v1003 = vpop.f32.mrf.mxu0
      %v1004 = vadd.f32 %v831, %v1003
      %v1005 = vpop.f32.mrf.mxu0
      %1006 = vmatprep.mubr.bf16.mxu0 0
      %1007 = vmatmul.mubr.bf16.gmra.mxu0 %v685
      %v1008 = vpop.f32.mrf.mxu0
      %v1009 = vadd.f32 %v836, %v1008
      %v1010 = vpop.f32.mrf.mxu0
      %v1011 = vpop.f32.mrf.mxu0
      %v1012 = vadd.f32 %v839, %v1011
      %v1013 = vpop.f32.mrf.mxu0
      %1014 = vmatprep.mubr.bf16.mxu0 0
      %1015 = vmatmul.mubr.bf16.gmra.mxu0 %v687
      %v1016 = vpop.f32.mrf.mxu0
      %v1017 = vadd.f32 %v844, %v1016
      %v1018 = vpop.f32.mrf.mxu0
      %v1019 = vpop.f32.mrf.mxu0
      %v1020 = vadd.f32 %v847, %v1019
      %v1021 = vpop.f32.mrf.mxu0
      %1022 = vmatprep.mubr.bf16.mxu0 0
      %1023 = vmatmul.mubr.bf16.gmra.mxu0 %v689
      %v1024 = vpop.f32.mrf.mxu0
      %v1025 = vadd.f32 %v852, %v1024
      %v1026 = vpop.f32.mrf.mxu0
      %v1027 = vpop.f32.mrf.mxu0
      %v1028 = vadd.f32 %v855, %v1027
      %v1029 = vpop.f32.mrf.mxu0
      %1030 = vdwg.mxu0
      %s1031 = scalar_lea.vmem %s1, 24
      %v1032 = vld [vmem:[%s1031] sm:$0xf]
      %v1033 = vld [vmem:[%s1031 + $0x4] sm:$0xf]
      %v1034 = vld [vmem:[%s1031 + $0x8] sm:$0xf]
      %v1038 = vunpack.c.l.b16 %v1032
      %v1039 = vunpack.c.l.b16 %v1033
      %v1040 = vunpack.c.l.b16 %v1034
      %v1041 = vpack.c.b16 %v1039, %v1038
      %v1042 = vpack.c.b16 %v1040, %v1040
      %v1045 = vsel %vm693, %v1042, 0
      %1047 = vmatprep.subr.bf16.mxu0 0
      %1048 = vmatpush1.bf16.msra.mxu0 0
      %1049 = vmatprep.subr.bf16.mxu0 0
      %1050 = vmatpush1.bf16.msra.mxu0 0
      %1051 = vmatprep.subr.bf16.mxu0 0
      %1052 = vmatpush1.bf16.msra.mxu0 0
      %1053 = vmatprep.subr.bf16.mxu0 0
      %1054 = vmatpush1.bf16.msra.mxu0 0
      %1055 = vmatprep.subr.bf16.mxu0 0
      %1056 = vmatpush1.bf16.msra.mxu0 0
      %1057 = vmatprep.subr.bf16.mxu0 0
      %1058 = vmatpush1.bf16.msra.mxu0 0
      %1059 = vmatprep.subr.bf16.mxu0 0
      %1060 = vmatpush1.bf16.msra.mxu0 %v1045
      %1061 = vmatprep.subr.bf16.mxu0 0
      %1062 = vmatpush1.bf16.msra.mxu0 %v1041
      %1063 = vmatprep.subr.bf16.mxu0 0
      %1064 = vmatpush2.bf16.msra.mxu0 0
      %1065 = vmatprep.subr.bf16.mxu0 0
      %1066 = vmatpush2.bf16.msra.mxu0 0
      %1067 = vmatprep.subr.bf16.mxu0 0
      %1068 = vmatpush2.bf16.msra.mxu0 0
      %1069 = vmatprep.subr.bf16.mxu0 0
      %1070 = vmatpush2.bf16.msra.mxu0 0
      %1071 = vmatprep.subr.bf16.mxu0 0
      %1072 = vmatpush2.bf16.msra.mxu0 0
      %1073 = vmatprep.subr.bf16.mxu0 0
      %1074 = vmatpush2.bf16.msra.mxu0 0
      %1075 = vmatprep.subr.bf16.mxu0 0
      %1076 = vmatpush2.bf16.msra.mxu0 0
      %1077 = vmatprep.subr.bf16.mxu0 0
      %1078 = vmatpush2.bf16.msra.mxu0 0
      %1079 = vmatprep.mubr.bf16.mxu0 0
      %1080 = vmatmul.mubr.bf16.gmra.mxu0 %v663
      %v1081 = vpop.f32.mrf.mxu0
      %v1082 = vadd.f32 0.0, %v1081
      %v1083 = vpop.f32.mrf.mxu0
      %v1084 = vpop.f32.mrf.mxu0
      %v1085 = vadd.f32 0.0, %v1084
      %v1086 = vpop.f32.mrf.mxu0
      %1087 = vmatprep.mubr.bf16.mxu0 0
      %1088 = vmatmul.mubr.bf16.gmra.mxu0 %v665
      %v1089 = vpop.f32.mrf.mxu0
      %v1090 = vadd.f32 0.0, %v1089
      %v1091 = vpop.f32.mrf.mxu0
      %v1092 = vpop.f32.mrf.mxu0
      %v1093 = vadd.f32 0.0, %v1092
      %v1094 = vpop.f32.mrf.mxu0
      %1095 = vmatprep.mubr.bf16.mxu0 0
      %1096 = vmatmul.mubr.bf16.gmra.mxu0 %v667
      %v1097 = vpop.f32.mrf.mxu0
      %v1098 = vadd.f32 0.0, %v1097
      %v1099 = vpop.f32.mrf.mxu0
      %v1100 = vpop.f32.mrf.mxu0
      %v1101 = vadd.f32 0.0, %v1100
      %v1102 = vpop.f32.mrf.mxu0
      %1103 = vmatprep.mubr.bf16.mxu0 0
      %1104 = vmatmul.mubr.bf16.gmra.mxu0 %v669
      %v1105 = vpop.f32.mrf.mxu0
      %v1106 = vadd.f32 0.0, %v1105
      %v1107 = vpop.f32.mrf.mxu0
      %v1108 = vpop.f32.mrf.mxu0
      %v1109 = vadd.f32 0.0, %v1108
      %v1110 = vpop.f32.mrf.mxu0
      %1111 = vmatprep.mubr.bf16.mxu0 0
      %1112 = vmatmul.mubr.bf16.gmra.mxu0 %v671
      %v1113 = vpop.f32.mrf.mxu0
      %v1114 = vadd.f32 0.0, %v1113
      %v1115 = vpop.f32.mrf.mxu0
      %v1116 = vpop.f32.mrf.mxu0
      %v1117 = vadd.f32 0.0, %v1116
      %v1118 = vpop.f32.mrf.mxu0
      %1119 = vmatprep.mubr.bf16.mxu0 0
      %1120 = vmatmul.mubr.bf16.gmra.mxu0 %v673
      %v1121 = vpop.f32.mrf.mxu0
      %v1122 = vadd.f32 0.0, %v1121
      %v1123 = vpop.f32.mrf.mxu0
      %v1124 = vpop.f32.mrf.mxu0
      %v1125 = vadd.f32 0.0, %v1124
      %v1126 = vpop.f32.mrf.mxu0
      %1127 = vmatprep.mubr.bf16.mxu0 0
      %1128 = vmatmul.mubr.bf16.gmra.mxu0 %v675
      %v1129 = vpop.f32.mrf.mxu0
      %v1130 = vadd.f32 0.0, %v1129
      %v1131 = vpop.f32.mrf.mxu0
      %v1132 = vpop.f32.mrf.mxu0
      %v1133 = vadd.f32 0.0, %v1132
      %v1134 = vpop.f32.mrf.mxu0
      %1135 = vmatprep.mubr.bf16.mxu0 0
      %1136 = vmatmul.mubr.bf16.gmra.mxu0 %v677
      %v1137 = vpop.f32.mrf.mxu0
      %v1138 = vadd.f32 0.0, %v1137
      %v1139 = vpop.f32.mrf.mxu0
      %v1140 = vpop.f32.mrf.mxu0
      %v1141 = vadd.f32 0.0, %v1140
      %v1142 = vpop.f32.mrf.mxu0
      %1143 = vmatprep.mubr.bf16.mxu0 0
      %1144 = vmatmul.mubr.bf16.gmra.mxu0 %v679
      %v1145 = vpop.f32.mrf.mxu0
      %v1146 = vadd.f32 0.0, %v1145
      %v1147 = vpop.f32.mrf.mxu0
      %v1148 = vpop.f32.mrf.mxu0
      %v1149 = vadd.f32 0.0, %v1148
      %v1150 = vpop.f32.mrf.mxu0
      %1151 = vmatprep.mubr.bf16.mxu0 0
      %1152 = vmatmul.mubr.bf16.gmra.mxu0 %v681
      %v1153 = vpop.f32.mrf.mxu0
      %v1154 = vadd.f32 0.0, %v1153
      %v1155 = vpop.f32.mrf.mxu0
      %v1156 = vpop.f32.mrf.mxu0
      %v1157 = vadd.f32 0.0, %v1156
      %v1158 = vpop.f32.mrf.mxu0
      %1159 = vmatprep.mubr.bf16.mxu0 0
      %1160 = vmatmul.mubr.bf16.gmra.mxu0 %v683
      %v1161 = vpop.f32.mrf.mxu0
      %v1162 = vadd.f32 0.0, %v1161
      %v1163 = vpop.f32.mrf.mxu0
      %v1164 = vpop.f32.mrf.mxu0
      %v1165 = vadd.f32 0.0, %v1164
      %v1166 = vpop.f32.mrf.mxu0
      %1167 = vmatprep.mubr.bf16.mxu0 0
      %1168 = vmatmul.mubr.bf16.gmra.mxu0 %v685
      %v1169 = vpop.f32.mrf.mxu0
      %v1170 = vadd.f32 0.0, %v1169
      %v1171 = vpop.f32.mrf.mxu0
      %v1172 = vpop.f32.mrf.mxu0
      %v1173 = vadd.f32 0.0, %v1172
      %v1174 = vpop.f32.mrf.mxu0
      %1175 = vmatprep.mubr.bf16.mxu0 0
      %1176 = vmatmul.mubr.bf16.gmra.mxu0 %v687
      %v1177 = vpop.f32.mrf.mxu0
      %v1178 = vadd.f32 0.0, %v1177
      %v1179 = vpop.f32.mrf.mxu0
      %v1180 = vpop.f32.mrf.mxu0
      %v1181 = vadd.f32 0.0, %v1180
      %v1182 = vpop.f32.mrf.mxu0
      %1183 = vmatprep.mubr.bf16.mxu0 0
      %1184 = vmatmul.mubr.bf16.gmra.mxu0 %v689
      %v1185 = vpop.f32.mrf.mxu0
      %v1186 = vadd.f32 0.0, %v1185
      %v1187 = vpop.f32.mrf.mxu0
      %v1188 = vpop.f32.mrf.mxu0
      %v1189 = vadd.f32 0.0, %v1188
      %v1190 = vpop.f32.mrf.mxu0
      %1191 = vmatprep.mubr.bf16.mxu0 0
      %1192 = vmatmul.mubr.bf16.gmra.mxu0 %v691
      %v1193 = vpop.f32.mrf.mxu0
      %v1194 = vadd.f32 0.0, %v1193
      %v1195 = vpop.f32.mrf.mxu0
      %v1196 = vpop.f32.mrf.mxu0
      %v1197 = vadd.f32 0.0, %v1196
      %v1198 = vpop.f32.mrf.mxu0
      %1199 = vmatprep.mubr.bf16.mxu0 0
      %1200 = vmatmul.mubr.bf16.gmra.mxu0 %v689
      %v1201 = vpop.f32.mrf.mxu0
      %v1202 = vadd.f32 0.0, %v1201
      %v1203 = vpop.f32.mrf.mxu0
      %v1204 = vpop.f32.mrf.mxu0
      %v1205 = vadd.f32 0.0, %v1204
      %v1206 = vpop.f32.mrf.mxu0
      %1207 = vdwg.mxu0
      %v1208 = vadd.f32 %v905, %v1082
      %v1209 = vadd.f32 %v908, %v1085
      %v1210 = vadd.f32 %v913, %v1090
      %v1211 = vadd.f32 %v916, %v1093
      %v1212 = vadd.f32 %v921, %v1098
      %v1213 = vadd.f32 %v924, %v1101
      %v1214 = vadd.f32 %v929, %v1106
      %v1215 = vadd.f32 %v932, %v1109
      %v1216 = vadd.f32 %v937, %v1114
      %v1217 = vadd.f32 %v940, %v1117
      %v1218 = vadd.f32 %v945, %v1122
      %v1219 = vadd.f32 %v948, %v1125
      %v1220 = vadd.f32 %v953, %v1130
      %v1221 = vadd.f32 %v956, %v1133
      %v1222 = vadd.f32 %v961, %v1138
      %v1223 = vadd.f32 %v964, %v1141
      %v1224 = vadd.f32 %v969, %v1146
      %v1225 = vadd.f32 %v972, %v1149
      %v1226 = vadd.f32 %v977, %v1154
      %v1227 = vadd.f32 %v980, %v1157
      %v1228 = vadd.f32 %v985, %v1162
      %v1229 = vadd.f32 %v988, %v1165
      %v1230 = vadd.f32 %v993, %v1170
      %v1231 = vadd.f32 %v996, %v1173
      %v1232 = vadd.f32 %v1001, %v1178
      %v1233 = vadd.f32 %v1004, %v1181
      %v1234 = vadd.f32 %v1009, %v1186
      %v1235 = vadd.f32 %v1012, %v1189
      %v1236 = vadd.f32 %v1017, %v1194
      %v1237 = vadd.f32 %v1020, %v1197
      %v1238 = vadd.f32 %v1025, %v1202
      %v1239 = vadd.f32 %v1028, %v1205
      %v1240 = vld [vmem:[%s2] sm:$0x1]
      %v1242 = vlaneseq
      %v1243 = vshrl.u32 %v1242, 7
      %v1244 = vsub.s32 0, %v1243
      %v1245 = vrot.slane %v1240, %v1244
      %v1247 = vadd.f32 %v1208, %v1245
      %v1248 = vadd.f32 %v1209, %v1245
      %v1249 = vadd.f32 %v1210, %v1245
      %v1250 = vadd.f32 %v1211, %v1245
      %v1251 = vadd.f32 %v1212, %v1245
      %v1252 = vadd.f32 %v1213, %v1245
      %v1253 = vadd.f32 %v1214, %v1245
      %v1254 = vadd.f32 %v1215, %v1245
      %v1255 = vadd.f32 %v1216, %v1245
      %v1256 = vadd.f32 %v1217, %v1245
      %v1257 = vadd.f32 %v1218, %v1245
      %v1258 = vadd.f32 %v1219, %v1245
      %v1259 = vadd.f32 %v1220, %v1245
      %v1260 = vadd.f32 %v1221, %v1245
      %v1261 = vadd.f32 %v1222, %v1245
      %v1262 = vadd.f32 %v1223, %v1245
      %v1263 = vadd.f32 %v1224, %v1245
      %v1264 = vadd.f32 %v1225, %v1245
      %v1265 = vadd.f32 %v1226, %v1245
      %v1266 = vadd.f32 %v1227, %v1245
      %v1267 = vadd.f32 %v1228, %v1245
      %v1268 = vadd.f32 %v1229, %v1245
      %v1269 = vadd.f32 %v1230, %v1245
      %v1270 = vadd.f32 %v1231, %v1245
      %v1271 = vadd.f32 %v1232, %v1245
      %v1272 = vadd.f32 %v1233, %v1245
      %v1273 = vadd.f32 %v1234, %v1245
      %v1274 = vadd.f32 %v1235, %v1245
      %v1275 = vadd.f32 %v1236, %v1245
      %v1276 = vadd.f32 %v1237, %v1245
      %v1277 = vadd.f32 %v1238, %v1245
      %v1278 = vadd.f32 %v1239, %v1245
      %v1279 = vmax.f32 %v1247, 0.0
      %v1280 = vmax.f32 %v1248, 0.0
      %v1281 = vmax.f32 %v1249, 0.0
      %v1282 = vmax.f32 %v1250, 0.0
      %v1283 = vmax.f32 %v1251, 0.0
      %v1284 = vmax.f32 %v1252, 0.0
      %v1285 = vmax.f32 %v1253, 0.0
      %v1286 = vmax.f32 %v1254, 0.0
      %v1287 = vmax.f32 %v1255, 0.0
      %v1288 = vmax.f32 %v1256, 0.0
      %v1289 = vmax.f32 %v1257, 0.0
      %v1290 = vmax.f32 %v1258, 0.0
      %v1291 = vmax.f32 %v1259, 0.0
      %v1292 = vmax.f32 %v1260, 0.0
      %v1293 = vmax.f32 %v1261, 0.0
      %v1294 = vmax.f32 %v1262, 0.0
      %v1295 = vmax.f32 %v1263, 0.0
      %v1296 = vmax.f32 %v1264, 0.0
      %v1297 = vmax.f32 %v1265, 0.0
      %v1298 = vmax.f32 %v1266, 0.0
      %v1299 = vmax.f32 %v1267, 0.0
      %v1300 = vmax.f32 %v1268, 0.0
      %v1301 = vmax.f32 %v1269, 0.0
      %v1302 = vmax.f32 %v1270, 0.0
      %v1303 = vmax.f32 %v1271, 0.0
      %v1304 = vmax.f32 %v1272, 0.0
      %v1305 = vmax.f32 %v1273, 0.0
      %v1306 = vmax.f32 %v1274, 0.0
      %v1307 = vmax.f32 %v1275, 0.0
      %v1308 = vmax.f32 %v1276, 0.0
      %v1309 = vmax.f32 %v1277, 0.0
      %v1310 = vmax.f32 %v1278, 0.0
      %1311 = vst.msk [vmem:[%s170] sm:$0xff] %vm562, %v1279
      %1312 = vst.msk [vmem:[%s170 + $0x8] sm:$0xff] %vm562, %v1280
      %1313 = vst.msk [vmem:[%s170 + $0x10] sm:$0xff] %vm562, %v1281
      %1314 = vst.msk [vmem:[%s170 + $0x18] sm:$0xff] %vm562, %v1282
      %1315 = vst.msk [vmem:[%s170 + $0x20] sm:$0xff] %vm562, %v1283
      %1316 = vst.msk [vmem:[%s170 + $0x28] sm:$0xff] %vm562, %v1284
      %1317 = vst.msk [vmem:[%s170 + $0x30] sm:$0xff] %vm562, %v1285
      %1318 = vst.msk [vmem:[%s170 + $0x38] sm:$0xff] %vm562, %v1286
      %1319 = vst.msk [vmem:[%s170 + $0x40] sm:$0xff] %vm562, %v1287
      %1320 = vst.msk [vmem:[%s170 + $0x48] sm:$0xff] %vm562, %v1288
      %1321 = vst.msk [vmem:[%s170 + $0x50] sm:$0xff] %vm562, %v1289
      %1322 = vst.msk [vmem:[%s170 + $0x58] sm:$0xff] %vm562, %v1290
      %1323 = vst.msk [vmem:[%s170 + $0x60] sm:$0xff] %vm562, %v1291
      %1324 = vst.msk [vmem:[%s170 + $0x68] sm:$0xff] %vm562, %v1292
      %1325 = vst.msk [vmem:[%s170 + $0x70] sm:$0xff] %vm562, %v1293
      %1326 = vst.msk [vmem:[%s170 + $0x78] sm:$0xff] %vm562, %v1294
      %1327 = vst.msk [vmem:[%s170 + $0x80] sm:$0xff] %vm562, %v1295
      %1328 = vst.msk [vmem:[%s170 + $0x88] sm:$0xff] %vm562, %v1296
      %1329 = vst.msk [vmem:[%s170 + $0x90] sm:$0xff] %vm562, %v1297
      %1330 = vst.msk [vmem:[%s170 + $0x98] sm:$0xff] %vm562, %v1298
      %1331 = vst.msk [vmem:[%s170 + $0xa0] sm:$0xff] %vm562, %v1299
      %1332 = vst.msk [vmem:[%s170 + $0xa8] sm:$0xff] %vm562, %v1300
      %1333 = vst.msk [vmem:[%s170 + $0xb0] sm:$0xff] %vm562, %v1301
      %1334 = vst.msk [vmem:[%s170 + $0xb8] sm:$0xff] %vm562, %v1302
      %1335 = vst.msk [vmem:[%s170 + $0xc0] sm:$0xff] %vm562, %v1303
      %1336 = vst.msk [vmem:[%s170 + $0xc8] sm:$0xff] %vm562, %v1304
      %1337 = vst.msk [vmem:[%s170 + $0xd0] sm:$0xff] %vm562, %v1305
      %1338 = vst.msk [vmem:[%s170 + $0xd8] sm:$0xff] %vm562, %v1306
      %1339 = vst.msk [vmem:[%s170 + $0xe0] sm:$0xff] %vm562, %v1307
      %1340 = vst.msk [vmem:[%s170 + $0xe8] sm:$0xff] %vm562, %v1308
      %1341 = vst.msk [vmem:[%s170 + $0xf0] sm:$0xff] %vm562, %v1309
      %1342 = vst.msk [vmem:[%s170 + $0xf8] sm:$0xff] %vm562, %v1310
      %p1343 = scmp.lt.s32.totalorder %s14, 1
      %s1344 = scalar_select %p1343, %s14, 1
      %s1345 = smul.addr %s1344, 32
      %s1346 = smul.addr %s1345, 8
      %s1347 = scalar_lea.vmem %s3, %s1346
      // Predicated region
      $region33: #{_lambda_.4} parent=31 // pred_check
        %p1348 = pneg %p100
      $region34: #{_lambda_.4} parent=31 // pred_check_branch
        %1350 = sbr.rel (%p1348) target = $region36
      $region35: #{_lambda_.4} parent=31 // pred_region
        _
      $region36: #{_lambda_.4} parent=31 // pred_fallthru
        _
    $region32: #{_lambda_.4} parent=5 // pred_fallthru
      _
    %p1351 = scmp.le.s32.totalorder 2, %s9
    // Predicated region
    $region37: #{_lambda_.4} parent=5 // pred_check
      %p1352 = pneg %p1351
    $region38: #{_lambda_.4} parent=5 // pred_check_branch
      %1354 = sbr.rel (%p1352) target = $region40
    $region39: #{_lambda_.4} parent=5 // pred_region
      %s1355 = ssub.s32 %s9, 2
      // Predicated region
      $region41: #{_lambda_.4} parent=39 // pred_check
        %p1356 = pneg %p106
      $region42: #{_lambda_.4} parent=39 // pred_check_branch
        %1358 = sbr.rel (%p1356) target = $region44
      $region43: #{_lambda_.4} parent=39 // pred_region
        %p1359 = scmp.lt.s32.totalorder %s15, 1
        %s1360 = scalar_select %p1359, %s15, 1
        %s1361 = smul.addr %s1360, 32
        %s1362 = smul.addr %s1361, 8
        %s1363 = scalar_lea.vmem %s3, %s1362
      $region44: #{_lambda_.4} parent=39 // pred_fallthru
        _
    $region40: #{_lambda_.4} parent=5 // pred_fallthru
      _
  $region6: #{_lambda_.4} parent=0 // loop_footer
    %s13 = sadd.s32 1, %s9
  $region7: #{_lambda_.4} parent=0 // loop_footer_branch
    %8 = sbr.rel target = $region3
  $region8: #{_lambda_.4} parent=0 // loop_exit
    _

// kernel: _lambda_.5
$region0: #{_lambda_.5}
  #allocation0 [shape = 'u32[]', space=smem, size = 0x4, offset = 0x4, fixed_abs, tag = 'smem constant byte address 0x4 - core index']
  #allocation1 [shape = 'u32[144,128]{1,0:T(1,128)}', space=vmem, size = 0x12000, scoped, tag = 'internal scratch']
  %s0 = inlined_call_operand.vmem [shape: f32[2,16,16,8], index: 0, kind: input, shape index: {}]
  %s1 = inlined_call_operand.vmem [shape: f32[2,16,16,8], index: 1, kind: input, shape index: {}]
  %s2 = inlined_call_operand.vmem [shape: f32[2,16,16,8], index: 2, kind: input, shape index: {}]
  %s3 = inlined_call_operand.vmem [shape: bf16[3,24,3], index: 3, kind: input, shape index: {}]
  %s4 = inlined_call_operand.vmem [shape: f32[1,1,3], index: 4, kind: input, shape index: {}]
  %s5 = inlined_call_operand.vmem [shape: f32[2,16,16,3], index: 5, kind: output, shape index: {}]
  %s6 = sld [smem:[#allocation0]]
  $region53: #{_lambda_.5} parent=0
    _
  %s8 = ssub.s32 1, %s6
  %s9 = scalar_select 0, %s8, %s6
  loop: start=0, step=1, limit=4
  $region2: #{_lambda_.5} parent=0 // loop_pre_header
    _
  $region3: #{_lambda_.5} parent=0 // loop_header
    %s11 = sphi 0, %s15
    %p12 = scmp.ge.s32.totalorder %s11, 4
    %s21 = sphi 0, %s23
    %s24 = sphi 0, %s21
    %s25 = sphi 0, %s24
    %s41 = sphi 0, %s25
    %s47 = sphi 0, %s49
    %s50 = sphi 0, %s47
    %s51 = sphi 0, %s50
    %s67 = sphi 0, %s51
    %s73 = sphi 0, %s75
    %s76 = sphi 0, %s73
    %s77 = sphi 0, %s76
    %s93 = sphi 0, %s77
    %s97 = sphi 0, %s97
    %s99 = sphi 0, %s97
    %s100 = sphi 0, %s99
    %s114 = sphi 0, %s100
    %s118 = sphi 0, %s118
    %s120 = sphi 0, %s118
    %s121 = sphi 0, %s120
    %s135 = sphi 0, %s121
    %s141 = sphi 0, %s143
    %s144 = sphi 0, %s141
    %s145 = sphi 0, %s144
    %s161 = sphi 0, %s145
  $region4: #{_lambda_.5} parent=0 // loop_header_branch
    %14 = sbr.rel (%p12) target = $region8
  $region5: #{_lambda_.5} parent=0 // loop_body
    %s16 = ssub.s32 %s11, 1
    %s17 = ssub.s32 %s11, 2
    %s18 = sadd.s32 %s11, 1
    %s19 = ssub.s32 %s11, %s18
    %p20 = scmp.eq.s32.totalorder %s19, 0
    %s22 = sadd.s32 %s21, 1
    %s23 = scalar_select %p20, %s21, %s22
    %p26 = pneg %p20
    %p27 = scmp.eq.s32.totalorder %s11, 1
    %p28 = por %p26, %p27
    %p29 = scmp.ne.s32.totalorder %s21, %s24
    %p30 = scmp.eq.s32.totalorder %s11, 0
    %p31 = por %p29, %p30
    %p32 = scmp.ne.s32.totalorder %s21, %s24
    %p33 = scmp.eq.s32.totalorder %s16, 1
    %p34 = por %p32, %p33
    %p35 = scmp.ne.s32.totalorder %s24, %s25
    %p36 = scmp.eq.s32.totalorder %s16, 0
    %p37 = por %p35, %p36
    %p38 = scmp.ne.s32.totalorder %s24, %s25
    %p39 = scmp.eq.s32.totalorder %s17, 1
    %p40 = por %p38, %p39
    %p42 = scmp.ne.s32.totalorder %s25, %s41
    %p43 = scmp.eq.s32.totalorder %s17, 0
    %p44 = por %p42, %p43
    %s45 = ssub.s32 %s11, %s18
    %p46 = scmp.eq.s32.totalorder %s45, 0
    %s48 = sadd.s32 %s47, 1
    %s49 = scalar_select %p46, %s47, %s48
    %p52 = pneg %p46
    %p53 = scmp.eq.s32.totalorder %s11, 1
    %p54 = por %p52, %p53
    %p55 = scmp.ne.s32.totalorder %s47, %s50
    %p56 = scmp.eq.s32.totalorder %s11, 0
    %p57 = por %p55, %p56
    %p58 = scmp.ne.s32.totalorder %s47, %s50
    %p59 = scmp.eq.s32.totalorder %s16, 1
    %p60 = por %p58, %p59
    %p61 = scmp.ne.s32.totalorder %s50, %s51
    %p62 = scmp.eq.s32.totalorder %s16, 0
    %p63 = por %p61, %p62
    %p64 = scmp.ne.s32.totalorder %s50, %s51
    %p65 = scmp.eq.s32.totalorder %s17, 1
    %p66 = por %p64, %p65
    %p68 = scmp.ne.s32.totalorder %s51, %s67
    %p69 = scmp.eq.s32.totalorder %s17, 0
    %p70 = por %p68, %p69
    %s71 = ssub.s32 %s11, %s18
    %p72 = scmp.eq.s32.totalorder %s71, 0
    %s74 = sadd.s32 %s73, 1
    %s75 = scalar_select %p72, %s73, %s74
    %p78 = pneg %p72
    %p79 = scmp.eq.s32.totalorder %s11, 1
    %p80 = por %p78, %p79
    %p81 = scmp.ne.s32.totalorder %s73, %s76
    %p82 = scmp.eq.s32.totalorder %s11, 0
    %p83 = por %p81, %p82
    %p84 = scmp.ne.s32.totalorder %s73, %s76
    %p85 = scmp.eq.s32.totalorder %s16, 1
    %p86 = por %p84, %p85
    %p87 = scmp.ne.s32.totalorder %s76, %s77
    %p88 = scmp.eq.s32.totalorder %s16, 0
    %p89 = por %p87, %p88
    %p90 = scmp.ne.s32.totalorder %s76, %s77
    %p91 = scmp.eq.s32.totalorder %s17, 1
    %p92 = por %p90, %p91
    %p94 = scmp.ne.s32.totalorder %s77, %s93
    %p95 = scmp.eq.s32.totalorder %s17, 0
    %p96 = por %p94, %p95
    %s98 = sadd.s32 %s97, 1
    %p101 = scmp.eq.s32.totalorder %s11, 1
    %p102 = scmp.ne.s32.totalorder %s97, %s99
    %p103 = scmp.eq.s32.totalorder %s11, 0
    %p104 = por %p102, %p103
    %p105 = scmp.ne.s32.totalorder %s97, %s99
    %p106 = scmp.eq.s32.totalorder %s16, 1
    %p107 = por %p105, %p106
    %p108 = scmp.ne.s32.totalorder %s99, %s100
    %p109 = scmp.eq.s32.totalorder %s16, 0
    %p110 = por %p108, %p109
    %p111 = scmp.ne.s32.totalorder %s99, %s100
    %p112 = scmp.eq.s32.totalorder %s17, 1
    %p113 = por %p111, %p112
    %p115 = scmp.ne.s32.totalorder %s100, %s114
    %p116 = scmp.eq.s32.totalorder %s17, 0
    %p117 = por %p115, %p116
    %s119 = sadd.s32 %s118, 1
    %p122 = scmp.eq.s32.totalorder %s11, 1
    %p123 = scmp.ne.s32.totalorder %s118, %s120
    %p124 = scmp.eq.s32.totalorder %s11, 0
    %p125 = por %p123, %p124
    %p126 = scmp.ne.s32.totalorder %s118, %s120
    %p127 = scmp.eq.s32.totalorder %s16, 1
    %p128 = por %p126, %p127
    %p129 = scmp.ne.s32.totalorder %s120, %s121
    %p130 = scmp.eq.s32.totalorder %s16, 0
    %p131 = por %p129, %p130
    %p132 = scmp.ne.s32.totalorder %s120, %s121
    %p133 = scmp.eq.s32.totalorder %s17, 1
    %p134 = por %p132, %p133
    %p136 = scmp.ne.s32.totalorder %s121, %s135
    %p137 = scmp.eq.s32.totalorder %s17, 0
    %p138 = por %p136, %p137
    %s139 = ssub.s32 %s11, %s18
    %p140 = scmp.eq.s32.totalorder %s139, 0
    %s142 = sadd.s32 %s141, 1
    %s143 = scalar_select %p140, %s141, %s142
    %p146 = pneg %p140
    %p147 = scmp.eq.s32.totalorder %s11, 1
    %p148 = por %p146, %p147
    %p149 = scmp.ne.s32.totalorder %s141, %s144
    %p150 = scmp.eq.s32.totalorder %s11, 0
    %p151 = por %p149, %p150
    %p152 = scmp.ne.s32.totalorder %s141, %s144
    %p153 = scmp.eq.s32.totalorder %s16, 1
    %p154 = por %p152, %p153
    %p155 = scmp.ne.s32.totalorder %s144, %s145
    %p156 = scmp.eq.s32.totalorder %s16, 0
    %p157 = por %p155, %p156
    %p158 = scmp.ne.s32.totalorder %s144, %s145
    %p159 = scmp.eq.s32.totalorder %s17, 1
    %p160 = por %p158, %p159
    %p162 = scmp.ne.s32.totalorder %s145, %s161
    %p163 = scmp.eq.s32.totalorder %s17, 0
    %p164 = por %p162, %p163
    %p165 = scmp.le.s32.totalorder 1, %s11
    %p166 = scmp.lt.s32.totalorder %s11, 3
    %p167 = pnand %p165, %p166
    %p168 = pneg %p167
    // Predicated region
    $region9: #{_lambda_.5} parent=5 // pred_check
      _
    $region10: #{_lambda_.5} parent=5 // pred_check_branch
      %170 = sbr.rel (%p167) target = $region12
    $region11: #{_lambda_.5} parent=5 // pred_region
      %s171 = ssub.s32 %s11, 1
      // Predicated region
      $region13: #{_lambda_.5} parent=11 // pred_check
        %p172 = pneg %p110
      $region14: #{_lambda_.5} parent=11 // pred_check_branch
        %174 = sbr.rel (%p172) target = $region16
      $region15: #{_lambda_.5} parent=11 // pred_region
        _
      $region16: #{_lambda_.5} parent=11 // pred_fallthru
        _
      // Predicated region
      $region17: #{_lambda_.5} parent=11 // pred_check
        %p175 = pneg %p131
      $region18: #{_lambda_.5} parent=11 // pred_check_branch
        %177 = sbr.rel (%p175) target = $region20
      $region19: #{_lambda_.5} parent=11 // pred_region
        _
      $region20: #{_lambda_.5} parent=11 // pred_fallthru
        _
    $region12: #{_lambda_.5} parent=5 // pred_fallthru
      _
    %p178 = scmp.lt.s32.totalorder %s11, 2
    // Predicated region
    $region21: #{_lambda_.5} parent=5 // pred_check
      %p179 = pneg %p178
    $region22: #{_lambda_.5} parent=5 // pred_check_branch
      %181 = sbr.rel (%p179) target = $region24
    $region23: #{_lambda_.5} parent=5 // pred_region
      // Predicated region
      $region25: #{_lambda_.5} parent=23 // pred_check
        %p182 = pneg %p31
      $region26: #{_lambda_.5} parent=23 // pred_check_branch
        %184 = sbr.rel (%p182) target = $region28
      $region27: #{_lambda_.5} parent=23 // pred_region
        %p185 = scmp.lt.s32.totalorder %s11, 1
        %s186 = scalar_select %p185, %s11, 1
        %s187 = smul.addr %s186, 32
        %s188 = smul.addr %s187, 8
        %s189 = scalar_lea.vmem %s0, %s188
      $region28: #{_lambda_.5} parent=23 // pred_fallthru
        _
      // Predicated region
      $region29: #{_lambda_.5} parent=23 // pred_check
        %p190 = pneg %p57
      $region30: #{_lambda_.5} parent=23 // pred_check_branch
        %192 = sbr.rel (%p190) target = $region32
      $region31: #{_lambda_.5} parent=23 // pred_region
        %p193 = scmp.lt.s32.totalorder %s11, 1
        %s194 = scalar_select %p193, %s11, 1
        %s195 = smul.addr %s194, 32
        %s196 = smul.addr %s195, 8
        %s197 = scalar_lea.vmem %s1, %s196
      $region32: #{_lambda_.5} parent=23 // pred_fallthru
        _
      // Predicated region
      $region33: #{_lambda_.5} parent=23 // pred_check
        %p198 = pneg %p83
      $region34: #{_lambda_.5} parent=23 // pred_check_branch
        %200 = sbr.rel (%p198) target = $region36
      $region35: #{_lambda_.5} parent=23 // pred_region
        %p201 = scmp.lt.s32.totalorder %s11, 1
        %s202 = scalar_select %p201, %s11, 1
        %s203 = smul.addr %s202, 32
        %s204 = smul.addr %s203, 8
        %s205 = scalar_lea.vmem %s2, %s204
      $region36: #{_lambda_.5} parent=23 // pred_fallthru
        _
    $region24: #{_lambda_.5} parent=5 // pred_fallthru
      _
    %p206 = scmp.le.s32.totalorder 1, %s11
    %p207 = scmp.lt.s32.totalorder %s11, 3
    %p208 = pnand %p206, %p207
    %p209 = pneg %p208
    // Predicated region
    $region37: #{_lambda_.5} parent=5 // pred_check
      _
    $region38: #{_lambda_.5} parent=5 // pred_check_branch
      %211 = sbr.rel (%p208) target = $region40
    $region39: #{_lambda_.5} parent=5 // pred_region
      %s212 = ssub.s32 %s11, 1
      %p213 = scmp.lt.s32.totalorder %s16, 1
      %s214 = scalar_select %p213, %s16, 1
      %s215 = smul.addr %s214, 32
      %s216 = smul.addr %s215, 8
      %s217 = scalar_lea.vmem %s0, %s216
      %p218 = pneg %p37
      %p219 = pneg %p34
      %p220 = scmp.lt.s32.totalorder %s16, 1
      %s221 = scalar_select %p220, %s16, 1
      %s222 = smul.addr %s221, 32
      %s223 = smul.addr %s222, 8
      %s224 = scalar_lea.vmem %s1, %s223
      %p225 = pneg %p63
      %p226 = pneg %p60
      %p227 = scmp.lt.s32.totalorder %s16, 1
      %s228 = scalar_select %p227, %s16, 1
      %s229 = smul.addr %s228, 32
      %s230 = smul.addr %s229, 8
      %s231 = scalar_lea.vmem %s2, %s230
      %p232 = pneg %p89
      %p233 = pneg %p86
      %p234 = pneg %p110
      %p235 = pneg %p107
      %p236 = pneg %p131
      %p237 = pneg %p128
      %p238 = pneg %p157
      %p239 = pneg %p154
      %p240 = scmp.lt.s32.totalorder %s16, 1
      %s241 = scalar_select %p240, %s16, 1
      %s242 = smul.addr %s241, 32
      %s243 = smul.addr %s242, 8
      %s244 = scalar_lea.vmem %s5, %s243
      %p245 = scmp.lt.s32.totalorder %s16, 1
      %s246 = scalar_select %p245, %s16, 1
      %s247 = smul.addr %s246, 32
      %s248 = smul.addr %s247, 8
      %s249 = scalar_lea.vmem %s0, %s248
      %p250 = scmp.lt.s32.totalorder %s16, 1
      %s251 = scalar_select %p250, %s16, 1
      %s252 = smul.addr %s251, 32
      %s253 = smul.addr %s252, 8
      %s254 = scalar_lea.vmem %s1, %s253
      %p255 = scmp.lt.s32.totalorder %s16, 1
      %s256 = scalar_select %p255, %s16, 1
      %s257 = smul.addr %s256, 32
      %s258 = smul.addr %s257, 8
      %s259 = scalar_lea.vmem %s2, %s258
      %p260 = scmp.lt.s32.totalorder %s16, 1
      %s261 = scalar_select %p260, %s16, 1
      %s262 = smul.addr %s261, 32
      %s263 = smul.addr %s262, 8
      %s264 = scalar_lea.vmem %s5, %s263
      %v266 = vld [vmem:[%s259] sm:$0xff]
      %v267 = vld [vmem:[%s259 + $0x8] sm:$0xff]
      %v268 = vld [vmem:[%s259 + $0x10] sm:$0xff]
      %v269 = vld [vmem:[%s259 + $0x18] sm:$0xff]
      %v270 = vld [vmem:[%s259 + $0x20] sm:$0xff]
      %v271 = vld [vmem:[%s259 + $0x28] sm:$0xff]
      %v272 = vld [vmem:[%s259 + $0x30] sm:$0xff]
      %v273 = vld [vmem:[%s259 + $0x38] sm:$0xff]
      %v274 = vld [vmem:[%s259 + $0x40] sm:$0xff]
      %v275 = vld [vmem:[%s259 + $0x48] sm:$0xff]
      %v276 = vld [vmem:[%s259 + $0x50] sm:$0xff]
      %v277 = vld [vmem:[%s259 + $0x58] sm:$0xff]
      %v278 = vld [vmem:[%s259 + $0x60] sm:$0xff]
      %v279 = vld [vmem:[%s259 + $0x68] sm:$0xff]
      %v280 = vld [vmem:[%s259 + $0x70] sm:$0xff]
      %v281 = vld [vmem:[%s259 + $0x78] sm:$0xff]
      %v282 = vld [vmem:[%s259 + $0x80] sm:$0xff]
      %v283 = vld [vmem:[%s259 + $0x88] sm:$0xff]
      %v284 = vld [vmem:[%s259 + $0x90] sm:$0xff]
      %v285 = vld [vmem:[%s259 + $0x98] sm:$0xff]
      %v286 = vld [vmem:[%s259 + $0xa0] sm:$0xff]
      %v287 = vld [vmem:[%s259 + $0xa8] sm:$0xff]
      %v288 = vld [vmem:[%s259 + $0xb0] sm:$0xff]
      %v289 = vld [vmem:[%s259 + $0xb8] sm:$0xff]
      %v290 = vld [vmem:[%s259 + $0xc0] sm:$0xff]
      %v291 = vld [vmem:[%s259 + $0xc8] sm:$0xff]
      %v292 = vld [vmem:[%s259 + $0xd0] sm:$0xff]
      %v293 = vld [vmem:[%s259 + $0xd8] sm:$0xff]
      %v294 = vld [vmem:[%s259 + $0xe0] sm:$0xff]
      %v295 = vld [vmem:[%s259 + $0xe8] sm:$0xff]
      %v296 = vld [vmem:[%s259 + $0xf0] sm:$0xff]
      %v297 = vld [vmem:[%s259 + $0xf8] sm:$0xff]
      %v298 = vld [vmem:[%s249] sm:$0xff]
      %v299 = vld [vmem:[%s249 + $0x8] sm:$0xff]
      %v300 = vld [vmem:[%s249 + $0x10] sm:$0xff]
      %v301 = vld [vmem:[%s249 + $0x18] sm:$0xff]
      %v302 = vld [vmem:[%s249 + $0x20] sm:$0xff]
      %v303 = vld [vmem:[%s249 + $0x28] sm:$0xff]
      %v304 = vld [vmem:[%s249 + $0x30] sm:$0xff]
      %v305 = vld [vmem:[%s249 + $0x38] sm:$0xff]
      %v306 = vld [vmem:[%s249 + $0x40] sm:$0xff]
      %v307 = vld [vmem:[%s249 + $0x48] sm:$0xff]
      %v308 = vld [vmem:[%s249 + $0x50] sm:$0xff]
      %v309 = vld [vmem:[%s249 + $0x58] sm:$0xff]
      %v310 = vld [vmem:[%s249 + $0x60] sm:$0xff]
      %v311 = vld [vmem:[%s249 + $0x68] sm:$0xff]
      %v312 = vld [vmem:[%s249 + $0x70] sm:$0xff]
      %v313 = vld [vmem:[%s249 + $0x78] sm:$0xff]
      %v314 = vld [vmem:[%s249 + $0x80] sm:$0xff]
      %v315 = vld [vmem:[%s249 + $0x88] sm:$0xff]
      %v316 = vld [vmem:[%s249 + $0x90] sm:$0xff]
      %v317 = vld [vmem:[%s249 + $0x98] sm:$0xff]
      %v318 = vld [vmem:[%s249 + $0xa0] sm:$0xff]
      %v319 = vld [vmem:[%s249 + $0xa8] sm:$0xff]
      %v320 = vld [vmem:[%s249 + $0xb0] sm:$0xff]
      %v321 = vld [vmem:[%s249 + $0xb8] sm:$0xff]
      %v322 = vld [vmem:[%s249 + $0xc0] sm:$0xff]
      %v323 = vld [vmem:[%s249 + $0xc8] sm:$0xff]
      %v324 = vld [vmem:[%s249 + $0xd0] sm:$0xff]
      %v325 = vld [vmem:[%s249 + $0xd8] sm:$0xff]
      %v326 = vld [vmem:[%s249 + $0xe0] sm:$0xff]
      %v327 = vld [vmem:[%s249 + $0xe8] sm:$0xff]
      %v328 = vld [vmem:[%s249 + $0xf0] sm:$0xff]
      %v329 = vld [vmem:[%s249 + $0xf8] sm:$0xff]
      %v330 = vld [vmem:[%s254] sm:$0xff]
      %v331 = vld [vmem:[%s254 + $0x8] sm:$0xff]
      %v332 = vld [vmem:[%s254 + $0x10] sm:$0xff]
      %v333 = vld [vmem:[%s254 + $0x18] sm:$0xff]
      %v334 = vld [vmem:[%s254 + $0x20] sm:$0xff]
      %v335 = vld [vmem:[%s254 + $0x28] sm:$0xff]
      %v336 = vld [vmem:[%s254 + $0x30] sm:$0xff]
      %v337 = vld [vmem:[%s254 + $0x38] sm:$0xff]
      %v338 = vld [vmem:[%s254 + $0x40] sm:$0xff]
      %v339 = vld [vmem:[%s254 + $0x48] sm:$0xff]
      %v340 = vld [vmem:[%s254 + $0x50] sm:$0xff]
      %v341 = vld [vmem:[%s254 + $0x58] sm:$0xff]
      %v342 = vld [vmem:[%s254 + $0x60] sm:$0xff]
      %v343 = vld [vmem:[%s254 + $0x68] sm:$0xff]
      %v344 = vld [vmem:[%s254 + $0x70] sm:$0xff]
      %v345 = vld [vmem:[%s254 + $0x78] sm:$0xff]
      %v346 = vld [vmem:[%s254 + $0x80] sm:$0xff]
      %v347 = vld [vmem:[%s254 + $0x88] sm:$0xff]
      %v348 = vld [vmem:[%s254 + $0x90] sm:$0xff]
      %v349 = vld [vmem:[%s254 + $0x98] sm:$0xff]
      %v350 = vld [vmem:[%s254 + $0xa0] sm:$0xff]
      %v351 = vld [vmem:[%s254 + $0xa8] sm:$0xff]
      %v352 = vld [vmem:[%s254 + $0xb0] sm:$0xff]
      %v353 = vld [vmem:[%s254 + $0xb8] sm:$0xff]
      %v354 = vld [vmem:[%s254 + $0xc0] sm:$0xff]
      %v355 = vld [vmem:[%s254 + $0xc8] sm:$0xff]
      %v356 = vld [vmem:[%s254 + $0xd0] sm:$0xff]
      %v357 = vld [vmem:[%s254 + $0xd8] sm:$0xff]
      %v358 = vld [vmem:[%s254 + $0xe0] sm:$0xff]
      %v359 = vld [vmem:[%s254 + $0xe8] sm:$0xff]
      %v360 = vld [vmem:[%s254 + $0xf0] sm:$0xff]
      %v361 = vld [vmem:[%s254 + $0xf8] sm:$0xff]
      %vm362 = vcmask 64512
      %v363 = vsel %vm362, %v298, 0.0
      %v364 = vsel %vm362, %v299, 0.0
      %v365 = vadd.f32 %v363, %v364
      %v366 = vsel %vm362, %v300, 0.0
      %v367 = vadd.f32 %v365, %v366
      %v368 = vsel %vm362, %v301, 0.0
      %v369 = vadd.f32 %v367, %v368
      %v370 = vsel %vm362, %v302, 0.0
      %v371 = vadd.f32 %v369, %v370
      %v372 = vsel %vm362, %v303, 0.0
      %v373 = vadd.f32 %v371, %v372
      %v374 = vsel %vm362, %v304, 0.0
      %v375 = vadd.f32 %v373, %v374
      %v376 = vsel %vm362, %v305, 0.0
      %v377 = vadd.f32 %v375, %v376
      %v378 = vsel %vm362, %v306, 0.0
      %v379 = vadd.f32 %v377, %v378
      %v380 = vsel %vm362, %v307, 0.0
      %v381 = vadd.f32 %v379, %v380
      %v382 = vsel %vm362, %v308, 0.0
      %v383 = vadd.f32 %v381, %v382
      %v384 = vsel %vm362, %v309, 0.0
      %v385 = vadd.f32 %v383, %v384
      %v386 = vsel %vm362, %v310, 0.0
      %v387 = vadd.f32 %v385, %v386
      %v388 = vsel %vm362, %v311, 0.0
      %v389 = vadd.f32 %v387, %v388
      %v390 = vsel %vm362, %v312, 0.0
      %v391 = vadd.f32 %v389, %v390
      %v392 = vsel %vm362, %v313, 0.0
      %v393 = vadd.f32 %v391, %v392
      %v394 = vsel %vm362, %v314, 0.0
      %v395 = vadd.f32 %v393, %v394
      %v396 = vsel %vm362, %v315, 0.0
      %v397 = vadd.f32 %v395, %v396
      %v398 = vsel %vm362, %v316, 0.0
      %v399 = vadd.f32 %v397, %v398
      %v400 = vsel %vm362, %v317, 0.0
      %v401 = vadd.f32 %v399, %v400
      %v402 = vsel %vm362, %v318, 0.0
      %v403 = vadd.f32 %v401, %v402
      %v404 = vsel %vm362, %v319, 0.0
      %v405 = vadd.f32 %v403, %v404
      %v406 = vsel %vm362, %v320, 0.0
      %v407 = vadd.f32 %v405, %v406
      %v408 = vsel %vm362, %v321, 0.0
      %v409 = vadd.f32 %v407, %v408
      %v410 = vsel %vm362, %v322, 0.0
      %v411 = vadd.f32 %v409, %v410
      %v412 = vsel %vm362, %v323, 0.0
      %v413 = vadd.f32 %v411, %v412
      %v414 = vsel %vm362, %v324, 0.0
      %v415 = vadd.f32 %v413, %v414
      %v416 = vsel %vm362, %v325, 0.0
      %v417 = vadd.f32 %v415, %v416
      %v418 = vsel %vm362, %v326, 0.0
      %v419 = vadd.f32 %v417, %v418
      %v420 = vsel %vm362, %v327, 0.0
      %v421 = vadd.f32 %v419, %v420
      %v422 = vsel %vm362, %v328, 0.0
      %v423 = vadd.f32 %v421, %v422
      %v424 = vsel %vm362, %v329, 0.0
      %v425 = vadd.f32 %v423, %v424
      %v426 = vrot.slane %v425, 4
      %v427 = vadd.f32 %v425, %v426
      %v428 = vrot.slane %v427, 2
      %v429 = vadd.f32 %v427, %v428
      %v430 = vrot.slane %v429, 1
      %v431 = vadd.f32 %v429, %v430
      %v432 = vmul.f32 %v431, 0.00390625
      %v433 = vmul.f32 %v298, %v298
      %v434 = vmul.f32 %v299, %v299
      %v435 = vmul.f32 %v300, %v300
      %v436 = vmul.f32 %v301, %v301
      %v437 = vmul.f32 %v302, %v302
      %v438 = vmul.f32 %v303, %v303
      %v439 = vmul.f32 %v304, %v304
      %v440 = vmul.f32 %v305, %v305
      %v441 = vmul.f32 %v306, %v306
      %v442 = vmul.f32 %v307, %v307
      %v443 = vmul.f32 %v308, %v308
      %v444 = vmul.f32 %v309, %v309
      %v445 = vmul.f32 %v310, %v310
      %v446 = vmul.f32 %v311, %v311
      %v447 = vmul.f32 %v312, %v312
      %v448 = vmul.f32 %v313, %v313
      %v449 = vmul.f32 %v314, %v314
      %v450 = vmul.f32 %v315, %v315
      %v451 = vmul.f32 %v316, %v316
      %v452 = vmul.f32 %v317, %v317
      %v453 = vmul.f32 %v318, %v318
      %v454 = vmul.f32 %v319, %v319
      %v455 = vmul.f32 %v320, %v320
      %v456 = vmul.f32 %v321, %v321
      %v457 = vmul.f32 %v322, %v322
      %v458 = vmul.f32 %v323, %v323
      %v459 = vmul.f32 %v324, %v324
      %v460 = vmul.f32 %v325, %v325
      %v461 = vmul.f32 %v326, %v326
      %v462 = vmul.f32 %v327, %v327
      %v463 = vmul.f32 %v328, %v328
      %v464 = vmul.f32 %v329, %v329
      %v465 = vsel %vm362, %v433, 0.0
      %v466 = vsel %vm362, %v434, 0.0
      %v467 = vadd.f32 %v465, %v466
      %v468 = vsel %vm362, %v435, 0.0
      %v469 = vadd.f32 %v467, %v468
      %v470 = vsel %vm362, %v436, 0.0
      %v471 = vadd.f32 %v469, %v470
      %v472 = vsel %vm362, %v437, 0.0
      %v473 = vadd.f32 %v471, %v472
      %v474 = vsel %vm362, %v438, 0.0
      %v475 = vadd.f32 %v473, %v474
      %v476 = vsel %vm362, %v439, 0.0
      %v477 = vadd.f32 %v475, %v476
      %v478 = vsel %vm362, %v440, 0.0
      %v479 = vadd.f32 %v477, %v478
      %v480 = vsel %vm362, %v441, 0.0
      %v481 = vadd.f32 %v479, %v480
      %v482 = vsel %vm362, %v442, 0.0
      %v483 = vadd.f32 %v481, %v482
      %v484 = vsel %vm362, %v443, 0.0
      %v485 = vadd.f32 %v483, %v484
      %v486 = vsel %vm362, %v444, 0.0
      %v487 = vadd.f32 %v485, %v486
      %v488 = vsel %vm362, %v445, 0.0
      %v489 = vadd.f32 %v487, %v488
      %v490 = vsel %vm362, %v446, 0.0
      %v491 = vadd.f32 %v489, %v490
      %v492 = vsel %vm362, %v447, 0.0
      %v493 = vadd.f32 %v491, %v492
      %v494 = vsel %vm362, %v448, 0.0
      %v495 = vadd.f32 %v493, %v494
      %v496 = vsel %vm362, %v449, 0.0
      %v497 = vadd.f32 %v495, %v496
      %v498 = vsel %vm362, %v450, 0.0
      %v499 = vadd.f32 %v497, %v498
      %v500 = vsel %vm362, %v451, 0.0
      %v501 = vadd.f32 %v499, %v500
      %v502 = vsel %vm362, %v452, 0.0
      %v503 = vadd.f32 %v501, %v502
      %v504 = vsel %vm362, %v453, 0.0
      %v505 = vadd.f32 %v503, %v504
      %v506 = vsel %vm362, %v454, 0.0
      %v507 = vadd.f32 %v505, %v506
      %v508 = vsel %vm362, %v455, 0.0
      %v509 = vadd.f32 %v507, %v508
      %v510 = vsel %vm362, %v456, 0.0
      %v511 = vadd.f32 %v509, %v510
      %v512 = vsel %vm362, %v457, 0.0
      %v513 = vadd.f32 %v511, %v512
      %v514 = vsel %vm362, %v458, 0.0
      %v515 = vadd.f32 %v513, %v514
      %v516 = vsel %vm362, %v459, 0.0
      %v517 = vadd.f32 %v515, %v516
      %v518 = vsel %vm362, %v460, 0.0
      %v519 = vadd.f32 %v517, %v518
      %v520 = vsel %vm362, %v461, 0.0
      %v521 = vadd.f32 %v519, %v520
      %v522 = vsel %vm362, %v462, 0.0
      %v523 = vadd.f32 %v521, %v522
      %v524 = vsel %vm362, %v463, 0.0
      %v525 = vadd.f32 %v523, %v524
      %v526 = vsel %vm362, %v464, 0.0
      %v527 = vadd.f32 %v525, %v526
      %v528 = vrot.slane %v527, 4
      %v529 = vadd.f32 %v527, %v528
      %v530 = vrot.slane %v529, 2
      %v531 = vadd.f32 %v529, %v530
      %v532 = vrot.slane %v531, 1
      %v533 = vadd.f32 %v531, %v532
      %v534 = vmul.f32 %v533, 0.00390625
      %v535 = vmul.f32 %v432, %v432
      %v536 = vsub.f32 %v534, %v535
      %v537 = vmax.f32 %v536, 0.0
      %v538 = vsel %vm362, %v330, 0.0
      %v539 = vsel %vm362, %v331, 0.0
      %v540 = vadd.f32 %v538, %v539
      %v541 = vsel %vm362, %v332, 0.0
      %v542 = vadd.f32 %v540, %v541
      %v543 = vsel %vm362, %v333, 0.0
      %v544 = vadd.f32 %v542, %v543
      %v545 = vsel %vm362, %v334, 0.0
      %v546 = vadd.f32 %v544, %v545
      %v547 = vsel %vm362, %v335, 0.0
      %v548 = vadd.f32 %v546, %v547
      %v549 = vsel %vm362, %v336, 0.0
      %v550 = vadd.f32 %v548, %v549
      %v551 = vsel %vm362, %v337, 0.0
      %v552 = vadd.f32 %v550, %v551
      %v553 = vsel %vm362, %v338, 0.0
      %v554 = vadd.f32 %v552, %v553
      %v555 = vsel %vm362, %v339, 0.0
      %v556 = vadd.f32 %v554, %v555
      %v557 = vsel %vm362, %v340, 0.0
      %v558 = vadd.f32 %v556, %v557
      %v559 = vsel %vm362, %v341, 0.0
      %v560 = vadd.f32 %v558, %v559
      %v561 = vsel %vm362, %v342, 0.0
      %v562 = vadd.f32 %v560, %v561
      %v563 = vsel %vm362, %v343, 0.0
      %v564 = vadd.f32 %v562, %v563
      %v565 = vsel %vm362, %v344, 0.0
      %v566 = vadd.f32 %v564, %v565
      %v567 = vsel %vm362, %v345, 0.0
      %v568 = vadd.f32 %v566, %v567
      %v569 = vsel %vm362, %v346, 0.0
      %v570 = vadd.f32 %v568, %v569
      %v571 = vsel %vm362, %v347, 0.0
      %v572 = vadd.f32 %v570, %v571
      %v573 = vsel %vm362, %v348, 0.0
      %v574 = vadd.f32 %v572, %v573
      %v575 = vsel %vm362, %v349, 0.0
      %v576 = vadd.f32 %v574, %v575
      %v577 = vsel %vm362, %v350, 0.0
      %v578 = vadd.f32 %v576, %v577
      %v579 = vsel %vm362, %v351, 0.0
      %v580 = vadd.f32 %v578, %v579
      %v581 = vsel %vm362, %v352, 0.0
      %v582 = vadd.f32 %v580, %v581
      %v583 = vsel %vm362, %v353, 0.0
      %v584 = vadd.f32 %v582, %v583
      %v585 = vsel %vm362, %v354, 0.0
      %v586 = vadd.f32 %v584, %v585
      %v587 = vsel %vm362, %v355, 0.0
      %v588 = vadd.f32 %v586, %v587
      %v589 = vsel %vm362, %v356, 0.0
      %v590 = vadd.f32 %v588, %v589
      %v591 = vsel %vm362, %v357, 0.0
      %v592 = vadd.f32 %v590, %v591
      %v593 = vsel %vm362, %v358, 0.0
      %v594 = vadd.f32 %v592, %v593
      %v595 = vsel %vm362, %v359, 0.0
      %v596 = vadd.f32 %v594, %v595
      %v597 = vsel %vm362, %v360, 0.0
      %v598 = vadd.f32 %v596, %v597
      %v599 = vsel %vm362, %v361, 0.0
      %v600 = vadd.f32 %v598, %v599
      %v601 = vrot.slane %v600, 4
      %v602 = vadd.f32 %v600, %v601
      %v603 = vrot.slane %v602, 2
      %v604 = vadd.f32 %v602, %v603
      %v605 = vrot.slane %v604, 1
      %v606 = vadd.f32 %v604, %v605
      %v607 = vmul.f32 %v606, 0.00390625
      %v608 = vmul.f32 %v330, %v330
      %v609 = vmul.f32 %v331, %v331
      %v610 = vmul.f32 %v332, %v332
      %v611 = vmul.f32 %v333, %v333
      %v612 = vmul.f32 %v334, %v334
      %v613 = vmul.f32 %v335, %v335
      %v614 = vmul.f32 %v336, %v336
      %v615 = vmul.f32 %v337, %v337
      %v616 = vmul.f32 %v338, %v338
      %v617 = vmul.f32 %v339, %v339
      %v618 = vmul.f32 %v340, %v340
      %v619 = vmul.f32 %v341, %v341
      %v620 = vmul.f32 %v342, %v342
      %v621 = vmul.f32 %v343, %v343
      %v622 = vmul.f32 %v344, %v344
      %v623 = vmul.f32 %v345, %v345
      %v624 = vmul.f32 %v346, %v346
      %v625 = vmul.f32 %v347, %v347
      %v626 = vmul.f32 %v348, %v348
      %v627 = vmul.f32 %v349, %v349
      %v628 = vmul.f32 %v350, %v350
      %v629 = vmul.f32 %v351, %v351
      %v630 = vmul.f32 %v352, %v352
      %v631 = vmul.f32 %v353, %v353
      %v632 = vmul.f32 %v354, %v354
      %v633 = vmul.f32 %v355, %v355
      %v634 = vmul.f32 %v356, %v356
      %v635 = vmul.f32 %v357, %v357
      %v636 = vmul.f32 %v358, %v358
      %v637 = vmul.f32 %v359, %v359
      %v638 = vmul.f32 %v360, %v360
      %v639 = vmul.f32 %v361, %v361
      %v640 = vsel %vm362, %v608, 0.0
      %v641 = vsel %vm362, %v609, 0.0
      %v642 = vadd.f32 %v640, %v641
      %v643 = vsel %vm362, %v610, 0.0
      %v644 = vadd.f32 %v642, %v643
      %v645 = vsel %vm362, %v611, 0.0
      %v646 = vadd.f32 %v644, %v645
      %v647 = vsel %vm362, %v612, 0.0
      %v648 = vadd.f32 %v646, %v647
      %v649 = vsel %vm362, %v613, 0.0
      %v650 = vadd.f32 %v648, %v649
      %v651 = vsel %vm362, %v614, 0.0
      %v652 = vadd.f32 %v650, %v651
      %v653 = vsel %vm362, %v615, 0.0
      %v654 = vadd.f32 %v652, %v653
      %v655 = vsel %vm362, %v616, 0.0
      %v656 = vadd.f32 %v654, %v655
      %v657 = vsel %vm362, %v617, 0.0
      %v658 = vadd.f32 %v656, %v657
      %v659 = vsel %vm362, %v618, 0.0
      %v660 = vadd.f32 %v658, %v659
      %v661 = vsel %vm362, %v619, 0.0
      %v662 = vadd.f32 %v660, %v661
      %v663 = vsel %vm362, %v620, 0.0
      %v664 = vadd.f32 %v662, %v663
      %v665 = vsel %vm362, %v621, 0.0
      %v666 = vadd.f32 %v664, %v665
      %v667 = vsel %vm362, %v622, 0.0
      %v668 = vadd.f32 %v666, %v667
      %v669 = vsel %vm362, %v623, 0.0
      %v670 = vadd.f32 %v668, %v669
      %v671 = vsel %vm362, %v624, 0.0
      %v672 = vadd.f32 %v670, %v671
      %v673 = vsel %vm362, %v625, 0.0
      %v674 = vadd.f32 %v672, %v673
      %v675 = vsel %vm362, %v626, 0.0
      %v676 = vadd.f32 %v674, %v675
      %v677 = vsel %vm362, %v627, 0.0
      %v678 = vadd.f32 %v676, %v677
      %v679 = vsel %vm362, %v628, 0.0
      %v680 = vadd.f32 %v678, %v679
      %v681 = vsel %vm362, %v629, 0.0
      %v682 = vadd.f32 %v680, %v681
      %v683 = vsel %vm362, %v630, 0.0
      %v684 = vadd.f32 %v682, %v683
      %v685 = vsel %vm362, %v631, 0.0
      %v686 = vadd.f32 %v684, %v685
      %v687 = vsel %vm362, %v632, 0.0
      %v688 = vadd.f32 %v686, %v687
      %v689 = vsel %vm362, %v633, 0.0
      %v690 = vadd.f32 %v688, %v689
      %v691 = vsel %vm362, %v634, 0.0
      %v692 = vadd.f32 %v690, %v691
      %v693 = vsel %vm362, %v635, 0.0
      %v694 = vadd.f32 %v692, %v693
      %v695 = vsel %vm362, %v636, 0.0
      %v696 = vadd.f32 %v694, %v695
      %v697 = vsel %vm362, %v637, 0.0
      %v698 = vadd.f32 %v696, %v697
      %v699 = vsel %vm362, %v638, 0.0
      %v700 = vadd.f32 %v698, %v699
      %v701 = vsel %vm362, %v639, 0.0
      %v702 = vadd.f32 %v700, %v701
      %v703 = vrot.slane %v702, 4
      %v704 = vadd.f32 %v702, %v703
      %v705 = vrot.slane %v704, 2
      %v706 = vadd.f32 %v704, %v705
      %v707 = vrot.slane %v706, 1
      %v708 = vadd.f32 %v706, %v707
      %v709 = vmul.f32 %v708, 0.00390625
      %v710 = vmul.f32 %v607, %v607
      %v711 = vsub.f32 %v709, %v710
      %v712 = vmax.f32 %v711, 0.0
      %v713 = vadd.f32 %v712, 1e-05
      %v714 = vrsqrt.pop %v713
      %v715 = vmul.f32 %v713, %v714
      %vm716 = vcmp.eq.f32.partialorder %v713, inf
      %v717 = vsel %vm716, %v713, %v715
      %vm718 = vcmp.eq.f32.partialorder %v713, 0.0
      %v719 = vand.u32 %v713, 2147483648
      %v720 = vsel %vm718, %v719, %v717
      %v721 = vadd.f32 %v537, 1e-05
      %v722 = vrsqrt.pop %v721
      %v723 = vmul.f32 %v720, %v722
      %v724 = vsub.f32 %v298, %v432
      %v725 = vsub.f32 %v299, %v432
      %v726 = vsub.f32 %v300, %v432
      %v727 = vsub.f32 %v301, %v432
      %v728 = vsub.f32 %v302, %v432
      %v729 = vsub.f32 %v303, %v432
      %v730 = vsub.f32 %v304, %v432
      %v731 = vsub.f32 %v305, %v432
      %v732 = vsub.f32 %v306, %v432
      %v733 = vsub.f32 %v307, %v432
      %v734 = vsub.f32 %v308, %v432
      %v735 = vsub.f32 %v309, %v432
      %v736 = vsub.f32 %v310, %v432
      %v737 = vsub.f32 %v311, %v432
      %v738 = vsub.f32 %v312, %v432
      %v739 = vsub.f32 %v313, %v432
      %v740 = vsub.f32 %v314, %v432
      %v741 = vsub.f32 %v315, %v432
      %v742 = vsub.f32 %v316, %v432
      %v743 = vsub.f32 %v317, %v432
      %v744 = vsub.f32 %v318, %v432
      %v745 = vsub.f32 %v319, %v432
      %v746 = vsub.f32 %v320, %v432
      %v747 = vsub.f32 %v321, %v432
      %v748 = vsub.f32 %v322, %v432
      %v749 = vsub.f32 %v323, %v432
      %v750 = vsub.f32 %v324, %v432
      %v751 = vsub.f32 %v325, %v432
      %v752 = vsub.f32 %v326, %v432
      %v753 = vsub.f32 %v327, %v432
      %v754 = vsub.f32 %v328, %v432
      %v755 = vsub.f32 %v329, %v432
      %v756 = vmul.f32 %v724, %v723
      %v757 = vmul.f32 %v725, %v723
      %v758 = vmul.f32 %v726, %v723
      %v759 = vmul.f32 %v727, %v723
      %v760 = vmul.f32 %v728, %v723
      %v761 = vmul.f32 %v729, %v723
      %v762 = vmul.f32 %v730, %v723
      %v763 = vmul.f32 %v731, %v723
      %v764 = vmul.f32 %v732, %v723
      %v765 = vmul.f32 %v733, %v723
      %v766 = vmul.f32 %v734, %v723
      %v767 = vmul.f32 %v735, %v723
      %v768 = vmul.f32 %v736, %v723
      %v769 = vmul.f32 %v737, %v723
      %v770 = vmul.f32 %v738, %v723
      %v771 = vmul.f32 %v739, %v723
      %v772 = vmul.f32 %v740, %v723
      %v773 = vmul.f32 %v741, %v723
      %v774 = vmul.f32 %v742, %v723
      %v775 = vmul.f32 %v743, %v723
      %v776 = vmul.f32 %v744, %v723
      %v777 = vmul.f32 %v745, %v723
      %v778 = vmul.f32 %v746, %v723
      %v779 = vmul.f32 %v747, %v723
      %v780 = vmul.f32 %v748, %v723
      %v781 = vmul.f32 %v749, %v723
      %v782 = vmul.f32 %v750, %v723
      %v783 = vmul.f32 %v751, %v723
      %v784 = vmul.f32 %v752, %v723
      %v785 = vmul.f32 %v753, %v723
      %v786 = vmul.f32 %v754, %v723
      %v787 = vmul.f32 %v755, %v723
      %v788 = vadd.f32 %v756, %v607
      %v789 = vadd.f32 %v757, %v607
      %v790 = vadd.f32 %v758, %v607
      %v791 = vadd.f32 %v759, %v607
      %v792 = vadd.f32 %v760, %v607
      %v793 = vadd.f32 %v761, %v607
      %v794 = vadd.f32 %v762, %v607
      %v795 = vadd.f32 %v763, %v607
      %v796 = vadd.f32 %v764, %v607
      %v797 = vadd.f32 %v765, %v607
      %v798 = vadd.f32 %v766, %v607
      %v799 = vadd.f32 %v767, %v607
      %v800 = vadd.f32 %v768, %v607
      %v801 = vadd.f32 %v769, %v607
      %v802 = vadd.f32 %v770, %v607
      %v803 = vadd.f32 %v771, %v607
      %v804 = vadd.f32 %v772, %v607
      %v805 = vadd.f32 %v773, %v607
      %v806 = vadd.f32 %v774, %v607
      %v807 = vadd.f32 %v775, %v607
      %v808 = vadd.f32 %v776, %v607
      %v809 = vadd.f32 %v777, %v607
      %v810 = vadd.f32 %v778, %v607
      %v811 = vadd.f32 %v779, %v607
      %v812 = vadd.f32 %v780, %v607
      %v813 = vadd.f32 %v781, %v607
      %v814 = vadd.f32 %v782, %v607
      %v815 = vadd.f32 %v783, %v607
      %v816 = vadd.f32 %v784, %v607
      %v817 = vadd.f32 %v785, %v607
      %v818 = vadd.f32 %v786, %v607
      %v819 = vadd.f32 %v787, %v607
      %v820 = vadd.f32 %v788, %v266
      %v821 = vadd.f32 %v789, %v267
      %v822 = vadd.f32 %v790, %v268
      %v823 = vadd.f32 %v791, %v269
      %v824 = vadd.f32 %v792, %v270
      %v825 = vadd.f32 %v793, %v271
      %v826 = vadd.f32 %v794, %v272
      %v827 = vadd.f32 %v795, %v273
      %v828 = vadd.f32 %v796, %v274
      %v829 = vadd.f32 %v797, %v275
      %v830 = vadd.f32 %v798, %v276
      %v831 = vadd.f32 %v799, %v277
      %v832 = vadd.f32 %v800, %v278
      %v833 = vadd.f32 %v801, %v279
      %v834 = vadd.f32 %v802, %v280
      %v835 = vadd.f32 %v803, %v281
      %v836 = vadd.f32 %v804, %v282
      %v837 = vadd.f32 %v805, %v283
      %v838 = vadd.f32 %v806, %v284
      %v839 = vadd.f32 %v807, %v285
      %v840 = vadd.f32 %v808, %v286
      %v841 = vadd.f32 %v809, %v287
      %v842 = vadd.f32 %v810, %v288
      %v843 = vadd.f32 %v811, %v289
      %v844 = vadd.f32 %v812, %v290
      %v845 = vadd.f32 %v813, %v291
      %v846 = vadd.f32 %v814, %v292
      %v847 = vadd.f32 %v815, %v293
      %v848 = vadd.f32 %v816, %v294
      %v849 = vadd.f32 %v817, %v295
      %v850 = vadd.f32 %v818, %v296
      %v851 = vadd.f32 %v819, %v297
      %v852 = vpack.c.bf16 %v821, %v820
      %v853 = vpack.c.bf16 %v823, %v822
      %v854 = vpack.c.bf16 %v825, %v824
      %v855 = vpack.c.bf16 %v827, %v826
      %v856 = vpack.c.bf16 %v829, %v828
      %v857 = vpack.c.bf16 %v831, %v830
      %v858 = vpack.c.bf16 %v833, %v832
      %v859 = vpack.c.bf16 %v835, %v834
      %v860 = vpack.c.bf16 %v837, %v836
      %v861 = vpack.c.bf16 %v839, %v838
      %v862 = vpack.c.bf16 %v841, %v840
      %v863 = vpack.c.bf16 %v843, %v842
      %v864 = vpack.c.bf16 %v845, %v844
      %v865 = vpack.c.bf16 %v847, %v846
      %v866 = vpack.c.bf16 %v849, %v848
      %v867 = vpack.c.bf16 %v851, %v850
      %v869 = vshrl.u32 %v853, 16
      %v872 = vshrl.u32 %v852, 16
      %v875 = vshrl.u32 %v854, 16
      %v878 = vshrl.u32 %v855, 16
      %v881 = vshrl.u32 %v856, 16
      %v884 = vshrl.u32 %v857, 16
      %v887 = vshrl.u32 %v858, 16
      %v890 = vshrl.u32 %v859, 16
      %v893 = vshrl.u32 %v860, 16
      %v896 = vshrl.u32 %v861, 16
      %v899 = vshrl.u32 %v862, 16
      %v902 = vshrl.u32 %v863, 16
      %v905 = vshrl.u32 %v864, 16
      %v908 = vshrl.u32 %v865, 16
      %v911 = vshrl.u32 %v866, 16
      %v914 = vshrl.u32 %v867, 16
      %v932 = vrot.slane %v869, 7
      %v933 = vshll.u32 %v853, 16
      %v935 = vor.u32 %v932, %v933
      %v936 = vrot.slane %v872, 7
      %v937 = vshll.u32 %v852, 16
      %v939 = vor.u32 %v936, %v937
      %v940 = vrot.slane %v875, 7
      %v941 = vshll.u32 %v854, 16
      %v943 = vor.u32 %v940, %v941
      %v944 = vrot.slane %v878, 7
      %v945 = vshll.u32 %v855, 16
      %v947 = vor.u32 %v944, %v945
      %v948 = vrot.slane %v881, 7
      %v949 = vshll.u32 %v856, 16
      %v951 = vor.u32 %v948, %v949
      %v952 = vrot.slane %v884, 7
      %v953 = vshll.u32 %v857, 16
      %v955 = vor.u32 %v952, %v953
      %v956 = vrot.slane %v887, 7
      %v957 = vshll.u32 %v858, 16
      %v959 = vor.u32 %v956, %v957
      %v960 = vrot.slane %v890, 7
      %v961 = vshll.u32 %v859, 16
      %v963 = vor.u32 %v960, %v961
      %v964 = vrot.slane %v893, 7
      %v965 = vshll.u32 %v860, 16
      %v967 = vor.u32 %v964, %v965
      %v968 = vrot.slane %v896, 7
      %v969 = vshll.u32 %v861, 16
      %v971 = vor.u32 %v968, %v969
      %v972 = vrot.slane %v899, 7
      %v973 = vshll.u32 %v862, 16
      %v975 = vor.u32 %v972, %v973
      %v976 = vrot.slane %v902, 7
      %v977 = vshll.u32 %v863, 16
      %v979 = vor.u32 %v976, %v977
      %v980 = vrot.slane %v905, 7
      %v981 = vshll.u32 %v864, 16
      %v983 = vor.u32 %v980, %v981
      %v984 = vrot.slane %v908, 7
      %v985 = vshll.u32 %v865, 16
      %v987 = vor.u32 %v984, %v985
      %v988 = vrot.slane %v911, 7
      %v989 = vshll.u32 %v866, 16
      %v991 = vor.u32 %v988, %v989
      %v992 = vrot.slane %v914, 7
      %v993 = vshll.u32 %v867, 16
      %v995 = vor.u32 %v992, %v993
      %vm1012 = vcmask 1040384
      %vm1013 = vsmask.f32 256
      %vm1014 = vmand %vm1012, %vm1013
      %v1015 = vsel %vm1014, %v869, %v935
      %v1016 = vsel %vm1014, %v872, %v939
      %v1017 = vsel %vm1014, %v875, %v943
      %v1018 = vsel %vm1014, %v878, %v947
      %v1019 = vsel %vm1014, %v881, %v951
      %v1020 = vsel %vm1014, %v884, %v955
      %v1021 = vsel %vm1014, %v887, %v959
      %v1022 = vsel %vm1014, %v890, %v963
      %v1023 = vsel %vm1014, %v893, %v967
      %v1024 = vsel %vm1014, %v896, %v971
      %v1025 = vsel %vm1014, %v899, %v975
      %v1026 = vsel %vm1014, %v902, %v979
      %v1027 = vsel %vm1014, %v905, %v983
      %v1028 = vsel %vm1014, %v908, %v987
      %v1029 = vsel %vm1014, %v911, %v991
      %v1030 = vsel %vm1014, %v914, %v995
      %v1031 = vrot.slane %v933, 1
      %v1032 = vor.u32 %v869, %v1031
      %v1033 = vrot.slane %v937, 1
      %v1034 = vor.u32 %v872, %v1033
      %v1035 = vrot.slane %v941, 1
      %v1036 = vor.u32 %v875, %v1035
      %v1037 = vrot.slane %v945, 1
      %v1038 = vor.u32 %v878, %v1037
      %v1039 = vrot.slane %v949, 1
      %v1040 = vor.u32 %v881, %v1039
      %v1041 = vrot.slane %v953, 1
      %v1042 = vor.u32 %v884, %v1041
      %v1043 = vrot.slane %v957, 1
      %v1044 = vor.u32 %v887, %v1043
      %v1045 = vrot.slane %v961, 1
      %v1046 = vor.u32 %v890, %v1045
      %v1047 = vrot.slane %v965, 1
      %v1048 = vor.u32 %v893, %v1047
      %v1049 = vrot.slane %v969, 1
      %v1050 = vor.u32 %v896, %v1049
      %v1051 = vrot.slane %v973, 1
      %v1052 = vor.u32 %v899, %v1051
      %v1053 = vrot.slane %v977, 1
      %v1054 = vor.u32 %v902, %v1053
      %v1055 = vrot.slane %v981, 1
      %v1056 = vor.u32 %v905, %v1055
      %v1057 = vrot.slane %v985, 1
      %v1058 = vor.u32 %v908, %v1057
      %v1059 = vrot.slane %v989, 1
      %v1060 = vor.u32 %v911, %v1059
      %v1061 = vrot.slane %v993, 1
      %v1062 = vor.u32 %v914, %v1061
      %vm1095 = vcmask 1047552
      %vm1096 = vsmask.f32 7424
      %vm1097 = vmand %vm1095, %vm1096
      %v1098 = vsel %vm1097, %v1032, %v933
      %v1099 = vsel %vm1097, %v1034, %v937
      %v1100 = vsel %vm1097, %v1036, %v941
      %v1101 = vsel %vm1097, %v1038, %v945
      %v1102 = vsel %vm1097, %v1040, %v949
      %v1103 = vsel %vm1097, %v1042, %v953
      %v1104 = vsel %vm1097, %v1044, %v957
      %v1105 = vsel %vm1097, %v1046, %v961
      %v1106 = vsel %vm1097, %v1048, %v965
      %v1107 = vsel %vm1097, %v1050, %v969
      %v1108 = vsel %vm1097, %v1052, %v973
      %v1109 = vsel %vm1097, %v1054, %v977
      %v1110 = vsel %vm1097, %v1056, %v981
      %v1111 = vsel %vm1097, %v1058, %v985
      %v1112 = vsel %vm1097, %v1060, %v989
      %v1113 = vsel %vm1097, %v1062, %v993
      %1130 = vrot.lane.b32.xlu0 %v853, 8
      %v1131 = vpop.permute.xlu0 %1130
      %1132 = vrot.lane.b32.xlu0 %v852, 8
      %v1133 = vpop.permute.xlu0 %1132
      %1134 = vrot.lane.b32.xlu0 %v854, 8
      %v1135 = vpop.permute.xlu0 %1134
      %1136 = vrot.lane.b32.xlu0 %v855, 8
      %v1137 = vpop.permute.xlu0 %1136
      %1138 = vrot.lane.b32.xlu0 %v856, 8
      %v1139 = vpop.permute.xlu0 %1138
      %1140 = vrot.lane.b32.xlu0 %v857, 8
      %v1141 = vpop.permute.xlu0 %1140
      %1142 = vrot.lane.b32.xlu0 %v858, 8
      %v1143 = vpop.permute.xlu0 %1142
      %1144 = vrot.lane.b32.xlu0 %v859, 8
      %v1145 = vpop.permute.xlu0 %1144
      %1146 = vrot.lane.b32.xlu0 %v860, 8
      %v1147 = vpop.permute.xlu0 %1146
      %1148 = vrot.lane.b32.xlu0 %v861, 8
      %v1149 = vpop.permute.xlu0 %1148
      %1150 = vrot.lane.b32.xlu0 %v862, 8
      %v1151 = vpop.permute.xlu0 %1150
      %1152 = vrot.lane.b32.xlu0 %v863, 8
      %v1153 = vpop.permute.xlu0 %1152
      %1154 = vrot.lane.b32.xlu0 %v864, 8
      %v1155 = vpop.permute.xlu0 %1154
      %1156 = vrot.lane.b32.xlu0 %v865, 8
      %v1157 = vpop.permute.xlu0 %1156
      %1158 = vrot.lane.b32.xlu0 %v866, 8
      %v1159 = vpop.permute.xlu0 %1158
      %1160 = vrot.lane.b32.xlu0 %v867, 8
      %v1161 = vpop.permute.xlu0 %1160
      %1178 = vrot.lane.b32.xlu0 %v1098, 16
      %v1179 = vpop.permute.xlu0 %1178
      %1180 = vrot.lane.b32.xlu0 %v1099, 16
      %v1181 = vpop.permute.xlu0 %1180
      %1182 = vrot.lane.b32.xlu0 %v1100, 16
      %v1183 = vpop.permute.xlu0 %1182
      %1184 = vrot.lane.b32.xlu0 %v1101, 16
      %v1185 = vpop.permute.xlu0 %1184
      %1186 = vrot.lane.b32.xlu0 %v1102, 16
      %v1187 = vpop.permute.xlu0 %1186
      %1188 = vrot.lane.b32.xlu0 %v1103, 16
      %v1189 = vpop.permute.xlu0 %1188
      %1190 = vrot.lane.b32.xlu0 %v1104, 16
      %v1191 = vpop.permute.xlu0 %1190
      %1192 = vrot.lane.b32.xlu0 %v1105, 16
      %v1193 = vpop.permute.xlu0 %1192
      %1194 = vrot.lane.b32.xlu0 %v1106, 16
      %v1195 = vpop.permute.xlu0 %1194
      %1196 = vrot.lane.b32.xlu0 %v1107, 16
      %v1197 = vpop.permute.xlu0 %1196
      %1198 = vrot.lane.b32.xlu0 %v1108, 16
      %v1199 = vpop.permute.xlu0 %1198
      %1200 = vrot.lane.b32.xlu0 %v1109, 16
      %v1201 = vpop.permute.xlu0 %1200
      %1202 = vrot.lane.b32.xlu0 %v1110, 16
      %v1203 = vpop.permute.xlu0 %1202
      %1204 = vrot.lane.b32.xlu0 %v1111, 16
      %v1205 = vpop.permute.xlu0 %1204
      %1206 = vrot.lane.b32.xlu0 %v1112, 16
      %v1207 = vpop.permute.xlu0 %1206
      %1208 = vrot.lane.b32.xlu0 %v1113, 16
      %v1209 = vpop.permute.xlu0 %1208
      %v1212 = vsel %vm362, %v1015, %v1131
      %v1215 = vsel %vm362, %v1016, %v1133
      %v1218 = vsel %vm362, %v1017, %v1135
      %v1221 = vsel %vm362, %v1018, %v1137
      %v1224 = vsel %vm362, %v1019, %v1139
      %v1227 = vsel %vm362, %v1020, %v1141
      %v1230 = vsel %vm362, %v1021, %v1143
      %v1233 = vsel %vm362, %v1022, %v1145
      %v1236 = vsel %vm362, %v1023, %v1147
      %v1239 = vsel %vm362, %v1024, %v1149
      %v1242 = vsel %vm362, %v1025, %v1151
      %v1245 = vsel %vm362, %v1026, %v1153
      %v1248 = vsel %vm362, %v1027, %v1155
      %v1251 = vsel %vm362, %v1028, %v1157
      %v1254 = vsel %vm362, %v1029, %v1159
      %v1257 = vsel %vm362, %v1030, %v1161
      %vm1258 = vcmask 130048
      %v1260 = vsel %vm1258, %v1212, %v1179
      %v1262 = vsel %vm1258, %v1215, %v1181
      %v1264 = vsel %vm1258, %v1218, %v1183
      %v1266 = vsel %vm1258, %v1221, %v1185
      %v1268 = vsel %vm1258, %v1224, %v1187
      %v1270 = vsel %vm1258, %v1227, %v1189
      %v1272 = vsel %vm1258, %v1230, %v1191
      %v1274 = vsel %vm1258, %v1233, %v1193
      %v1276 = vsel %vm1258, %v1236, %v1195
      %v1278 = vsel %vm1258, %v1239, %v1197
      %v1280 = vsel %vm1258, %v1242, %v1199
      %v1282 = vsel %vm1258, %v1245, %v1201
      %v1284 = vsel %vm1258, %v1248, %v1203
      %v1286 = vsel %vm1258, %v1251, %v1205
      %v1288 = vsel %vm1258, %v1254, %v1207
      %v1290 = vsel %vm1258, %v1257, %v1209
      %v1291 = vld [vmem:[%s3] sm:$0xf]
      %v1292 = vld [vmem:[%s3 + $0x4] sm:$0xf]
      %v1293 = vld [vmem:[%s3 + $0x8] sm:$0xf]
      %s1294 = scalar_lea.vmem %s3, 12
      %v1295 = vld [vmem:[%s1294] sm:$0xf]
      %v1296 = vld [vmem:[%s1294 + $0x4] sm:$0xf]
      %v1297 = vld [vmem:[%s1294 + $0x8] sm:$0xf]
      %v1301 = vunpack.c.l.b16 %v1295
      %v1302 = vunpack.c.l.b16 %v1296
      %v1303 = vunpack.c.l.b16 %v1297
      %v1304 = vpack.c.b16 %v1302, %v1301
      %v1305 = vpack.c.b16 %v1303, %v1303
      %vm1307 = vcmask 195584
      %v1308 = vsel %vm1307, %v1262, 0
      %v1310 = vsel %vm1307, %v1260, 0
      %v1312 = vsel %vm1307, %v1264, 0
      %v1314 = vsel %vm1307, %v1266, 0
      %v1316 = vsel %vm1307, %v1268, 0
      %v1318 = vsel %vm1307, %v1270, 0
      %v1320 = vsel %vm1307, %v1272, 0
      %v1322 = vsel %vm1307, %v1274, 0
      %v1324 = vsel %vm1307, %v1276, 0
      %v1326 = vsel %vm1307, %v1278, 0
      %v1328 = vsel %vm1307, %v1280, 0
      %v1330 = vsel %vm1307, %v1282, 0
      %v1332 = vsel %vm1307, %v1284, 0
      %v1334 = vsel %vm1307, %v1286, 0
      %v1336 = vsel %vm1307, %v1288, 0
      %v1338 = vsel %vm1307, %v1290, 0
      %vm1340 = vcmask 1043456
      %v1342 = vsel %vm1340, %v1305, 0
      %1344 = vmatprep.subr.bf16.mxu0 0
      %1345 = vmatpush1.bf16.msra.mxu0 0
      %1346 = vmatprep.subr.bf16.mxu0 0
      %1347 = vmatpush1.bf16.msra.mxu0 0
      %1348 = vmatprep.subr.bf16.mxu0 0
      %1349 = vmatpush1.bf16.msra.mxu0 0
      %1350 = vmatprep.subr.bf16.mxu0 0
      %1351 = vmatpush1.bf16.msra.mxu0 0
      %1352 = vmatprep.subr.bf16.mxu0 0
      %1353 = vmatpush1.bf16.msra.mxu0 0
      %1354 = vmatprep.subr.bf16.mxu0 0
      %1355 = vmatpush1.bf16.msra.mxu0 0
      %1356 = vmatprep.subr.bf16.mxu0 0
      %1357 = vmatpush1.bf16.msra.mxu0 %v1342
      %1358 = vmatprep.subr.bf16.mxu0 0
      %1359 = vmatpush1.bf16.msra.mxu0 %v1304
      %1360 = vmatprep.subr.bf16.mxu0 0
      %1361 = vmatpush2.bf16.msra.mxu0 0
      %1362 = vmatprep.subr.bf16.mxu0 0
      %1363 = vmatpush2.bf16.msra.mxu0 0
      %1364 = vmatprep.subr.bf16.mxu0 0
      %1365 = vmatpush2.bf16.msra.mxu0 0
      %1366 = vmatprep.subr.bf16.mxu0 0
      %1367 = vmatpush2.bf16.msra.mxu0 0
      %1368 = vmatprep.subr.bf16.mxu0 0
      %1369 = vmatpush2.bf16.msra.mxu0 0
      %1370 = vmatprep.subr.bf16.mxu0 0
      %1371 = vmatpush2.bf16.msra.mxu0 0
      %1372 = vmatprep.subr.bf16.mxu0 0
      %1373 = vmatpush2.bf16.msra.mxu0 0
      %1374 = vmatprep.subr.bf16.mxu0 0
      %1375 = vmatpush2.bf16.msra.mxu0 0
      %1376 = vmatprep.mubr.bf16.mxu0 0
      %1377 = vmatmul.mubr.bf16.gmra.mxu0 %v1308
      %v1378 = vpop.f32.mrf.mxu0
      %v1379 = vadd.f32 0.0, %v1378
      %v1380 = vpop.f32.mrf.mxu0
      %v1381 = vpop.f32.mrf.mxu0
      %v1382 = vadd.f32 0.0, %v1381
      %v1383 = vpop.f32.mrf.mxu0
      %1384 = vmatprep.mubr.bf16.mxu0 0
      %1385 = vmatmul.mubr.bf16.gmra.mxu0 %v1310
      %v1386 = vpop.f32.mrf.mxu0
      %v1387 = vadd.f32 0.0, %v1386
      %v1388 = vpop.f32.mrf.mxu0
      %v1389 = vpop.f32.mrf.mxu0
      %v1390 = vadd.f32 0.0, %v1389
      %v1391 = vpop.f32.mrf.mxu0
      %1392 = vmatprep.mubr.bf16.mxu0 0
      %1393 = vmatmul.mubr.bf16.gmra.mxu0 %v1312
      %v1394 = vpop.f32.mrf.mxu0
      %v1395 = vadd.f32 0.0, %v1394
      %v1396 = vpop.f32.mrf.mxu0
      %v1397 = vpop.f32.mrf.mxu0
      %v1398 = vadd.f32 0.0, %v1397
      %v1399 = vpop.f32.mrf.mxu0
      %1400 = vmatprep.mubr.bf16.mxu0 0
      %1401 = vmatmul.mubr.bf16.gmra.mxu0 %v1314
      %v1402 = vpop.f32.mrf.mxu0
      %v1403 = vadd.f32 0.0, %v1402
      %v1404 = vpop.f32.mrf.mxu0
      %v1405 = vpop.f32.mrf.mxu0
      %v1406 = vadd.f32 0.0, %v1405
      %v1407 = vpop.f32.mrf.mxu0
      %1408 = vmatprep.mubr.bf16.mxu0 0
      %1409 = vmatmul.mubr.bf16.gmra.mxu0 %v1316
      %v1410 = vpop.f32.mrf.mxu0
      %v1411 = vadd.f32 0.0, %v1410
      %v1412 = vpop.f32.mrf.mxu0
      %v1413 = vpop.f32.mrf.mxu0
      %v1414 = vadd.f32 0.0, %v1413
      %v1415 = vpop.f32.mrf.mxu0
      %1416 = vmatprep.mubr.bf16.mxu0 0
      %1417 = vmatmul.mubr.bf16.gmra.mxu0 %v1318
      %v1418 = vpop.f32.mrf.mxu0
      %v1419 = vadd.f32 0.0, %v1418
      %v1420 = vpop.f32.mrf.mxu0
      %v1421 = vpop.f32.mrf.mxu0
      %v1422 = vadd.f32 0.0, %v1421
      %v1423 = vpop.f32.mrf.mxu0
      %1424 = vmatprep.mubr.bf16.mxu0 0
      %1425 = vmatmul.mubr.bf16.gmra.mxu0 %v1320
      %v1426 = vpop.f32.mrf.mxu0
      %v1427 = vadd.f32 0.0, %v1426
      %v1428 = vpop.f32.mrf.mxu0
      %v1429 = vpop.f32.mrf.mxu0
      %v1430 = vadd.f32 0.0, %v1429
      %v1431 = vpop.f32.mrf.mxu0
      %1432 = vmatprep.mubr.bf16.mxu0 0
      %1433 = vmatmul.mubr.bf16.gmra.mxu0 %v1322
      %v1434 = vpop.f32.mrf.mxu0
      %v1435 = vadd.f32 0.0, %v1434
      %v1436 = vpop.f32.mrf.mxu0
      %v1437 = vpop.f32.mrf.mxu0
      %v1438 = vadd.f32 0.0, %v1437
      %v1439 = vpop.f32.mrf.mxu0
      %1440 = vmatprep.mubr.bf16.mxu0 0
      %1441 = vmatmul.mubr.bf16.gmra.mxu0 %v1324
      %v1442 = vpop.f32.mrf.mxu0
      %v1443 = vadd.f32 0.0, %v1442
      %v1444 = vpop.f32.mrf.mxu0
      %v1445 = vpop.f32.mrf.mxu0
      %v1446 = vadd.f32 0.0, %v1445
      %v1447 = vpop.f32.mrf.mxu0
      %1448 = vmatprep.mubr.bf16.mxu0 0
      %1449 = vmatmul.mubr.bf16.gmra.mxu0 %v1326
      %v1450 = vpop.f32.mrf.mxu0
      %v1451 = vadd.f32 0.0, %v1450
      %v1452 = vpop.f32.mrf.mxu0
      %v1453 = vpop.f32.mrf.mxu0
      %v1454 = vadd.f32 0.0, %v1453
      %v1455 = vpop.f32.mrf.mxu0
      %1456 = vmatprep.mubr.bf16.mxu0 0
      %1457 = vmatmul.mubr.bf16.gmra.mxu0 %v1328
      %v1458 = vpop.f32.mrf.mxu0
      %v1459 = vadd.f32 0.0, %v1458
      %v1460 = vpop.f32.mrf.mxu0
      %v1461 = vpop.f32.mrf.mxu0
      %v1462 = vadd.f32 0.0, %v1461
      %v1463 = vpop.f32.mrf.mxu0
      %1464 = vmatprep.mubr.bf16.mxu0 0
      %1465 = vmatmul.mubr.bf16.gmra.mxu0 %v1330
      %v1466 = vpop.f32.mrf.mxu0
      %v1467 = vadd.f32 0.0, %v1466
      %v1468 = vpop.f32.mrf.mxu0
      %v1469 = vpop.f32.mrf.mxu0
      %v1470 = vadd.f32 0.0, %v1469
      %v1471 = vpop.f32.mrf.mxu0
      %1472 = vmatprep.mubr.bf16.mxu0 0
      %1473 = vmatmul.mubr.bf16.gmra.mxu0 %v1332
      %v1474 = vpop.f32.mrf.mxu0
      %v1475 = vadd.f32 0.0, %v1474
      %v1476 = vpop.f32.mrf.mxu0
      %v1477 = vpop.f32.mrf.mxu0
      %v1478 = vadd.f32 0.0, %v1477
      %v1479 = vpop.f32.mrf.mxu0
      %1480 = vmatprep.mubr.bf16.mxu0 0
      %1481 = vmatmul.mubr.bf16.gmra.mxu0 %v1334
      %v1482 = vpop.f32.mrf.mxu0
      %v1483 = vadd.f32 0.0, %v1482
      %v1484 = vpop.f32.mrf.mxu0
      %v1485 = vpop.f32.mrf.mxu0
      %v1486 = vadd.f32 0.0, %v1485
      %v1487 = vpop.f32.mrf.mxu0
      %1488 = vmatprep.mubr.bf16.mxu0 0
      %1489 = vmatmul.mubr.bf16.gmra.mxu0 %v1336
      %v1490 = vpop.f32.mrf.mxu0
      %v1491 = vadd.f32 0.0, %v1490
      %v1492 = vpop.f32.mrf.mxu0
      %v1493 = vpop.f32.mrf.mxu0
      %v1494 = vadd.f32 0.0, %v1493
      %v1495 = vpop.f32.mrf.mxu0
      %1496 = vmatprep.mubr.bf16.mxu0 0
      %1497 = vmatmul.mubr.bf16.gmra.mxu0 %v1338
      %v1498 = vpop.f32.mrf.mxu0
      %v1499 = vadd.f32 0.0, %v1498
      %v1500 = vpop.f32.mrf.mxu0
      %v1501 = vpop.f32.mrf.mxu0
      %v1502 = vadd.f32 0.0, %v1501
      %v1503 = vpop.f32.mrf.mxu0
      %1504 = vdwg.mxu0
      %v1508 = vunpack.c.l.b16 %v1291
      %v1509 = vunpack.c.l.b16 %v1292
      %v1510 = vunpack.c.l.b16 %v1293
      %v1511 = vpack.c.b16 %v1509, %v1508
      %v1512 = vpack.c.b16 %v1510, %v1510
      %v1515 = vsel %vm1340, %v1512, 0
      %1517 = vmatprep.subr.bf16.mxu0 0
      %1518 = vmatpush1.bf16.msra.mxu0 0
      %1519 = vmatprep.subr.bf16.mxu0 0
      %1520 = vmatpush1.bf16.msra.mxu0 0
      %1521 = vmatprep.subr.bf16.mxu0 0
      %1522 = vmatpush1.bf16.msra.mxu0 0
      %1523 = vmatprep.subr.bf16.mxu0 0
      %1524 = vmatpush1.bf16.msra.mxu0 0
      %1525 = vmatprep.subr.bf16.mxu0 0
      %1526 = vmatpush1.bf16.msra.mxu0 0
      %1527 = vmatprep.subr.bf16.mxu0 0
      %1528 = vmatpush1.bf16.msra.mxu0 0
      %1529 = vmatprep.subr.bf16.mxu0 0
      %1530 = vmatpush1.bf16.msra.mxu0 %v1515
      %1531 = vmatprep.subr.bf16.mxu0 0
      %1532 = vmatpush1.bf16.msra.mxu0 %v1511
      %1533 = vmatprep.subr.bf16.mxu0 0
      %1534 = vmatpush2.bf16.msra.mxu0 0
      %1535 = vmatprep.subr.bf16.mxu0 0
      %1536 = vmatpush2.bf16.msra.mxu0 0
      %1537 = vmatprep.subr.bf16.mxu0 0
      %1538 = vmatpush2.bf16.msra.mxu0 0
      %1539 = vmatprep.subr.bf16.mxu0 0
      %1540 = vmatpush2.bf16.msra.mxu0 0
      %1541 = vmatprep.subr.bf16.mxu0 0
      %1542 = vmatpush2.bf16.msra.mxu0 0
      %1543 = vmatprep.subr.bf16.mxu0 0
      %1544 = vmatpush2.bf16.msra.mxu0 0
      %1545 = vmatprep.subr.bf16.mxu0 0
      %1546 = vmatpush2.bf16.msra.mxu0 0
      %1547 = vmatprep.subr.bf16.mxu0 0
      %1548 = vmatpush2.bf16.msra.mxu0 0
      %1549 = vmatprep.mubr.bf16.mxu0 0
      %1550 = vmatmul.mubr.bf16.gmra.mxu0 %v1310
      %v1551 = vpop.f32.mrf.mxu0
      %v1552 = vadd.f32 %v1379, %v1551
      %v1553 = vpop.f32.mrf.mxu0
      %v1554 = vpop.f32.mrf.mxu0
      %v1555 = vadd.f32 %v1382, %v1554
      %v1556 = vpop.f32.mrf.mxu0
      %1557 = vmatprep.mubr.bf16.mxu0 0
      %1558 = vmatmul.mubr.bf16.gmra.mxu0 %v1308
      %v1559 = vpop.f32.mrf.mxu0
      %v1560 = vadd.f32 %v1387, %v1559
      %v1561 = vpop.f32.mrf.mxu0
      %v1562 = vpop.f32.mrf.mxu0
      %v1563 = vadd.f32 %v1390, %v1562
      %v1564 = vpop.f32.mrf.mxu0
      %1565 = vmatprep.mubr.bf16.mxu0 0
      %1566 = vmatmul.mubr.bf16.gmra.mxu0 %v1310
      %v1567 = vpop.f32.mrf.mxu0
      %v1568 = vadd.f32 %v1395, %v1567
      %v1569 = vpop.f32.mrf.mxu0
      %v1570 = vpop.f32.mrf.mxu0
      %v1571 = vadd.f32 %v1398, %v1570
      %v1572 = vpop.f32.mrf.mxu0
      %1573 = vmatprep.mubr.bf16.mxu0 0
      %1574 = vmatmul.mubr.bf16.gmra.mxu0 %v1312
      %v1575 = vpop.f32.mrf.mxu0
      %v1576 = vadd.f32 %v1403, %v1575
      %v1577 = vpop.f32.mrf.mxu0
      %v1578 = vpop.f32.mrf.mxu0
      %v1579 = vadd.f32 %v1406, %v1578
      %v1580 = vpop.f32.mrf.mxu0
      %1581 = vmatprep.mubr.bf16.mxu0 0
      %1582 = vmatmul.mubr.bf16.gmra.mxu0 %v1314
      %v1583 = vpop.f32.mrf.mxu0
      %v1584 = vadd.f32 %v1411, %v1583
      %v1585 = vpop.f32.mrf.mxu0
      %v1586 = vpop.f32.mrf.mxu0
      %v1587 = vadd.f32 %v1414, %v1586
      %v1588 = vpop.f32.mrf.mxu0
      %1589 = vmatprep.mubr.bf16.mxu0 0
      %1590 = vmatmul.mubr.bf16.gmra.mxu0 %v1316
      %v1591 = vpop.f32.mrf.mxu0
      %v1592 = vadd.f32 %v1419, %v1591
      %v1593 = vpop.f32.mrf.mxu0
      %v1594 = vpop.f32.mrf.mxu0
      %v1595 = vadd.f32 %v1422, %v1594
      %v1596 = vpop.f32.mrf.mxu0
      %1597 = vmatprep.mubr.bf16.mxu0 0
      %1598 = vmatmul.mubr.bf16.gmra.mxu0 %v1318
      %v1599 = vpop.f32.mrf.mxu0
      %v1600 = vadd.f32 %v1427, %v1599
      %v1601 = vpop.f32.mrf.mxu0
      %v1602 = vpop.f32.mrf.mxu0
      %v1603 = vadd.f32 %v1430, %v1602
      %v1604 = vpop.f32.mrf.mxu0
      %1605 = vmatprep.mubr.bf16.mxu0 0
      %1606 = vmatmul.mubr.bf16.gmra.mxu0 %v1320
      %v1607 = vpop.f32.mrf.mxu0
      %v1608 = vadd.f32 %v1435, %v1607
      %v1609 = vpop.f32.mrf.mxu0
      %v1610 = vpop.f32.mrf.mxu0
      %v1611 = vadd.f32 %v1438, %v1610
      %v1612 = vpop.f32.mrf.mxu0
      %1613 = vmatprep.mubr.bf16.mxu0 0
      %1614 = vmatmul.mubr.bf16.gmra.mxu0 %v1322
      %v1615 = vpop.f32.mrf.mxu0
      %v1616 = vadd.f32 %v1443, %v1615
      %v1617 = vpop.f32.mrf.mxu0
      %v1618 = vpop.f32.mrf.mxu0
      %v1619 = vadd.f32 %v1446, %v1618
      %v1620 = vpop.f32.mrf.mxu0
      %1621 = vmatprep.mubr.bf16.mxu0 0
      %1622 = vmatmul.mubr.bf16.gmra.mxu0 %v1324
      %v1623 = vpop.f32.mrf.mxu0
      %v1624 = vadd.f32 %v1451, %v1623
      %v1625 = vpop.f32.mrf.mxu0
      %v1626 = vpop.f32.mrf.mxu0
      %v1627 = vadd.f32 %v1454, %v1626
      %v1628 = vpop.f32.mrf.mxu0
      %1629 = vmatprep.mubr.bf16.mxu0 0
      %1630 = vmatmul.mubr.bf16.gmra.mxu0 %v1326
      %v1631 = vpop.f32.mrf.mxu0
      %v1632 = vadd.f32 %v1459, %v1631
      %v1633 = vpop.f32.mrf.mxu0
      %v1634 = vpop.f32.mrf.mxu0
      %v1635 = vadd.f32 %v1462, %v1634
      %v1636 = vpop.f32.mrf.mxu0
      %1637 = vmatprep.mubr.bf16.mxu0 0
      %1638 = vmatmul.mubr.bf16.gmra.mxu0 %v1328
      %v1639 = vpop.f32.mrf.mxu0
      %v1640 = vadd.f32 %v1467, %v1639
      %v1641 = vpop.f32.mrf.mxu0
      %v1642 = vpop.f32.mrf.mxu0
      %v1643 = vadd.f32 %v1470, %v1642
      %v1644 = vpop.f32.mrf.mxu0
      %1645 = vmatprep.mubr.bf16.mxu0 0
      %1646 = vmatmul.mubr.bf16.gmra.mxu0 %v1330
      %v1647 = vpop.f32.mrf.mxu0
      %v1648 = vadd.f32 %v1475, %v1647
      %v1649 = vpop.f32.mrf.mxu0
      %v1650 = vpop.f32.mrf.mxu0
      %v1651 = vadd.f32 %v1478, %v1650
      %v1652 = vpop.f32.mrf.mxu0
      %1653 = vmatprep.mubr.bf16.mxu0 0
      %1654 = vmatmul.mubr.bf16.gmra.mxu0 %v1332
      %v1655 = vpop.f32.mrf.mxu0
      %v1656 = vadd.f32 %v1483, %v1655
      %v1657 = vpop.f32.mrf.mxu0
      %v1658 = vpop.f32.mrf.mxu0
      %v1659 = vadd.f32 %v1486, %v1658
      %v1660 = vpop.f32.mrf.mxu0
      %1661 = vmatprep.mubr.bf16.mxu0 0
      %1662 = vmatmul.mubr.bf16.gmra.mxu0 %v1334
      %v1663 = vpop.f32.mrf.mxu0
      %v1664 = vadd.f32 %v1491, %v1663
      %v1665 = vpop.f32.mrf.mxu0
      %v1666 = vpop.f32.mrf.mxu0
      %v1667 = vadd.f32 %v1494, %v1666
      %v1668 = vpop.f32.mrf.mxu0
      %1669 = vmatprep.mubr.bf16.mxu0 0
      %1670 = vmatmul.mubr.bf16.gmra.mxu0 %v1336
      %v1671 = vpop.f32.mrf.mxu0
      %v1672 = vadd.f32 %v1499, %v1671
      %v1673 = vpop.f32.mrf.mxu0
      %v1674 = vpop.f32.mrf.mxu0
      %v1675 = vadd.f32 %v1502, %v1674
      %v1676 = vpop.f32.mrf.mxu0
      %1677 = vdwg.mxu0
      %s1678 = scalar_lea.vmem %s3, 24
      %v1679 = vld [vmem:[%s1678] sm:$0xf]
      %v1680 = vld [vmem:[%s1678 + $0x4] sm:$0xf]
      %v1681 = vld [vmem:[%s1678 + $0x8] sm:$0xf]
      %v1685 = vunpack.c.l.b16 %v1679
      %v1686 = vunpack.c.l.b16 %v1680
      %v1687 = vunpack.c.l.b16 %v1681
      %v1688 = vpack.c.b16 %v1686, %v1685
      %v1689 = vpack.c.b16 %v1687, %v1687
      %v1692 = vsel %vm1340, %v1689, 0
      %1694 = vmatprep.subr.bf16.mxu0 0
      %1695 = vmatpush1.bf16.msra.mxu0 0
      %1696 = vmatprep.subr.bf16.mxu0 0
      %1697 = vmatpush1.bf16.msra.mxu0 0
      %1698 = vmatprep.subr.bf16.mxu0 0
      %1699 = vmatpush1.bf16.msra.mxu0 0
      %1700 = vmatprep.subr.bf16.mxu0 0
      %1701 = vmatpush1.bf16.msra.mxu0 0
      %1702 = vmatprep.subr.bf16.mxu0 0
      %1703 = vmatpush1.bf16.msra.mxu0 0
      %1704 = vmatprep.subr.bf16.mxu0 0
      %1705 = vmatpush1.bf16.msra.mxu0 0
      %1706 = vmatprep.subr.bf16.mxu0 0
      %1707 = vmatpush1.bf16.msra.mxu0 %v1692
      %1708 = vmatprep.subr.bf16.mxu0 0
      %1709 = vmatpush1.bf16.msra.mxu0 %v1688
      %1710 = vmatprep.subr.bf16.mxu0 0
      %1711 = vmatpush2.bf16.msra.mxu0 0
      %1712 = vmatprep.subr.bf16.mxu0 0
      %1713 = vmatpush2.bf16.msra.mxu0 0
      %1714 = vmatprep.subr.bf16.mxu0 0
      %1715 = vmatpush2.bf16.msra.mxu0 0
      %1716 = vmatprep.subr.bf16.mxu0 0
      %1717 = vmatpush2.bf16.msra.mxu0 0
      %1718 = vmatprep.subr.bf16.mxu0 0
      %1719 = vmatpush2.bf16.msra.mxu0 0
      %1720 = vmatprep.subr.bf16.mxu0 0
      %1721 = vmatpush2.bf16.msra.mxu0 0
      %1722 = vmatprep.subr.bf16.mxu0 0
      %1723 = vmatpush2.bf16.msra.mxu0 0
      %1724 = vmatprep.subr.bf16.mxu0 0
      %1725 = vmatpush2.bf16.msra.mxu0 0
      %1726 = vmatprep.mubr.bf16.mxu0 0
      %1727 = vmatmul.mubr.bf16.gmra.mxu0 %v1310
      %v1728 = vpop.f32.mrf.mxu0
      %v1729 = vadd.f32 0.0, %v1728
      %v1730 = vpop.f32.mrf.mxu0
      %v1731 = vpop.f32.mrf.mxu0
      %v1732 = vadd.f32 0.0, %v1731
      %v1733 = vpop.f32.mrf.mxu0
      %1734 = vmatprep.mubr.bf16.mxu0 0
      %1735 = vmatmul.mubr.bf16.gmra.mxu0 %v1312
      %v1736 = vpop.f32.mrf.mxu0
      %v1737 = vadd.f32 0.0, %v1736
      %v1738 = vpop.f32.mrf.mxu0
      %v1739 = vpop.f32.mrf.mxu0
      %v1740 = vadd.f32 0.0, %v1739
      %v1741 = vpop.f32.mrf.mxu0
      %1742 = vmatprep.mubr.bf16.mxu0 0
      %1743 = vmatmul.mubr.bf16.gmra.mxu0 %v1314
      %v1744 = vpop.f32.mrf.mxu0
      %v1745 = vadd.f32 0.0, %v1744
      %v1746 = vpop.f32.mrf.mxu0
      %v1747 = vpop.f32.mrf.mxu0
      %v1748 = vadd.f32 0.0, %v1747
      %v1749 = vpop.f32.mrf.mxu0
      %1750 = vmatprep.mubr.bf16.mxu0 0
      %1751 = vmatmul.mubr.bf16.gmra.mxu0 %v1316
      %v1752 = vpop.f32.mrf.mxu0
      %v1753 = vadd.f32 0.0, %v1752
      %v1754 = vpop.f32.mrf.mxu0
      %v1755 = vpop.f32.mrf.mxu0
      %v1756 = vadd.f32 0.0, %v1755
      %v1757 = vpop.f32.mrf.mxu0
      %1758 = vmatprep.mubr.bf16.mxu0 0
      %1759 = vmatmul.mubr.bf16.gmra.mxu0 %v1318
      %v1760 = vpop.f32.mrf.mxu0
      %v1761 = vadd.f32 0.0, %v1760
      %v1762 = vpop.f32.mrf.mxu0
      %v1763 = vpop.f32.mrf.mxu0
      %v1764 = vadd.f32 0.0, %v1763
      %v1765 = vpop.f32.mrf.mxu0
      %1766 = vmatprep.mubr.bf16.mxu0 0
      %1767 = vmatmul.mubr.bf16.gmra.mxu0 %v1320
      %v1768 = vpop.f32.mrf.mxu0
      %v1769 = vadd.f32 0.0, %v1768
      %v1770 = vpop.f32.mrf.mxu0
      %v1771 = vpop.f32.mrf.mxu0
      %v1772 = vadd.f32 0.0, %v1771
      %v1773 = vpop.f32.mrf.mxu0
      %1774 = vmatprep.mubr.bf16.mxu0 0
      %1775 = vmatmul.mubr.bf16.gmra.mxu0 %v1322
      %v1776 = vpop.f32.mrf.mxu0
      %v1777 = vadd.f32 0.0, %v1776
      %v1778 = vpop.f32.mrf.mxu0
      %v1779 = vpop.f32.mrf.mxu0
      %v1780 = vadd.f32 0.0, %v1779
      %v1781 = vpop.f32.mrf.mxu0
      %1782 = vmatprep.mubr.bf16.mxu0 0
      %1783 = vmatmul.mubr.bf16.gmra.mxu0 %v1324
      %v1784 = vpop.f32.mrf.mxu0
      %v1785 = vadd.f32 0.0, %v1784
      %v1786 = vpop.f32.mrf.mxu0
      %v1787 = vpop.f32.mrf.mxu0
      %v1788 = vadd.f32 0.0, %v1787
      %v1789 = vpop.f32.mrf.mxu0
      %1790 = vmatprep.mubr.bf16.mxu0 0
      %1791 = vmatmul.mubr.bf16.gmra.mxu0 %v1326
      %v1792 = vpop.f32.mrf.mxu0
      %v1793 = vadd.f32 0.0, %v1792
      %v1794 = vpop.f32.mrf.mxu0
      %v1795 = vpop.f32.mrf.mxu0
      %v1796 = vadd.f32 0.0, %v1795
      %v1797 = vpop.f32.mrf.mxu0
      %1798 = vmatprep.mubr.bf16.mxu0 0
      %1799 = vmatmul.mubr.bf16.gmra.mxu0 %v1328
      %v1800 = vpop.f32.mrf.mxu0
      %v1801 = vadd.f32 0.0, %v1800
      %v1802 = vpop.f32.mrf.mxu0
      %v1803 = vpop.f32.mrf.mxu0
      %v1804 = vadd.f32 0.0, %v1803
      %v1805 = vpop.f32.mrf.mxu0
      %1806 = vmatprep.mubr.bf16.mxu0 0
      %1807 = vmatmul.mubr.bf16.gmra.mxu0 %v1330
      %v1808 = vpop.f32.mrf.mxu0
      %v1809 = vadd.f32 0.0, %v1808
      %v1810 = vpop.f32.mrf.mxu0
      %v1811 = vpop.f32.mrf.mxu0
      %v1812 = vadd.f32 0.0, %v1811
      %v1813 = vpop.f32.mrf.mxu0
      %1814 = vmatprep.mubr.bf16.mxu0 0
      %1815 = vmatmul.mubr.bf16.gmra.mxu0 %v1332
      %v1816 = vpop.f32.mrf.mxu0
      %v1817 = vadd.f32 0.0, %v1816
      %v1818 = vpop.f32.mrf.mxu0
      %v1819 = vpop.f32.mrf.mxu0
      %v1820 = vadd.f32 0.0, %v1819
      %v1821 = vpop.f32.mrf.mxu0
      %1822 = vmatprep.mubr.bf16.mxu0 0
      %1823 = vmatmul.mubr.bf16.gmra.mxu0 %v1334
      %v1824 = vpop.f32.mrf.mxu0
      %v1825 = vadd.f32 0.0, %v1824
      %v1826 = vpop.f32.mrf.mxu0
      %v1827 = vpop.f32.mrf.mxu0
      %v1828 = vadd.f32 0.0, %v1827
      %v1829 = vpop.f32.mrf.mxu0
      %1830 = vmatprep.mubr.bf16.mxu0 0
      %1831 = vmatmul.mubr.bf16.gmra.mxu0 %v1336
      %v1832 = vpop.f32.mrf.mxu0
      %v1833 = vadd.f32 0.0, %v1832
      %v1834 = vpop.f32.mrf.mxu0
      %v1835 = vpop.f32.mrf.mxu0
      %v1836 = vadd.f32 0.0, %v1835
      %v1837 = vpop.f32.mrf.mxu0
      %1838 = vmatprep.mubr.bf16.mxu0 0
      %1839 = vmatmul.mubr.bf16.gmra.mxu0 %v1338
      %v1840 = vpop.f32.mrf.mxu0
      %v1841 = vadd.f32 0.0, %v1840
      %v1842 = vpop.f32.mrf.mxu0
      %v1843 = vpop.f32.mrf.mxu0
      %v1844 = vadd.f32 0.0, %v1843
      %v1845 = vpop.f32.mrf.mxu0
      %1846 = vmatprep.mubr.bf16.mxu0 0
      %1847 = vmatmul.mubr.bf16.gmra.mxu0 %v1336
      %v1848 = vpop.f32.mrf.mxu0
      %v1849 = vadd.f32 0.0, %v1848
      %v1850 = vpop.f32.mrf.mxu0
      %v1851 = vpop.f32.mrf.mxu0
      %v1852 = vadd.f32 0.0, %v1851
      %v1853 = vpop.f32.mrf.mxu0
      %1854 = vdwg.mxu0
      %v1855 = vadd.f32 %v1552, %v1729
      %v1856 = vadd.f32 %v1555, %v1732
      %v1857 = vadd.f32 %v1560, %v1737
      %v1858 = vadd.f32 %v1563, %v1740
      %v1859 = vadd.f32 %v1568, %v1745
      %v1860 = vadd.f32 %v1571, %v1748
      %v1861 = vadd.f32 %v1576, %v1753
      %v1862 = vadd.f32 %v1579, %v1756
      %v1863 = vadd.f32 %v1584, %v1761
      %v1864 = vadd.f32 %v1587, %v1764
      %v1865 = vadd.f32 %v1592, %v1769
      %v1866 = vadd.f32 %v1595, %v1772
      %v1867 = vadd.f32 %v1600, %v1777
      %v1868 = vadd.f32 %v1603, %v1780
      %v1869 = vadd.f32 %v1608, %v1785
      %v1870 = vadd.f32 %v1611, %v1788
      %v1871 = vadd.f32 %v1616, %v1793
      %v1872 = vadd.f32 %v1619, %v1796
      %v1873 = vadd.f32 %v1624, %v1801
      %v1874 = vadd.f32 %v1627, %v1804
      %v1875 = vadd.f32 %v1632, %v1809
      %v1876 = vadd.f32 %v1635, %v1812
      %v1877 = vadd.f32 %v1640, %v1817
      %v1878 = vadd.f32 %v1643, %v1820
      %v1879 = vadd.f32 %v1648, %v1825
      %v1880 = vadd.f32 %v1651, %v1828
      %v1881 = vadd.f32 %v1656, %v1833
      %v1882 = vadd.f32 %v1659, %v1836
      %v1883 = vadd.f32 %v1664, %v1841
      %v1884 = vadd.f32 %v1667, %v1844
      %v1885 = vadd.f32 %v1672, %v1849
      %v1886 = vadd.f32 %v1675, %v1852
      %v1887 = vld [vmem:[%s4] sm:$0x1]
      %v1889 = vlaneseq
      %v1890 = vshrl.u32 %v1889, 7
      %v1891 = vsub.s32 0, %v1890
      %v1892 = vrot.slane %v1887, %v1891
      %v1894 = vadd.f32 %v1855, %v1892
      %v1895 = vadd.f32 %v1856, %v1892
      %v1896 = vadd.f32 %v1857, %v1892
      %v1897 = vadd.f32 %v1858, %v1892
      %v1898 = vadd.f32 %v1859, %v1892
      %v1899 = vadd.f32 %v1860, %v1892
      %v1900 = vadd.f32 %v1861, %v1892
      %v1901 = vadd.f32 %v1862, %v1892
      %v1902 = vadd.f32 %v1863, %v1892
      %v1903 = vadd.f32 %v1864, %v1892
      %v1904 = vadd.f32 %v1865, %v1892
      %v1905 = vadd.f32 %v1866, %v1892
      %v1906 = vadd.f32 %v1867, %v1892
      %v1907 = vadd.f32 %v1868, %v1892
      %v1908 = vadd.f32 %v1869, %v1892
      %v1909 = vadd.f32 %v1870, %v1892
      %v1910 = vadd.f32 %v1871, %v1892
      %v1911 = vadd.f32 %v1872, %v1892
      %v1912 = vadd.f32 %v1873, %v1892
      %v1913 = vadd.f32 %v1874, %v1892
      %v1914 = vadd.f32 %v1875, %v1892
      %v1915 = vadd.f32 %v1876, %v1892
      %v1916 = vadd.f32 %v1877, %v1892
      %v1917 = vadd.f32 %v1878, %v1892
      %v1918 = vadd.f32 %v1879, %v1892
      %v1919 = vadd.f32 %v1880, %v1892
      %v1920 = vadd.f32 %v1881, %v1892
      %v1921 = vadd.f32 %v1882, %v1892
      %v1922 = vadd.f32 %v1883, %v1892
      %v1923 = vadd.f32 %v1884, %v1892
      %v1924 = vadd.f32 %v1885, %v1892
      %v1925 = vadd.f32 %v1886, %v1892
      %v1926 = vmax.f32 %v1894, 0.0
      %v1927 = vmax.f32 %v1895, 0.0
      %v1928 = vmax.f32 %v1896, 0.0
      %v1929 = vmax.f32 %v1897, 0.0
      %v1930 = vmax.f32 %v1898, 0.0
      %v1931 = vmax.f32 %v1899, 0.0
      %v1932 = vmax.f32 %v1900, 0.0
      %v1933 = vmax.f32 %v1901, 0.0
      %v1934 = vmax.f32 %v1902, 0.0
      %v1935 = vmax.f32 %v1903, 0.0
      %v1936 = vmax.f32 %v1904, 0.0
      %v1937 = vmax.f32 %v1905, 0.0
      %v1938 = vmax.f32 %v1906, 0.0
      %v1939 = vmax.f32 %v1907, 0.0
      %v1940 = vmax.f32 %v1908, 0.0
      %v1941 = vmax.f32 %v1909, 0.0
      %v1942 = vmax.f32 %v1910, 0.0
      %v1943 = vmax.f32 %v1911, 0.0
      %v1944 = vmax.f32 %v1912, 0.0
      %v1945 = vmax.f32 %v1913, 0.0
      %v1946 = vmax.f32 %v1914, 0.0
      %v1947 = vmax.f32 %v1915, 0.0
      %v1948 = vmax.f32 %v1916, 0.0
      %v1949 = vmax.f32 %v1917, 0.0
      %v1950 = vmax.f32 %v1918, 0.0
      %v1951 = vmax.f32 %v1919, 0.0
      %v1952 = vmax.f32 %v1920, 0.0
      %v1953 = vmax.f32 %v1921, 0.0
      %v1954 = vmax.f32 %v1922, 0.0
      %v1955 = vmax.f32 %v1923, 0.0
      %v1956 = vmax.f32 %v1924, 0.0
      %v1957 = vmax.f32 %v1925, 0.0
      %vm1958 = vcmask 23552
      %1959 = vst.msk [vmem:[%s264] sm:$0xff] %vm1958, %v1926
      %1960 = vst.msk [vmem:[%s264 + $0x8] sm:$0xff] %vm1958, %v1927
      %1961 = vst.msk [vmem:[%s264 + $0x10] sm:$0xff] %vm1958, %v1928
      %1962 = vst.msk [vmem:[%s264 + $0x18] sm:$0xff] %vm1958, %v1929
      %1963 = vst.msk [vmem:[%s264 + $0x20] sm:$0xff] %vm1958, %v1930
      %1964 = vst.msk [vmem:[%s264 + $0x28] sm:$0xff] %vm1958, %v1931
      %1965 = vst.msk [vmem:[%s264 + $0x30] sm:$0xff] %vm1958, %v1932
      %1966 = vst.msk [vmem:[%s264 + $0x38] sm:$0xff] %vm1958, %v1933
      %1967 = vst.msk [vmem:[%s264 + $0x40] sm:$0xff] %vm1958, %v1934
      %1968 = vst.msk [vmem:[%s264 + $0x48] sm:$0xff] %vm1958, %v1935
      %1969 = vst.msk [vmem:[%s264 + $0x50] sm:$0xff] %vm1958, %v1936
      %1970 = vst.msk [vmem:[%s264 + $0x58] sm:$0xff] %vm1958, %v1937
      %1971 = vst.msk [vmem:[%s264 + $0x60] sm:$0xff] %vm1958, %v1938
      %1972 = vst.msk [vmem:[%s264 + $0x68] sm:$0xff] %vm1958, %v1939
      %1973 = vst.msk [vmem:[%s264 + $0x70] sm:$0xff] %vm1958, %v1940
      %1974 = vst.msk [vmem:[%s264 + $0x78] sm:$0xff] %vm1958, %v1941
      %1975 = vst.msk [vmem:[%s264 + $0x80] sm:$0xff] %vm1958, %v1942
      %1976 = vst.msk [vmem:[%s264 + $0x88] sm:$0xff] %vm1958, %v1943
      %1977 = vst.msk [vmem:[%s264 + $0x90] sm:$0xff] %vm1958, %v1944
      %1978 = vst.msk [vmem:[%s264 + $0x98] sm:$0xff] %vm1958, %v1945
      %1979 = vst.msk [vmem:[%s264 + $0xa0] sm:$0xff] %vm1958, %v1946
      %1980 = vst.msk [vmem:[%s264 + $0xa8] sm:$0xff] %vm1958, %v1947
      %1981 = vst.msk [vmem:[%s264 + $0xb0] sm:$0xff] %vm1958, %v1948
      %1982 = vst.msk [vmem:[%s264 + $0xb8] sm:$0xff] %vm1958, %v1949
      %1983 = vst.msk [vmem:[%s264 + $0xc0] sm:$0xff] %vm1958, %v1950
      %1984 = vst.msk [vmem:[%s264 + $0xc8] sm:$0xff] %vm1958, %v1951
      %1985 = vst.msk [vmem:[%s264 + $0xd0] sm:$0xff] %vm1958, %v1952
      %1986 = vst.msk [vmem:[%s264 + $0xd8] sm:$0xff] %vm1958, %v1953
      %1987 = vst.msk [vmem:[%s264 + $0xe0] sm:$0xff] %vm1958, %v1954
      %1988 = vst.msk [vmem:[%s264 + $0xe8] sm:$0xff] %vm1958, %v1955
      %1989 = vst.msk [vmem:[%s264 + $0xf0] sm:$0xff] %vm1958, %v1956
      %1990 = vst.msk [vmem:[%s264 + $0xf8] sm:$0xff] %vm1958, %v1957
      %p1991 = scmp.lt.s32.totalorder %s16, 1
      %s1992 = scalar_select %p1991, %s16, 1
      %s1993 = smul.addr %s1992, 32
      %s1994 = smul.addr %s1993, 8
      %s1995 = scalar_lea.vmem %s5, %s1994
      // Predicated region
      $region41: #{_lambda_.5} parent=39 // pred_check
        %p1996 = pneg %p154
      $region42: #{_lambda_.5} parent=39 // pred_check_branch
        %1998 = sbr.rel (%p1996) target = $region44
      $region43: #{_lambda_.5} parent=39 // pred_region
        _
      $region44: #{_lambda_.5} parent=39 // pred_fallthru
        _
    $region40: #{_lambda_.5} parent=5 // pred_fallthru
      _
    %p1999 = scmp.le.s32.totalorder 2, %s11
    // Predicated region
    $region45: #{_lambda_.5} parent=5 // pred_check
      %p2000 = pneg %p1999
    $region46: #{_lambda_.5} parent=5 // pred_check_branch
      %2002 = sbr.rel (%p2000) target = $region48
    $region47: #{_lambda_.5} parent=5 // pred_region
      %s2003 = ssub.s32 %s11, 2
      // Predicated region
      $region49: #{_lambda_.5} parent=47 // pred_check
        %p2004 = pneg %p160
      $region50: #{_lambda_.5} parent=47 // pred_check_branch
        %2006 = sbr.rel (%p2004) target = $region52
      $region51: #{_lambda_.5} parent=47 // pred_region
        %p2007 = scmp.lt.s32.totalorder %s17, 1
        %s2008 = scalar_select %p2007, %s17, 1
        %s2009 = smul.addr %s2008, 32
        %s2010 = smul.addr %s2009, 8
        %s2011 = scalar_lea.vmem %s5, %s2010
      $region52: #{_lambda_.5} parent=47 // pred_fallthru
        _
    $region48: #{_lambda_.5} parent=5 // pred_fallthru
      _
  $region6: #{_lambda_.5} parent=0 // loop_footer
    %s15 = sadd.s32 1, %s11
  $region7: #{_lambda_.5} parent=0 // loop_footer_branch
    %10 = sbr.rel target = $region3
  $region8: #{_lambda_.5} parent=0 // loop_exit
    _

</llo_original>
